<compile_context>
chip_gen: v7x
topology: tpu7x:2x2x1
jax: 0.10.0
libtpu: 0.0.40
codegen_flags: <defaults>
</compile_context>

<pallas_src>
import functools

import jax
import jax.numpy as jnp
from jax.experimental import pallas as pl
from jax.experimental.pallas import tpu as pltpu

# ----------------------------- hyper-params ---------------------------------
BATCH = 2
SEQ_LEN = 8
LATENT = 8
NF = [1, 4, 4, 8, 8, 8, 16]                 # nf[0..6]
N_T0, N_T1, N_T2, N_T3 = 16, 12, 10, 8      # torso graph hierarchy sizes
N_H4, N_H3, N_H2, N_H1, N_H0 = 8, 10, 12, 14, 16   # heart graph hierarchy

F32 = jnp.float32
BF16 = jnp.bfloat16

# Order in which the derived weight slabs are passed to the fused kernel.
_ARG_KEYS = (
    "enc1_L", "enc1_W", "enc1_b",
    "enc2_L", "enc2_W", "enc2_b",
    "enc3_L", "enc3_W", "enc3_b",
    "ench_L", "ench_W1", "ench_b1", "ench_W2", "ench_b2",
    "inv_L", "inv_W",
    "ode_A", "ode_W", "ode_b",
    "gru_WxT", "gru_bxT", "gru_Wh",
    "dech_W3", "dech_b3", "dech_W4", "dech_b4", "dech_L", "dech_Wd", "dech_bd",
    "dec2_L", "dec2_W", "dec2_b",
    "dec3_L", "dec3_W", "dec3_b",
    "dect_L", "dect_W", "dect_b",
    "h_L", "H",
)


# ------------------------------ small helpers --------------------------------
def _elu(x):
    # numerically safe ELU (no exp overflow in the untaken branch), f32
    return jnp.where(x > 0, x, jnp.exp(jnp.minimum(x, 0.0)) - 1.0)


def _sigmoid(x):
    # tanh-based sigmoid: single EUP op, no division, no overflow
    return 0.5 * (jnp.tanh(0.5 * x) + 1.0)


def _mxu(a, b):
    """MXU matmul: bf16 operands, float32 accumulation."""
    return jnp.dot(a.astype(BF16), b.astype(BF16), preferred_element_type=F32)


def _gblock(L, x, W, b, act):
    """One graph layer:  act( L @ X @ kron(I,W) + b )."""
    y = _mxu(_mxu(L, x), W) + b
    if act == "elu":
        return _elu(y)
    if act == "tanh":
        return jnp.tanh(y)
    return y


def _zero_idx(ndim):
    return lambda i: (0,) * ndim


# ------------------------------ fused kernel ---------------------------------
def _fused_forward_kernel(x_ref, *refs, T, B, L):
    """Whole forward pass in one kernel; every activation stays in VMEM."""
    n = len(_ARG_KEYS)
    d = dict(zip(_ARG_KEYS, refs[:n]))
    h_pack_ref, dec_pack_ref = refs[n], refs[n + 1]
    BL = B * L

    # ---------------- encoder: 3 graph blocks + head ----------------
    x = x_ref[...]                                                   # (N_T0, S)
    x = _gblock(d["enc1_L"][...], x, d["enc1_W"][...], d["enc1_b"][...], "elu")
    x = _gblock(d["enc2_L"][...], x, d["enc2_W"][...], d["enc2_b"][...], "elu")
    x = _gblock(d["enc3_L"][...], x, d["enc3_W"][...], d["enc3_b"][...], "elu")
    h = _mxu(d["ench_L"][...], x)                                    # pool t_P23
    h = _elu(_mxu(h, d["ench_W1"][...]) + d["ench_b1"][...])         # fce1
    mu = jnp.tanh(_mxu(h, d["ench_W2"][...]) + d["ench_b2"][...])    # fce2

    # ---------------- inverse (torso -> heart), no bias/act ----------------
    z = _mxu(_mxu(d["inv_L"][...], mu), d["inv_W"][...])             # (N_H4, T*BL)

    # ---------------- ODE-RNN: whole time loop, state VMEM-resident ----------
    A = d["ode_A"][...]
    Wode = d["ode_W"][...]
    bode = d["ode_b"][...]
    Wh = d["gru_Wh"][...]
    # Hoisted input-gate matmul for ALL T steps (off the serial chain).
    gx_all = _mxu(z, d["gru_WxT"][...]) + d["gru_bxT"][...]          # (N_H4, T*3BL)

    h_t = jnp.zeros((z.shape[0], BL), F32)
    hs, hodes = [], []
    for t in range(T):                       # static unroll: T fixed & small
        # explicit-Euler ODE step with a graph-conv vector field (dt = 1.0)
        f = jnp.tanh(_mxu(A, _mxu(h_t, Wode)) + bode)
        h_ode = h_t + f
        # GRU update (CuDNN-style candidate gate); GX pre-computed above
        gx = gx_all[:, t * 3 * BL:(t + 1) * 3 * BL]
        gh = _mxu(h_ode, Wh)
        r = _sigmoid(gx[:, :BL] + gh[:, :BL])
        u = _sigmoid(gx[:, BL:2 * BL] + gh[:, BL:2 * BL])
        c = jnp.tanh(gx[:, 2 * BL:] + r * gh[:, 2 * BL:])
        h_t = (1.0 - u) * h_ode + u * c
        hs.append(h_t)
        hodes.append(h_ode)

    # lane-dense (N_H4, T*BL) slabs: exactly the layout the decoder consumes
    h_all = jnp.concatenate(hs, axis=1)
    hode_all = jnp.concatenate(hodes, axis=1)
    h_pack_ref[...] = jnp.concatenate([h_all, hode_all], axis=0)     # (2*N_H4, T*BL)

    # ---------------- decoder ----------------
    xd = _elu(_mxu(h_all, d["dech_W3"][...]) + d["dech_b3"][...])    # fcd3
    xd = _elu(_mxu(xd, d["dech_W4"][...]) + d["dech_b4"][...])       # fcd4
    xd = _mxu(d["dech_L"][...], xd)                                  # P43 + bg3 agg
    xd = _elu(_mxu(xd, d["dech_Wd"][...]) + d["dech_bd"][...])       # deconv4
    xd = _gblock(d["dec2_L"][...], xd, d["dec2_W"][...], d["dec2_b"][...], "elu")
    xd = _gblock(d["dec3_L"][...], xd, d["dec3_W"][...], d["dec3_b"][...], "elu")
    phi = _mxu(_mxu(d["dect_L"][...], xd), d["dect_W"][...]) + d["dect_b"][...]

    # ---------------- physics ----------------
    l_h = _mxu(d["h_L"][...], phi)
    phi_t_ = _mxu(d["H"][...], phi)
    dec_pack_ref[...] = jnp.concatenate([phi, l_h, phi_t_], axis=1)  # (N_H0, 3*S)


# ------------------------------ parameters -----------------------------------
def init_params(key):
    ks = iter(jax.random.split(key, 48))

    def lin(cin, cout):
        s = 1.0 / float(cin) ** 0.5
        w = jax.random.uniform(next(ks), (cin, cout), F32, -s, s)
        return w, jnp.zeros((cout,), F32)

    p = {}
    p["W_c1"], p["b_c1"] = lin(NF[0], NF[2])
    p["W_c2"], p["b_c2"] = lin(NF[2], NF[3])
    p["W_c3"], p["b_c3"] = lin(NF[3], NF[4])
    p["W_fce1"], p["b_fce1"] = lin(NF[4], NF[6])
    p["W_fce2"], p["b_fce2"] = lin(NF[6], LATENT)
    p["W_trans"], _ = lin(LATENT, LATENT)              # root_weight=False, bias=False
    p["W_ode"], p["b_ode"] = lin(LATENT, LATENT)
    for g in ("r", "u", "c"):
        p["W_x" + g], p["b_" + g] = lin(LATENT, LATENT)
        p["W_h" + g], _ = lin(LATENT, LATENT)
    p["W_fcd3"], p["b_fcd3"] = lin(LATENT, NF[5])
    p["W_fcd4"], p["b_fcd4"] = lin(NF[5], NF[4])
    p["W_d4"], p["b_d4"] = lin(NF[4], NF[3])
    p["W_d3"], p["b_d3"] = lin(NF[3], NF[2])
    p["W_d2"], p["b_d2"] = lin(NF[2], NF[1])
    p["W_d1"], p["b_d1"] = lin(NF[1], NF[0])

    def adj(n):
        a = jax.random.uniform(next(ks), (n, n), F32)
        a = 0.5 * (a + a.T) + jnp.eye(n, dtype=F32)
        return a / jnp.sum(a, axis=1, keepdims=True)

    p["A_tg"], p["A_tg1"], p["A_tg2"] = adj(N_T0), adj(N_T1), adj(N_T2)
    p["A_inv"] = adj(N_H4 + N_T3)
    p["A_bg4"], p["A_bg3"], p["A_bg2"] = adj(N_H4), adj(N_H3), adj(N_H2)
    p["A_bg1"], p["A_bg"] = adj(N_H1), adj(N_H0)

    def pool(n_out, n_in):
        m = jax.random.uniform(next(ks), (n_out, n_in), F32)
        return m / jnp.sum(m, axis=1, keepdims=True)

    p["t_P01"], p["t_P12"], p["t_P23"] = pool(N_T1, N_T0), pool(N_T2, N_T1), pool(N_T3, N_T2)
    p["P43"], p["P32"] = pool(N_H3, N_H4), pool(N_H2, N_H3)
    p["P21"], p["P10"] = pool(N_H1, N_H2), pool(N_H0, N_H1)
    p["h_L"] = jax.random.normal(next(ks), (N_H0, N_H0), F32) * 0.1
    p["H"] = jax.random.normal(next(ks), (N_T0, N_H0), F32) * 0.1
    return p


def derive(p, batch=BATCH, seq_len=SEQ_LEN):
    """Precompute (once, outside the hot path) the fused node-mix matrices,
    kron'd channel-mix weights and tiled biases. MXU operands are stored in
    bf16 (f32 accumulation inside the kernel); biases stay f32."""
    S = batch * seq_len
    eye_s = jnp.eye(S, dtype=F32)
    eye_b = jnp.eye(batch, dtype=F32)
    eye_t = jnp.eye(seq_len, dtype=F32)
    kS = lambda w: jnp.kron(eye_s, w)
    kB = lambda w: jnp.kron(eye_b, w)
    tS = lambda b: jnp.tile(b, S).reshape(1, -1)
    tB = lambda b: jnp.tile(b, batch).reshape(1, -1)
    bf = lambda a: a.astype(BF16)

    d = {}
    # encoder
    d["enc1_L"] = bf(p["A_tg"])
    d["enc1_W"], d["enc1_b"] = bf(kS(p["W_c1"])), tS(p["b_c1"])
    d["enc2_L"] = bf(p["A_tg1"] @ p["t_P01"])
    d["enc2_W"], d["enc2_b"] = bf(kS(p["W_c2"])), tS(p["b_c2"])
    d["enc3_L"] = bf(p["A_tg2"] @ p["t_P12"])
    d["enc3_W"], d["enc3_b"] = bf(kS(p["W_c3"])), tS(p["b_c3"])
    d["ench_L"] = bf(p["t_P23"])
    d["ench_W1"], d["ench_b1"] = bf(kS(p["W_fce1"])), tS(p["b_fce1"])
    d["ench_W2"], d["ench_b2"] = bf(kS(p["W_fce2"])), tS(p["b_fce2"])
    # inverse (heart rows of A_inv against torso columns; zeros contribute 0)
    d["inv_L"] = bf(p["A_inv"][:N_H4, N_H4:])
    d["inv_W"] = bf(kS(p["W_trans"]))
    # ODE-RNN (per-time-step slabs are (N_H4, batch*LATENT))
    d["ode_A"] = bf(p["A_bg4"])
    d["ode_W"], d["ode_b"] = bf(kB(p["W_ode"])), tB(p["b_ode"])
    gru_Wx = jnp.concatenate([kB(p["W_xr"]), kB(p["W_xu"]), kB(p["W_xc"])], axis=1)
    gru_bx = jnp.concatenate([tB(p["b_r"]), tB(p["b_u"]), tB(p["b_c"])], axis=1)
    # hoisted all-steps input-gate weight / bias (kron over time)
    d["gru_WxT"] = bf(jnp.kron(eye_t, gru_Wx))
    d["gru_bxT"] = jnp.tile(gru_bx, (1, seq_len))
    d["gru_Wh"] = bf(jnp.concatenate([kB(p["W_hr"]), kB(p["W_hu"]), kB(p["W_hc"])], axis=1))
    # decoder
    d["dech_W3"], d["dech_b3"] = bf(kS(p["W_fcd3"])), tS(p["b_fcd3"])
    d["dech_W4"], d["dech_b4"] = bf(kS(p["W_fcd4"])), tS(p["b_fcd4"])
    d["dech_L"] = bf(p["A_bg3"] @ p["P43"])
    d["dech_Wd"], d["dech_bd"] = bf(kS(p["W_d4"])), tS(p["b_d4"])
    d["dec2_L"] = bf(p["A_bg2"] @ p["P32"])
    d["dec2_W"], d["dec2_b"] = bf(kS(p["W_d3"])), tS(p["b_d3"])
    d["dec3_L"] = bf(p["A_bg1"] @ p["P21"])
    d["dec3_W"], d["dec3_b"] = bf(kS(p["W_d2"])), tS(p["b_d2"])
    d["dect_L"] = bf(p["A_bg"] @ p["P10"])
    d["dect_W"], d["dect_b"] = bf(kS(p["W_d1"])), tS(p["b_d1"])
    # physics
    d["h_L"], d["H"] = bf(p["h_L"]), bf(p["H"])
    return d


# ------------------------------ forward pass ---------------------------------
def forward(d, phi_t):
    B, _, T = phi_t.shape
    S = B * T
    BL = B * LATENT

    # (B, N_T0, T) -> lane-dense layout (N_T0, T*B)   (input channel C = 1)
    x = jnp.transpose(phi_t, (1, 2, 0)).reshape(N_T0, S)

    args = [x] + [d[k] for k in _ARG_KEYS]
    out_shape = (
        jax.ShapeDtypeStruct((2 * N_H4, T * BL), F32),   # [h ; h_ode] lane-dense
        jax.ShapeDtypeStruct((N_H0, 3 * S), F32),        # [phi_h | l_h | phi_t_]
    )
    kern = functools.partial(_fused_forward_kernel, T=T, B=B, L=LATENT)
    h_pack, dec_pack = pl.pallas_call(
        kern,
        out_shape=out_shape,
        grid=(1,),
        in_specs=[pl.BlockSpec(a.shape, _zero_idx(a.ndim)) for a in args],
        out_specs=tuple(pl.BlockSpec(s.shape, _zero_idx(len(s.shape))) for s in out_shape),
        compiler_params=pltpu.CompilerParams(dimension_semantics=("arbitrary",)),
    )(*args)

    # ---------------- back to (B, node, [chan,] T) views ----------------
    def to_bnlt(y):          # (N_H4, T*B*L) -> (B, N_H4, L, T)
        return jnp.transpose(y.reshape(N_H4, T, B, LATENT), (2, 0, 3, 1))

    h_out = to_bnlt(h_pack[:N_H4])
    h_ode_out = to_bnlt(h_pack[N_H4:])

    def to_bnt(y, n):        # (n, T*B) -> (B, n, T)
        return jnp.transpose(y.reshape(n, T, B), (2, 0, 1))

    phi_h = to_bnt(dec_pack[:, :S], N_H0)
    l_h = to_bnt(dec_pack[:, S:2 * S], N_H0)
    phi_t_ = to_bnt(dec_pack[:, 2 * S:], N_T0)

    mu_zeros = jnp.zeros((B, N_T3, LATENT, T), F32)
    return phi_h, phi_t_, l_h, mu_zeros, mu_zeros, h_out, h_ode_out


# ------------------------------ main -----------------------------------------
if __name__ == "__main__":
    key = jax.random.PRNGKey(0)
    k_param, k_data = jax.random.split(key)
    params = init_params(k_param)
    derived = derive(params)                       # weight-side prep, done once
    phi_t = jax.random.normal(k_data, (BATCH, N_T0 * NF[0], SEQ_LEN), F32)

    outs = jax.jit(forward)(derived, phi_t)
    jax.block_until_ready(outs)

    phi_h, phi_t_, l_h, mu0, mu1, h_out, h_ode_out = outs
    assert phi_h.shape == (BATCH, N_H0, SEQ_LEN)
    assert phi_t_.shape == (BATCH, N_T0, SEQ_LEN)
    assert l_h.shape == (BATCH, N_H0, SEQ_LEN)
    assert mu0.shape == (BATCH, N_T3, LATENT, SEQ_LEN)
    assert h_out.shape == (BATCH, N_H4, LATENT, SEQ_LEN)
    assert h_ode_out.shape == (BATCH, N_H4, LATENT, SEQ_LEN)
    assert bool(jnp.all(jnp.isfinite(phi_h)))
    print("KERNEL_OK")
</pallas_src>

<mosaic_0001>
module attributes {stable_mosaic.version = 11 : i64} {
  func.func @_fused_forward_kernel(%arg0: i32, %arg1: memref<16x16xf32, #tpu.memory_space<vmem>>, %arg2: memref<16x16xbf16, #tpu.memory_space<vmem>>, %arg3: memref<16x64xbf16, #tpu.memory_space<vmem>>, %arg4: memref<1x64xf32, #tpu.memory_space<vmem>>, %arg5: memref<12x16xbf16, #tpu.memory_space<vmem>>, %arg6: memref<64x128xbf16, #tpu.memory_space<vmem>>, %arg7: memref<1x128xf32, #tpu.memory_space<vmem>>, %arg8: memref<10x12xbf16, #tpu.memory_space<vmem>>, %arg9: memref<128x128xbf16, #tpu.memory_space<vmem>>, %arg10: memref<1x128xf32, #tpu.memory_space<vmem>>, %arg11: memref<8x10xbf16, #tpu.memory_space<vmem>>, %arg12: memref<128x256xbf16, #tpu.memory_space<vmem>>, %arg13: memref<1x256xf32, #tpu.memory_space<vmem>>, %arg14: memref<256x128xbf16, #tpu.memory_space<vmem>>, %arg15: memref<1x128xf32, #tpu.memory_space<vmem>>, %arg16: memref<8x8xbf16, #tpu.memory_space<vmem>>, %arg17: memref<128x128xbf16, #tpu.memory_space<vmem>>, %arg18: memref<8x8xbf16, #tpu.memory_space<vmem>>, %arg19: memref<16x16xbf16, #tpu.memory_space<vmem>>, %arg20: memref<1x16xf32, #tpu.memory_space<vmem>>, %arg21: memref<128x384xbf16, #tpu.memory_space<vmem>>, %arg22: memref<1x384xf32, #tpu.memory_space<vmem>>, %arg23: memref<16x48xbf16, #tpu.memory_space<vmem>>, %arg24: memref<128x128xbf16, #tpu.memory_space<vmem>>, %arg25: memref<1x128xf32, #tpu.memory_space<vmem>>, %arg26: memref<128x128xbf16, #tpu.memory_space<vmem>>, %arg27: memref<1x128xf32, #tpu.memory_space<vmem>>, %arg28: memref<10x8xbf16, #tpu.memory_space<vmem>>, %arg29: memref<128x128xbf16, #tpu.memory_space<vmem>>, %arg30: memref<1x128xf32, #tpu.memory_space<vmem>>, %arg31: memref<12x10xbf16, #tpu.memory_space<vmem>>, %arg32: memref<128x64xbf16, #tpu.memory_space<vmem>>, %arg33: memref<1x64xf32, #tpu.memory_space<vmem>>, %arg34: memref<14x12xbf16, #tpu.memory_space<vmem>>, %arg35: memref<64x64xbf16, #tpu.memory_space<vmem>>, %arg36: memref<1x64xf32, #tpu.memory_space<vmem>>, %arg37: memref<16x14xbf16, #tpu.memory_space<vmem>>, %arg38: memref<64x16xbf16, #tpu.memory_space<vmem>>, %arg39: memref<1x16xf32, #tpu.memory_space<vmem>>, %arg40: memref<16x16xbf16, #tpu.memory_space<vmem>>, %arg41: memref<16x16xbf16, #tpu.memory_space<vmem>>, %arg42: memref<16x128xf32, #tpu.memory_space<vmem>>, %arg43: memref<16x48xf32, #tpu.memory_space<vmem>>) attributes {dimension_semantics = [#tpu.dimension_semantics<arbitrary>], iteration_bounds = array<i64: 1>, scalar_prefetch = 0 : i64, scratch_operands = 0 : i64, tpu.core_type = #tpu.core_type<tc>, window_params = [{pipeline_mode = #tpu.pipeline_mode<synchronous>, transform_indices = @transform_0, window_bounds = array<i64: 16, 16>}, {pipeline_mode = #tpu.pipeline_mode<synchronous>, transform_indices = @transform_1, window_bounds = array<i64: 16, 16>}, {pipeline_mode = #tpu.pipeline_mode<synchronous>, transform_indices = @transform_2, window_bounds = array<i64: 16, 64>}, {pipeline_mode = #tpu.pipeline_mode<synchronous>, transform_indices = @transform_3, window_bounds = array<i64: 1, 64>}, {pipeline_mode = #tpu.pipeline_mode<synchronous>, transform_indices = @transform_4, window_bounds = array<i64: 12, 16>}, {pipeline_mode = #tpu.pipeline_mode<synchronous>, transform_indices = @transform_5, window_bounds = array<i64: 64, 128>}, {pipeline_mode = #tpu.pipeline_mode<synchronous>, transform_indices = @transform_6, window_bounds = array<i64: 1, 128>}, {pipeline_mode = #tpu.pipeline_mode<synchronous>, transform_indices = @transform_7, window_bounds = array<i64: 10, 12>}, {pipeline_mode = #tpu.pipeline_mode<synchronous>, transform_indices = @transform_8, window_bounds = array<i64: 128, 128>}, {pipeline_mode = #tpu.pipeline_mode<synchronous>, transform_indices = @transform_9, window_bounds = array<i64: 1, 128>}, {pipeline_mode = #tpu.pipeline_mode<synchronous>, transform_indices = @transform_10, window_bounds = array<i64: 8, 10>}, {pipeline_mode = #tpu.pipeline_mode<synchronous>, transform_indices = @transform_11, window_bounds = array<i64: 128, 256>}, {pipeline_mode = #tpu.pipeline_mode<synchronous>, transform_indices = @transform_12, window_bounds = array<i64: 1, 256>}, {pipeline_mode = #tpu.pipeline_mode<synchronous>, transform_indices = @transform_13, window_bounds = array<i64: 256, 128>}, {pipeline_mode = #tpu.pipeline_mode<synchronous>, transform_indices = @transform_14, window_bounds = array<i64: 1, 128>}, {pipeline_mode = #tpu.pipeline_mode<synchronous>, transform_indices = @transform_15, window_bounds = array<i64: 8, 8>}, {pipeline_mode = #tpu.pipeline_mode<synchronous>, transform_indices = @transform_16, window_bounds = array<i64: 128, 128>}, {pipeline_mode = #tpu.pipeline_mode<synchronous>, transform_indices = @transform_17, window_bounds = array<i64: 8, 8>}, {pipeline_mode = #tpu.pipeline_mode<synchronous>, transform_indices = @transform_18, window_bounds = array<i64: 16, 16>}, {pipeline_mode = #tpu.pipeline_mode<synchronous>, transform_indices = @transform_19, window_bounds = array<i64: 1, 16>}, {pipeline_mode = #tpu.pipeline_mode<synchronous>, transform_indices = @transform_20, window_bounds = array<i64: 128, 384>}, {pipeline_mode = #tpu.pipeline_mode<synchronous>, transform_indices = @transform_21, window_bounds = array<i64: 1, 384>}, {pipeline_mode = #tpu.pipeline_mode<synchronous>, transform_indices = @transform_22, window_bounds = array<i64: 16, 48>}, {pipeline_mode = #tpu.pipeline_mode<synchronous>, transform_indices = @transform_23, window_bounds = array<i64: 128, 128>}, {pipeline_mode = #tpu.pipeline_mode<synchronous>, transform_indices = @transform_24, window_bounds = array<i64: 1, 128>}, {pipeline_mode = #tpu.pipeline_mode<synchronous>, transform_indices = @transform_25, window_bounds = array<i64: 128, 128>}, {pipeline_mode = #tpu.pipeline_mode<synchronous>, transform_indices = @transform_26, window_bounds = array<i64: 1, 128>}, {pipeline_mode = #tpu.pipeline_mode<synchronous>, transform_indices = @transform_27, window_bounds = array<i64: 10, 8>}, {pipeline_mode = #tpu.pipeline_mode<synchronous>, transform_indices = @transform_28, window_bounds = array<i64: 128, 128>}, {pipeline_mode = #tpu.pipeline_mode<synchronous>, transform_indices = @transform_29, window_bounds = array<i64: 1, 128>}, {pipeline_mode = #tpu.pipeline_mode<synchronous>, transform_indices = @transform_30, window_bounds = array<i64: 12, 10>}, {pipeline_mode = #tpu.pipeline_mode<synchronous>, transform_indices = @transform_31, window_bounds = array<i64: 128, 64>}, {pipeline_mode = #tpu.pipeline_mode<synchronous>, transform_indices = @transform_32, window_bounds = array<i64: 1, 64>}, {pipeline_mode = #tpu.pipeline_mode<synchronous>, transform_indices = @transform_33, window_bounds = array<i64: 14, 12>}, {pipeline_mode = #tpu.pipeline_mode<synchronous>, transform_indices = @transform_34, window_bounds = array<i64: 64, 64>}, {pipeline_mode = #tpu.pipeline_mode<synchronous>, transform_indices = @transform_35, window_bounds = array<i64: 1, 64>}, {pipeline_mode = #tpu.pipeline_mode<synchronous>, transform_indices = @transform_36, window_bounds = array<i64: 16, 14>}, {pipeline_mode = #tpu.pipeline_mode<synchronous>, transform_indices = @transform_37, window_bounds = array<i64: 64, 16>}, {pipeline_mode = #tpu.pipeline_mode<synchronous>, transform_indices = @transform_38, window_bounds = array<i64: 1, 16>}, {pipeline_mode = #tpu.pipeline_mode<synchronous>, transform_indices = @transform_39, window_bounds = array<i64: 16, 16>}, {pipeline_mode = #tpu.pipeline_mode<synchronous>, transform_indices = @transform_40, window_bounds = array<i64: 16, 16>}, {pipeline_mode = #tpu.pipeline_mode<synchronous>, transform_indices = @transform_41, window_bounds = array<i64: 16, 128>}, {pipeline_mode = #tpu.pipeline_mode<synchronous>, transform_indices = @transform_42, window_bounds = array<i64: 16, 48>}]} {
    %c0 = arith.constant 0 : index
    %c0_0 = arith.constant 0 : index
    %0 = vector.load %arg1[%c0, %c0_0] : memref<16x16xf32, #tpu.memory_space<vmem>>, vector<16x16xf32>
    %c0_1 = arith.constant 0 : index
    %c0_2 = arith.constant 0 : index
    %1 = vector.load %arg2[%c0_1, %c0_2] : memref<16x16xbf16, #tpu.memory_space<vmem>>, vector<16x16xbf16>
    %c0_3 = arith.constant 0 : index
    %c0_4 = arith.constant 0 : index
    %2 = vector.load %arg3[%c0_3, %c0_4] : memref<16x64xbf16, #tpu.memory_space<vmem>>, vector<16x64xbf16>
    %c0_5 = arith.constant 0 : index
    %c0_6 = arith.constant 0 : index
    %3 = vector.load %arg4[%c0_5, %c0_6] : memref<1x64xf32, #tpu.memory_space<vmem>>, vector<1x64xf32>
    %4 = arith.truncf %0 : vector<16x16xf32> to vector<16x16xbf16>
    %cst = arith.constant dense<0.000000e+00> : vector<16x16xf32>
    %5 = tpu.matmul %1, %4, %cst {dimension_numbers = #tpu.dot_dimension_numbers<[1], [0], [0], [1], [0, 0, 1, 1], [], []>} : vector<16x16xbf16>, vector<16x16xbf16>, vector<16x16xf32> -> vector<16x16xf32>
    %6 = arith.truncf %5 : vector<16x16xf32> to vector<16x16xbf16>
    %cst_7 = arith.constant dense<0.000000e+00> : vector<16x64xf32>
    %7 = tpu.matmul %6, %2, %cst_7 {dimension_numbers = #tpu.dot_dimension_numbers<[1], [0], [0], [1], [0, 0, 1, 1], [], []>} : vector<16x16xbf16>, vector<16x64xbf16>, vector<16x64xf32> -> vector<16x64xf32>
    %8 = vector.broadcast %3 : vector<1x64xf32> to vector<16x64xf32>
    %9 = arith.addf %7, %8 : vector<16x64xf32>
    %cst_8 = arith.constant 0.000000e+00 : f32
    %10 = vector.broadcast %cst_8 : f32 to vector<16x64xf32>
    %11 = arith.cmpf ogt, %9, %10 : vector<16x64xf32>
    %cst_9 = arith.constant 0.000000e+00 : f32
    %12 = vector.broadcast %cst_9 : f32 to vector<16x64xf32>
    %13 = arith.minimumf %9, %12 : vector<16x64xf32>
    %14 = math.exp %13 : vector<16x64xf32>
    %cst_10 = arith.constant 1.000000e+00 : f32
    %15 = vector.broadcast %cst_10 : f32 to vector<16x64xf32>
    %16 = arith.subf %14, %15 : vector<16x64xf32>
    %17 = arith.select %11, %9, %16 : vector<16x64xi1>, vector<16x64xf32>
    %c0_11 = arith.constant 0 : index
    %c0_12 = arith.constant 0 : index
    %18 = vector.load %arg5[%c0_11, %c0_12] : memref<12x16xbf16, #tpu.memory_space<vmem>>, vector<12x16xbf16>
    %c0_13 = arith.constant 0 : index
    %c0_14 = arith.constant 0 : index
    %19 = vector.load %arg6[%c0_13, %c0_14] : memref<64x128xbf16, #tpu.memory_space<vmem>>, vector<64x128xbf16>
    %c0_15 = arith.constant 0 : index
    %c0_16 = arith.constant 0 : index
    %20 = vector.load %arg7[%c0_15, %c0_16] : memref<1x128xf32, #tpu.memory_space<vmem>>, vector<1x128xf32>
    %21 = arith.truncf %17 : vector<16x64xf32> to vector<16x64xbf16>
    %cst_17 = arith.constant dense<0.000000e+00> : vector<12x64xf32>
    %22 = tpu.matmul %18, %21, %cst_17 {dimension_numbers = #tpu.dot_dimension_numbers<[1], [0], [0], [1], [0, 0, 1, 1], [], []>} : vector<12x16xbf16>, vector<16x64xbf16>, vector<12x64xf32> -> vector<12x64xf32>
    %23 = arith.truncf %22 : vector<12x64xf32> to vector<12x64xbf16>
    %cst_18 = arith.constant dense<0.000000e+00> : vector<12x128xf32>
    %24 = tpu.matmul %23, %19, %cst_18 {dimension_numbers = #tpu.dot_dimension_numbers<[1], [0], [0], [1], [0, 0, 1, 1], [], []>} : vector<12x64xbf16>, vector<64x128xbf16>, vector<12x128xf32> -> vector<12x128xf32>
    %25 = vector.broadcast %20 : vector<1x128xf32> to vector<12x128xf32>
    %26 = arith.addf %24, %25 : vector<12x128xf32>
    %cst_19 = arith.constant 0.000000e+00 : f32
    %27 = vector.broadcast %cst_19 : f32 to vector<12x128xf32>
    %28 = arith.cmpf ogt, %26, %27 : vector<12x128xf32>
    %cst_20 = arith.constant 0.000000e+00 : f32
    %29 = vector.broadcast %cst_20 : f32 to vector<12x128xf32>
    %30 = arith.minimumf %26, %29 : vector<12x128xf32>
    %31 = math.exp %30 : vector<12x128xf32>
    %cst_21 = arith.constant 1.000000e+00 : f32
    %32 = vector.broadcast %cst_21 : f32 to vector<12x128xf32>
    %33 = arith.subf %31, %32 : vector<12x128xf32>
    %34 = arith.select %28, %26, %33 : vector<12x128xi1>, vector<12x128xf32>
    %c0_22 = arith.constant 0 : index
    %c0_23 = arith.constant 0 : index
    %35 = vector.load %arg8[%c0_22, %c0_23] : memref<10x12xbf16, #tpu.memory_space<vmem>>, vector<10x12xbf16>
    %c0_24 = arith.constant 0 : index
    %c0_25 = arith.constant 0 : index
    %36 = vector.load %arg9[%c0_24, %c0_25] : memref<128x128xbf16, #tpu.memory_space<vmem>>, vector<128x128xbf16>
    %c0_26 = arith.constant 0 : index
    %c0_27 = arith.constant 0 : index
    %37 = vector.load %arg10[%c0_26, %c0_27] : memref<1x128xf32, #tpu.memory_space<vmem>>, vector<1x128xf32>
    %38 = arith.truncf %34 : vector<12x128xf32> to vector<12x128xbf16>
    %cst_28 = arith.constant dense<0.000000e+00> : vector<10x128xf32>
    %39 = tpu.matmul %35, %38, %cst_28 {dimension_numbers = #tpu.dot_dimension_numbers<[1], [0], [0], [1], [0, 0, 1, 1], [], []>} : vector<10x12xbf16>, vector<12x128xbf16>, vector<10x128xf32> -> vector<10x128xf32>
    %40 = arith.truncf %39 : vector<10x128xf32> to vector<10x128xbf16>
    %cst_29 = arith.constant dense<0.000000e+00> : vector<10x128xf32>
    %41 = tpu.matmul %40, %36, %cst_29 {dimension_numbers = #tpu.dot_dimension_numbers<[1], [0], [0], [1], [0, 0, 1, 1], [], []>} : vector<10x128xbf16>, vector<128x128xbf16>, vector<10x128xf32> -> vector<10x128xf32>
    %42 = vector.broadcast %37 : vector<1x128xf32> to vector<10x128xf32>
    %43 = arith.addf %41, %42 : vector<10x128xf32>
    %cst_30 = arith.constant 0.000000e+00 : f32
    %44 = vector.broadcast %cst_30 : f32 to vector<10x128xf32>
    %45 = arith.cmpf ogt, %43, %44 : vector<10x128xf32>
    %cst_31 = arith.constant 0.000000e+00 : f32
    %46 = vector.broadcast %cst_31 : f32 to vector<10x128xf32>
    %47 = arith.minimumf %43, %46 : vector<10x128xf32>
    %48 = math.exp %47 : vector<10x128xf32>
    %cst_32 = arith.constant 1.000000e+00 : f32
    %49 = vector.broadcast %cst_32 : f32 to vector<10x128xf32>
    %50 = arith.subf %48, %49 : vector<10x128xf32>
    %51 = arith.select %45, %43, %50 : vector<10x128xi1>, vector<10x128xf32>
    %c0_33 = arith.constant 0 : index
    %c0_34 = arith.constant 0 : index
    %52 = vector.load %arg11[%c0_33, %c0_34] : memref<8x10xbf16, #tpu.memory_space<vmem>>, vector<8x10xbf16>
    %53 = arith.truncf %51 : vector<10x128xf32> to vector<10x128xbf16>
    %cst_35 = arith.constant dense<0.000000e+00> : vector<8x128xf32>
    %54 = tpu.matmul %52, %53, %cst_35 {dimension_numbers = #tpu.dot_dimension_numbers<[1], [0], [0], [1], [0, 0, 1, 1], [], []>} : vector<8x10xbf16>, vector<10x128xbf16>, vector<8x128xf32> -> vector<8x128xf32>
    %c0_36 = arith.constant 0 : index
    %c0_37 = arith.constant 0 : index
    %55 = vector.load %arg12[%c0_36, %c0_37] : memref<128x256xbf16, #tpu.memory_space<vmem>>, vector<128x256xbf16>
    %56 = arith.truncf %54 : vector<8x128xf32> to vector<8x128xbf16>
    %cst_38 = arith.constant dense<0.000000e+00> : vector<8x256xf32>
    %57 = tpu.matmul %56, %55, %cst_38 {dimension_numbers = #tpu.dot_dimension_numbers<[1], [0], [0], [1], [0, 0, 1, 1], [], []>} : vector<8x128xbf16>, vector<128x256xbf16>, vector<8x256xf32> -> vector<8x256xf32>
    %c0_39 = arith.constant 0 : index
    %c0_40 = arith.constant 0 : index
    %58 = vector.load %arg13[%c0_39, %c0_40] : memref<1x256xf32, #tpu.memory_space<vmem>>, vector<1x256xf32>
    %59 = vector.broadcast %58 : vector<1x256xf32> to vector<8x256xf32>
    %60 = arith.addf %57, %59 : vector<8x256xf32>
    %cst_41 = arith.constant 0.000000e+00 : f32
    %61 = vector.broadcast %cst_41 : f32 to vector<8x256xf32>
    %62 = arith.cmpf ogt, %60, %61 : vector<8x256xf32>
    %cst_42 = arith.constant 0.000000e+00 : f32
    %63 = vector.broadcast %cst_42 : f32 to vector<8x256xf32>
    %64 = arith.minimumf %60, %63 : vector<8x256xf32>
    %65 = math.exp %64 : vector<8x256xf32>
    %cst_43 = arith.constant 1.000000e+00 : f32
    %66 = vector.broadcast %cst_43 : f32 to vector<8x256xf32>
    %67 = arith.subf %65, %66 : vector<8x256xf32>
    %68 = arith.select %62, %60, %67 : vector<8x256xi1>, vector<8x256xf32>
    %c0_44 = arith.constant 0 : index
    %c0_45 = arith.constant 0 : index
    %69 = vector.load %arg14[%c0_44, %c0_45] : memref<256x128xbf16, #tpu.memory_space<vmem>>, vector<256x128xbf16>
    %70 = arith.truncf %68 : vector<8x256xf32> to vector<8x256xbf16>
    %cst_46 = arith.constant dense<0.000000e+00> : vector<8x128xf32>
    %71 = tpu.matmul %70, %69, %cst_46 {dimension_numbers = #tpu.dot_dimension_numbers<[1], [0], [0], [1], [0, 0, 1, 1], [], []>} : vector<8x256xbf16>, vector<256x128xbf16>, vector<8x128xf32> -> vector<8x128xf32>
    %c0_47 = arith.constant 0 : index
    %c0_48 = arith.constant 0 : index
    %72 = vector.load %arg15[%c0_47, %c0_48] : memref<1x128xf32, #tpu.memory_space<vmem>>, vector<1x128xf32>
    %73 = vector.broadcast %72 : vector<1x128xf32> to vector<8x128xf32>
    %74 = arith.addf %71, %73 : vector<8x128xf32>
    %75 = math.tanh %74 : vector<8x128xf32>
    %c0_49 = arith.constant 0 : index
    %c0_50 = arith.constant 0 : index
    %76 = vector.load %arg16[%c0_49, %c0_50] : memref<8x8xbf16, #tpu.memory_space<vmem>>, vector<8x8xbf16>
    %77 = arith.truncf %75 : vector<8x128xf32> to vector<8x128xbf16>
    %cst_51 = arith.constant dense<0.000000e+00> : vector<8x128xf32>
    %78 = tpu.matmul %76, %77, %cst_51 {dimension_numbers = #tpu.dot_dimension_numbers<[1], [0], [0], [1], [0, 0, 1, 1], [], []>} : vector<8x8xbf16>, vector<8x128xbf16>, vector<8x128xf32> -> vector<8x128xf32>
    %c0_52 = arith.constant 0 : index
    %c0_53 = arith.constant 0 : index
    %79 = vector.load %arg17[%c0_52, %c0_53] : memref<128x128xbf16, #tpu.memory_space<vmem>>, vector<128x128xbf16>
    %80 = arith.truncf %78 : vector<8x128xf32> to vector<8x128xbf16>
    %cst_54 = arith.constant dense<0.000000e+00> : vector<8x128xf32>
    %81 = tpu.matmul %80, %79, %cst_54 {dimension_numbers = #tpu.dot_dimension_numbers<[1], [0], [0], [1], [0, 0, 1, 1], [], []>} : vector<8x128xbf16>, vector<128x128xbf16>, vector<8x128xf32> -> vector<8x128xf32>
    %c0_55 = arith.constant 0 : index
    %c0_56 = arith.constant 0 : index
    %82 = vector.load %arg18[%c0_55, %c0_56] : memref<8x8xbf16, #tpu.memory_space<vmem>>, vector<8x8xbf16>
    %c0_57 = arith.constant 0 : index
    %c0_58 = arith.constant 0 : index
    %83 = vector.load %arg19[%c0_57, %c0_58] : memref<16x16xbf16, #tpu.memory_space<vmem>>, vector<16x16xbf16>
    %c0_59 = arith.constant 0 : index
    %c0_60 = arith.constant 0 : index
    %84 = vector.load %arg20[%c0_59, %c0_60] : memref<1x16xf32, #tpu.memory_space<vmem>>, vector<1x16xf32>
    %c0_61 = arith.constant 0 : index
    %c0_62 = arith.constant 0 : index
    %85 = vector.load %arg23[%c0_61, %c0_62] : memref<16x48xbf16, #tpu.memory_space<vmem>>, vector<16x48xbf16>
    %c0_63 = arith.constant 0 : index
    %c0_64 = arith.constant 0 : index
    %86 = vector.load %arg21[%c0_63, %c0_64] : memref<128x384xbf16, #tpu.memory_space<vmem>>, vector<128x384xbf16>
    %87 = arith.truncf %81 : vector<8x128xf32> to vector<8x128xbf16>
    %cst_65 = arith.constant dense<0.000000e+00> : vector<8x384xf32>
    %88 = tpu.matmul %87, %86, %cst_65 {dimension_numbers = #tpu.dot_dimension_numbers<[1], [0], [0], [1], [0, 0, 1, 1], [], []>} : vector<8x128xbf16>, vector<128x384xbf16>, vector<8x384xf32> -> vector<8x384xf32>
    %c0_66 = arith.constant 0 : index
    %c0_67 = arith.constant 0 : index
    %89 = vector.load %arg22[%c0_66, %c0_67] : memref<1x384xf32, #tpu.memory_space<vmem>>, vector<1x384xf32>
    %90 = vector.broadcast %89 : vector<1x384xf32> to vector<8x384xf32>
    %91 = arith.addf %88, %90 : vector<8x384xf32>
    %cst_68 = arith.constant 0.000000e+00 : f32
    %92 = vector.broadcast %cst_68 : f32 to vector<8x16xf32>
    %93 = arith.truncf %92 : vector<8x16xf32> to vector<8x16xbf16>
    %cst_69 = arith.constant dense<0.000000e+00> : vector<8x16xf32>
    %94 = tpu.matmul %93, %83, %cst_69 {dimension_numbers = #tpu.dot_dimension_numbers<[1], [0], [0], [1], [0, 0, 1, 1], [], []>} : vector<8x16xbf16>, vector<16x16xbf16>, vector<8x16xf32> -> vector<8x16xf32>
    %95 = arith.truncf %94 : vector<8x16xf32> to vector<8x16xbf16>
    %cst_70 = arith.constant dense<0.000000e+00> : vector<8x16xf32>
    %96 = tpu.matmul %82, %95, %cst_70 {dimension_numbers = #tpu.dot_dimension_numbers<[1], [0], [0], [1], [0, 0, 1, 1], [], []>} : vector<8x8xbf16>, vector<8x16xbf16>, vector<8x16xf32> -> vector<8x16xf32>
    %97 = vector.broadcast %84 : vector<1x16xf32> to vector<8x16xf32>
    %98 = arith.addf %96, %97 : vector<8x16xf32>
    %99 = math.tanh %98 : vector<8x16xf32>
    %100 = arith.addf %92, %99 : vector<8x16xf32>
    %101 = vector.extract_strided_slice %91 {offsets = [0, 0], sizes = [8, 48], strides = [1, 1]} : vector<8x384xf32> to vector<8x48xf32>
    %102 = arith.truncf %100 : vector<8x16xf32> to vector<8x16xbf16>
    %cst_71 = arith.constant dense<0.000000e+00> : vector<8x48xf32>
    %103 = tpu.matmul %102, %85, %cst_71 {dimension_numbers = #tpu.dot_dimension_numbers<[1], [0], [0], [1], [0, 0, 1, 1], [], []>} : vector<8x16xbf16>, vector<16x48xbf16>, vector<8x48xf32> -> vector<8x48xf32>
    %104 = vector.extract_strided_slice %101 {offsets = [0, 0], sizes = [8, 16], strides = [1, 1]} : vector<8x48xf32> to vector<8x16xf32>
    %105 = vector.extract_strided_slice %103 {offsets = [0, 0], sizes = [8, 16], strides = [1, 1]} : vector<8x48xf32> to vector<8x16xf32>
    %106 = arith.addf %104, %105 : vector<8x16xf32>
    %cst_72 = arith.constant 5.000000e-01 : f32
    %107 = vector.broadcast %cst_72 : f32 to vector<8x16xf32>
    %108 = arith.mulf %107, %106 : vector<8x16xf32>
    %109 = math.tanh %108 : vector<8x16xf32>
    %cst_73 = arith.constant 1.000000e+00 : f32
    %110 = vector.broadcast %cst_73 : f32 to vector<8x16xf32>
    %111 = arith.addf %109, %110 : vector<8x16xf32>
    %cst_74 = arith.constant 5.000000e-01 : f32
    %112 = vector.broadcast %cst_74 : f32 to vector<8x16xf32>
    %113 = arith.mulf %112, %111 : vector<8x16xf32>
    %114 = vector.extract_strided_slice %101 {offsets = [0, 16], sizes = [8, 16], strides = [1, 1]} : vector<8x48xf32> to vector<8x16xf32>
    %115 = vector.extract_strided_slice %103 {offsets = [0, 16], sizes = [8, 16], strides = [1, 1]} : vector<8x48xf32> to vector<8x16xf32>
    %116 = arith.addf %114, %115 : vector<8x16xf32>
    %cst_75 = arith.constant 5.000000e-01 : f32
    %117 = vector.broadcast %cst_75 : f32 to vector<8x16xf32>
    %118 = arith.mulf %117, %116 : vector<8x16xf32>
    %119 = math.tanh %118 : vector<8x16xf32>
    %cst_76 = arith.constant 1.000000e+00 : f32
    %120 = vector.broadcast %cst_76 : f32 to vector<8x16xf32>
    %121 = arith.addf %119, %120 : vector<8x16xf32>
    %cst_77 = arith.constant 5.000000e-01 : f32
    %122 = vector.broadcast %cst_77 : f32 to vector<8x16xf32>
    %123 = arith.mulf %122, %121 : vector<8x16xf32>
    %124 = vector.extract_strided_slice %101 {offsets = [0, 32], sizes = [8, 16], strides = [1, 1]} : vector<8x48xf32> to vector<8x16xf32>
    %125 = vector.extract_strided_slice %103 {offsets = [0, 32], sizes = [8, 16], strides = [1, 1]} : vector<8x48xf32> to vector<8x16xf32>
    %126 = arith.mulf %113, %125 : vector<8x16xf32>
    %127 = arith.addf %124, %126 : vector<8x16xf32>
    %128 = math.tanh %127 : vector<8x16xf32>
    %cst_78 = arith.constant 1.000000e+00 : f32
    %129 = vector.broadcast %cst_78 : f32 to vector<8x16xf32>
    %130 = arith.subf %129, %123 : vector<8x16xf32>
    %131 = arith.mulf %130, %100 : vector<8x16xf32>
    %132 = arith.mulf %123, %128 : vector<8x16xf32>
    %133 = arith.addf %131, %132 : vector<8x16xf32>
    %134 = arith.truncf %133 : vector<8x16xf32> to vector<8x16xbf16>
    %cst_79 = arith.constant dense<0.000000e+00> : vector<8x16xf32>
    %135 = tpu.matmul %134, %83, %cst_79 {dimension_numbers = #tpu.dot_dimension_numbers<[1], [0], [0], [1], [0, 0, 1, 1], [], []>} : vector<8x16xbf16>, vector<16x16xbf16>, vector<8x16xf32> -> vector<8x16xf32>
    %136 = arith.truncf %135 : vector<8x16xf32> to vector<8x16xbf16>
    %cst_80 = arith.constant dense<0.000000e+00> : vector<8x16xf32>
    %137 = tpu.matmul %82, %136, %cst_80 {dimension_numbers = #tpu.dot_dimension_numbers<[1], [0], [0], [1], [0, 0, 1, 1], [], []>} : vector<8x8xbf16>, vector<8x16xbf16>, vector<8x16xf32> -> vector<8x16xf32>
    %138 = vector.broadcast %84 : vector<1x16xf32> to vector<8x16xf32>
    %139 = arith.addf %137, %138 : vector<8x16xf32>
    %140 = math.tanh %139 : vector<8x16xf32>
    %141 = arith.addf %133, %140 : vector<8x16xf32>
    %142 = vector.extract_strided_slice %91 {offsets = [0, 48], sizes = [8, 48], strides = [1, 1]} : vector<8x384xf32> to vector<8x48xf32>
    %143 = arith.truncf %141 : vector<8x16xf32> to vector<8x16xbf16>
    %cst_81 = arith.constant dense<0.000000e+00> : vector<8x48xf32>
    %144 = tpu.matmul %143, %85, %cst_81 {dimension_numbers = #tpu.dot_dimension_numbers<[1], [0], [0], [1], [0, 0, 1, 1], [], []>} : vector<8x16xbf16>, vector<16x48xbf16>, vector<8x48xf32> -> vector<8x48xf32>
    %145 = vector.extract_strided_slice %142 {offsets = [0, 0], sizes = [8, 16], strides = [1, 1]} : vector<8x48xf32> to vector<8x16xf32>
    %146 = vector.extract_strided_slice %144 {offsets = [0, 0], sizes = [8, 16], strides = [1, 1]} : vector<8x48xf32> to vector<8x16xf32>
    %147 = arith.addf %145, %146 : vector<8x16xf32>
    %cst_82 = arith.constant 5.000000e-01 : f32
    %148 = vector.broadcast %cst_82 : f32 to vector<8x16xf32>
    %149 = arith.mulf %148, %147 : vector<8x16xf32>
    %150 = math.tanh %149 : vector<8x16xf32>
    %cst_83 = arith.constant 1.000000e+00 : f32
    %151 = vector.broadcast %cst_83 : f32 to vector<8x16xf32>
    %152 = arith.addf %150, %151 : vector<8x16xf32>
    %cst_84 = arith.constant 5.000000e-01 : f32
    %153 = vector.broadcast %cst_84 : f32 to vector<8x16xf32>
    %154 = arith.mulf %153, %152 : vector<8x16xf32>
    %155 = vector.extract_strided_slice %142 {offsets = [0, 16], sizes = [8, 16], strides = [1, 1]} : vector<8x48xf32> to vector<8x16xf32>
    %156 = vector.extract_strided_slice %144 {offsets = [0, 16], sizes = [8, 16], strides = [1, 1]} : vector<8x48xf32> to vector<8x16xf32>
    %157 = arith.addf %155, %156 : vector<8x16xf32>
    %cst_85 = arith.constant 5.000000e-01 : f32
    %158 = vector.broadcast %cst_85 : f32 to vector<8x16xf32>
    %159 = arith.mulf %158, %157 : vector<8x16xf32>
    %160 = math.tanh %159 : vector<8x16xf32>
    %cst_86 = arith.constant 1.000000e+00 : f32
    %161 = vector.broadcast %cst_86 : f32 to vector<8x16xf32>
    %162 = arith.addf %160, %161 : vector<8x16xf32>
    %cst_87 = arith.constant 5.000000e-01 : f32
    %163 = vector.broadcast %cst_87 : f32 to vector<8x16xf32>
    %164 = arith.mulf %163, %162 : vector<8x16xf32>
    %165 = vector.extract_strided_slice %142 {offsets = [0, 32], sizes = [8, 16], strides = [1, 1]} : vector<8x48xf32> to vector<8x16xf32>
    %166 = vector.extract_strided_slice %144 {offsets = [0, 32], sizes = [8, 16], strides = [1, 1]} : vector<8x48xf32> to vector<8x16xf32>
    %167 = arith.mulf %154, %166 : vector<8x16xf32>
    %168 = arith.addf %165, %167 : vector<8x16xf32>
    %169 = math.tanh %168 : vector<8x16xf32>
    %cst_88 = arith.constant 1.000000e+00 : f32
    %170 = vector.broadcast %cst_88 : f32 to vector<8x16xf32>
    %171 = arith.subf %170, %164 : vector<8x16xf32>
    %172 = arith.mulf %171, %141 : vector<8x16xf32>
    %173 = arith.mulf %164, %169 : vector<8x16xf32>
    %174 = arith.addf %172, %173 : vector<8x16xf32>
    %175 = arith.truncf %174 : vector<8x16xf32> to vector<8x16xbf16>
    %cst_89 = arith.constant dense<0.000000e+00> : vector<8x16xf32>
    %176 = tpu.matmul %175, %83, %cst_89 {dimension_numbers = #tpu.dot_dimension_numbers<[1], [0], [0], [1], [0, 0, 1, 1], [], []>} : vector<8x16xbf16>, vector<16x16xbf16>, vector<8x16xf32> -> vector<8x16xf32>
    %177 = arith.truncf %176 : vector<8x16xf32> to vector<8x16xbf16>
    %cst_90 = arith.constant dense<0.000000e+00> : vector<8x16xf32>
    %178 = tpu.matmul %82, %177, %cst_90 {dimension_numbers = #tpu.dot_dimension_numbers<[1], [0], [0], [1], [0, 0, 1, 1], [], []>} : vector<8x8xbf16>, vector<8x16xbf16>, vector<8x16xf32> -> vector<8x16xf32>
    %179 = vector.broadcast %84 : vector<1x16xf32> to vector<8x16xf32>
    %180 = arith.addf %178, %179 : vector<8x16xf32>
    %181 = math.tanh %180 : vector<8x16xf32>
    %182 = arith.addf %174, %181 : vector<8x16xf32>
    %183 = vector.extract_strided_slice %91 {offsets = [0, 96], sizes = [8, 48], strides = [1, 1]} : vector<8x384xf32> to vector<8x48xf32>
    %184 = arith.truncf %182 : vector<8x16xf32> to vector<8x16xbf16>
    %cst_91 = arith.constant dense<0.000000e+00> : vector<8x48xf32>
    %185 = tpu.matmul %184, %85, %cst_91 {dimension_numbers = #tpu.dot_dimension_numbers<[1], [0], [0], [1], [0, 0, 1, 1], [], []>} : vector<8x16xbf16>, vector<16x48xbf16>, vector<8x48xf32> -> vector<8x48xf32>
    %186 = vector.extract_strided_slice %183 {offsets = [0, 0], sizes = [8, 16], strides = [1, 1]} : vector<8x48xf32> to vector<8x16xf32>
    %187 = vector.extract_strided_slice %185 {offsets = [0, 0], sizes = [8, 16], strides = [1, 1]} : vector<8x48xf32> to vector<8x16xf32>
    %188 = arith.addf %186, %187 : vector<8x16xf32>
    %cst_92 = arith.constant 5.000000e-01 : f32
    %189 = vector.broadcast %cst_92 : f32 to vector<8x16xf32>
    %190 = arith.mulf %189, %188 : vector<8x16xf32>
    %191 = math.tanh %190 : vector<8x16xf32>
    %cst_93 = arith.constant 1.000000e+00 : f32
    %192 = vector.broadcast %cst_93 : f32 to vector<8x16xf32>
    %193 = arith.addf %191, %192 : vector<8x16xf32>
    %cst_94 = arith.constant 5.000000e-01 : f32
    %194 = vector.broadcast %cst_94 : f32 to vector<8x16xf32>
    %195 = arith.mulf %194, %193 : vector<8x16xf32>
    %196 = vector.extract_strided_slice %183 {offsets = [0, 16], sizes = [8, 16], strides = [1, 1]} : vector<8x48xf32> to vector<8x16xf32>
    %197 = vector.extract_strided_slice %185 {offsets = [0, 16], sizes = [8, 16], strides = [1, 1]} : vector<8x48xf32> to vector<8x16xf32>
    %198 = arith.addf %196, %197 : vector<8x16xf32>
    %cst_95 = arith.constant 5.000000e-01 : f32
    %199 = vector.broadcast %cst_95 : f32 to vector<8x16xf32>
    %200 = arith.mulf %199, %198 : vector<8x16xf32>
    %201 = math.tanh %200 : vector<8x16xf32>
    %cst_96 = arith.constant 1.000000e+00 : f32
    %202 = vector.broadcast %cst_96 : f32 to vector<8x16xf32>
    %203 = arith.addf %201, %202 : vector<8x16xf32>
    %cst_97 = arith.constant 5.000000e-01 : f32
    %204 = vector.broadcast %cst_97 : f32 to vector<8x16xf32>
    %205 = arith.mulf %204, %203 : vector<8x16xf32>
    %206 = vector.extract_strided_slice %183 {offsets = [0, 32], sizes = [8, 16], strides = [1, 1]} : vector<8x48xf32> to vector<8x16xf32>
    %207 = vector.extract_strided_slice %185 {offsets = [0, 32], sizes = [8, 16], strides = [1, 1]} : vector<8x48xf32> to vector<8x16xf32>
    %208 = arith.mulf %195, %207 : vector<8x16xf32>
    %209 = arith.addf %206, %208 : vector<8x16xf32>
    %210 = math.tanh %209 : vector<8x16xf32>
    %cst_98 = arith.constant 1.000000e+00 : f32
    %211 = vector.broadcast %cst_98 : f32 to vector<8x16xf32>
    %212 = arith.subf %211, %205 : vector<8x16xf32>
    %213 = arith.mulf %212, %182 : vector<8x16xf32>
    %214 = arith.mulf %205, %210 : vector<8x16xf32>
    %215 = arith.addf %213, %214 : vector<8x16xf32>
    %216 = arith.truncf %215 : vector<8x16xf32> to vector<8x16xbf16>
    %cst_99 = arith.constant dense<0.000000e+00> : vector<8x16xf32>
    %217 = tpu.matmul %216, %83, %cst_99 {dimension_numbers = #tpu.dot_dimension_numbers<[1], [0], [0], [1], [0, 0, 1, 1], [], []>} : vector<8x16xbf16>, vector<16x16xbf16>, vector<8x16xf32> -> vector<8x16xf32>
    %218 = arith.truncf %217 : vector<8x16xf32> to vector<8x16xbf16>
    %cst_100 = arith.constant dense<0.000000e+00> : vector<8x16xf32>
    %219 = tpu.matmul %82, %218, %cst_100 {dimension_numbers = #tpu.dot_dimension_numbers<[1], [0], [0], [1], [0, 0, 1, 1], [], []>} : vector<8x8xbf16>, vector<8x16xbf16>, vector<8x16xf32> -> vector<8x16xf32>
    %220 = vector.broadcast %84 : vector<1x16xf32> to vector<8x16xf32>
    %221 = arith.addf %219, %220 : vector<8x16xf32>
    %222 = math.tanh %221 : vector<8x16xf32>
    %223 = arith.addf %215, %222 : vector<8x16xf32>
    %224 = vector.extract_strided_slice %91 {offsets = [0, 144], sizes = [8, 48], strides = [1, 1]} : vector<8x384xf32> to vector<8x48xf32>
    %225 = arith.truncf %223 : vector<8x16xf32> to vector<8x16xbf16>
    %cst_101 = arith.constant dense<0.000000e+00> : vector<8x48xf32>
    %226 = tpu.matmul %225, %85, %cst_101 {dimension_numbers = #tpu.dot_dimension_numbers<[1], [0], [0], [1], [0, 0, 1, 1], [], []>} : vector<8x16xbf16>, vector<16x48xbf16>, vector<8x48xf32> -> vector<8x48xf32>
    %227 = vector.extract_strided_slice %224 {offsets = [0, 0], sizes = [8, 16], strides = [1, 1]} : vector<8x48xf32> to vector<8x16xf32>
    %228 = vector.extract_strided_slice %226 {offsets = [0, 0], sizes = [8, 16], strides = [1, 1]} : vector<8x48xf32> to vector<8x16xf32>
    %229 = arith.addf %227, %228 : vector<8x16xf32>
    %cst_102 = arith.constant 5.000000e-01 : f32
    %230 = vector.broadcast %cst_102 : f32 to vector<8x16xf32>
    %231 = arith.mulf %230, %229 : vector<8x16xf32>
    %232 = math.tanh %231 : vector<8x16xf32>
    %cst_103 = arith.constant 1.000000e+00 : f32
    %233 = vector.broadcast %cst_103 : f32 to vector<8x16xf32>
    %234 = arith.addf %232, %233 : vector<8x16xf32>
    %cst_104 = arith.constant 5.000000e-01 : f32
    %235 = vector.broadcast %cst_104 : f32 to vector<8x16xf32>
    %236 = arith.mulf %235, %234 : vector<8x16xf32>
    %237 = vector.extract_strided_slice %224 {offsets = [0, 16], sizes = [8, 16], strides = [1, 1]} : vector<8x48xf32> to vector<8x16xf32>
    %238 = vector.extract_strided_slice %226 {offsets = [0, 16], sizes = [8, 16], strides = [1, 1]} : vector<8x48xf32> to vector<8x16xf32>
    %239 = arith.addf %237, %238 : vector<8x16xf32>
    %cst_105 = arith.constant 5.000000e-01 : f32
    %240 = vector.broadcast %cst_105 : f32 to vector<8x16xf32>
    %241 = arith.mulf %240, %239 : vector<8x16xf32>
    %242 = math.tanh %241 : vector<8x16xf32>
    %cst_106 = arith.constant 1.000000e+00 : f32
    %243 = vector.broadcast %cst_106 : f32 to vector<8x16xf32>
    %244 = arith.addf %242, %243 : vector<8x16xf32>
    %cst_107 = arith.constant 5.000000e-01 : f32
    %245 = vector.broadcast %cst_107 : f32 to vector<8x16xf32>
    %246 = arith.mulf %245, %244 : vector<8x16xf32>
    %247 = vector.extract_strided_slice %224 {offsets = [0, 32], sizes = [8, 16], strides = [1, 1]} : vector<8x48xf32> to vector<8x16xf32>
    %248 = vector.extract_strided_slice %226 {offsets = [0, 32], sizes = [8, 16], strides = [1, 1]} : vector<8x48xf32> to vector<8x16xf32>
    %249 = arith.mulf %236, %248 : vector<8x16xf32>
    %250 = arith.addf %247, %249 : vector<8x16xf32>
    %251 = math.tanh %250 : vector<8x16xf32>
    %cst_108 = arith.constant 1.000000e+00 : f32
    %252 = vector.broadcast %cst_108 : f32 to vector<8x16xf32>
    %253 = arith.subf %252, %246 : vector<8x16xf32>
    %254 = arith.mulf %253, %223 : vector<8x16xf32>
    %255 = arith.mulf %246, %251 : vector<8x16xf32>
    %256 = arith.addf %254, %255 : vector<8x16xf32>
    %257 = arith.truncf %256 : vector<8x16xf32> to vector<8x16xbf16>
    %cst_109 = arith.constant dense<0.000000e+00> : vector<8x16xf32>
    %258 = tpu.matmul %257, %83, %cst_109 {dimension_numbers = #tpu.dot_dimension_numbers<[1], [0], [0], [1], [0, 0, 1, 1], [], []>} : vector<8x16xbf16>, vector<16x16xbf16>, vector<8x16xf32> -> vector<8x16xf32>
    %259 = arith.truncf %258 : vector<8x16xf32> to vector<8x16xbf16>
    %cst_110 = arith.constant dense<0.000000e+00> : vector<8x16xf32>
    %260 = tpu.matmul %82, %259, %cst_110 {dimension_numbers = #tpu.dot_dimension_numbers<[1], [0], [0], [1], [0, 0, 1, 1], [], []>} : vector<8x8xbf16>, vector<8x16xbf16>, vector<8x16xf32> -> vector<8x16xf32>
    %261 = vector.broadcast %84 : vector<1x16xf32> to vector<8x16xf32>
    %262 = arith.addf %260, %261 : vector<8x16xf32>
    %263 = math.tanh %262 : vector<8x16xf32>
    %264 = arith.addf %256, %263 : vector<8x16xf32>
    %265 = vector.extract_strided_slice %91 {offsets = [0, 192], sizes = [8, 48], strides = [1, 1]} : vector<8x384xf32> to vector<8x48xf32>
    %266 = arith.truncf %264 : vector<8x16xf32> to vector<8x16xbf16>
    %cst_111 = arith.constant dense<0.000000e+00> : vector<8x48xf32>
    %267 = tpu.matmul %266, %85, %cst_111 {dimension_numbers = #tpu.dot_dimension_numbers<[1], [0], [0], [1], [0, 0, 1, 1], [], []>} : vector<8x16xbf16>, vector<16x48xbf16>, vector<8x48xf32> -> vector<8x48xf32>
    %268 = vector.extract_strided_slice %265 {offsets = [0, 0], sizes = [8, 16], strides = [1, 1]} : vector<8x48xf32> to vector<8x16xf32>
    %269 = vector.extract_strided_slice %267 {offsets = [0, 0], sizes = [8, 16], strides = [1, 1]} : vector<8x48xf32> to vector<8x16xf32>
    %270 = arith.addf %268, %269 : vector<8x16xf32>
    %cst_112 = arith.constant 5.000000e-01 : f32
    %271 = vector.broadcast %cst_112 : f32 to vector<8x16xf32>
    %272 = arith.mulf %271, %270 : vector<8x16xf32>
    %273 = math.tanh %272 : vector<8x16xf32>
    %cst_113 = arith.constant 1.000000e+00 : f32
    %274 = vector.broadcast %cst_113 : f32 to vector<8x16xf32>
    %275 = arith.addf %273, %274 : vector<8x16xf32>
    %cst_114 = arith.constant 5.000000e-01 : f32
    %276 = vector.broadcast %cst_114 : f32 to vector<8x16xf32>
    %277 = arith.mulf %276, %275 : vector<8x16xf32>
    %278 = vector.extract_strided_slice %265 {offsets = [0, 16], sizes = [8, 16], strides = [1, 1]} : vector<8x48xf32> to vector<8x16xf32>
    %279 = vector.extract_strided_slice %267 {offsets = [0, 16], sizes = [8, 16], strides = [1, 1]} : vector<8x48xf32> to vector<8x16xf32>
    %280 = arith.addf %278, %279 : vector<8x16xf32>
    %cst_115 = arith.constant 5.000000e-01 : f32
    %281 = vector.broadcast %cst_115 : f32 to vector<8x16xf32>
    %282 = arith.mulf %281, %280 : vector<8x16xf32>
    %283 = math.tanh %282 : vector<8x16xf32>
    %cst_116 = arith.constant 1.000000e+00 : f32
    %284 = vector.broadcast %cst_116 : f32 to vector<8x16xf32>
    %285 = arith.addf %283, %284 : vector<8x16xf32>
    %cst_117 = arith.constant 5.000000e-01 : f32
    %286 = vector.broadcast %cst_117 : f32 to vector<8x16xf32>
    %287 = arith.mulf %286, %285 : vector<8x16xf32>
    %288 = vector.extract_strided_slice %265 {offsets = [0, 32], sizes = [8, 16], strides = [1, 1]} : vector<8x48xf32> to vector<8x16xf32>
    %289 = vector.extract_strided_slice %267 {offsets = [0, 32], sizes = [8, 16], strides = [1, 1]} : vector<8x48xf32> to vector<8x16xf32>
    %290 = arith.mulf %277, %289 : vector<8x16xf32>
    %291 = arith.addf %288, %290 : vector<8x16xf32>
    %292 = math.tanh %291 : vector<8x16xf32>
    %cst_118 = arith.constant 1.000000e+00 : f32
    %293 = vector.broadcast %cst_118 : f32 to vector<8x16xf32>
    %294 = arith.subf %293, %287 : vector<8x16xf32>
    %295 = arith.mulf %294, %264 : vector<8x16xf32>
    %296 = arith.mulf %287, %292 : vector<8x16xf32>
    %297 = arith.addf %295, %296 : vector<8x16xf32>
    %298 = arith.truncf %297 : vector<8x16xf32> to vector<8x16xbf16>
    %cst_119 = arith.constant dense<0.000000e+00> : vector<8x16xf32>
    %299 = tpu.matmul %298, %83, %cst_119 {dimension_numbers = #tpu.dot_dimension_numbers<[1], [0], [0], [1], [0, 0, 1, 1], [], []>} : vector<8x16xbf16>, vector<16x16xbf16>, vector<8x16xf32> -> vector<8x16xf32>
    %300 = arith.truncf %299 : vector<8x16xf32> to vector<8x16xbf16>
    %cst_120 = arith.constant dense<0.000000e+00> : vector<8x16xf32>
    %301 = tpu.matmul %82, %300, %cst_120 {dimension_numbers = #tpu.dot_dimension_numbers<[1], [0], [0], [1], [0, 0, 1, 1], [], []>} : vector<8x8xbf16>, vector<8x16xbf16>, vector<8x16xf32> -> vector<8x16xf32>
    %302 = vector.broadcast %84 : vector<1x16xf32> to vector<8x16xf32>
    %303 = arith.addf %301, %302 : vector<8x16xf32>
    %304 = math.tanh %303 : vector<8x16xf32>
    %305 = arith.addf %297, %304 : vector<8x16xf32>
    %306 = vector.extract_strided_slice %91 {offsets = [0, 240], sizes = [8, 48], strides = [1, 1]} : vector<8x384xf32> to vector<8x48xf32>
    %307 = arith.truncf %305 : vector<8x16xf32> to vector<8x16xbf16>
    %cst_121 = arith.constant dense<0.000000e+00> : vector<8x48xf32>
    %308 = tpu.matmul %307, %85, %cst_121 {dimension_numbers = #tpu.dot_dimension_numbers<[1], [0], [0], [1], [0, 0, 1, 1], [], []>} : vector<8x16xbf16>, vector<16x48xbf16>, vector<8x48xf32> -> vector<8x48xf32>
    %309 = vector.extract_strided_slice %306 {offsets = [0, 0], sizes = [8, 16], strides = [1, 1]} : vector<8x48xf32> to vector<8x16xf32>
    %310 = vector.extract_strided_slice %308 {offsets = [0, 0], sizes = [8, 16], strides = [1, 1]} : vector<8x48xf32> to vector<8x16xf32>
    %311 = arith.addf %309, %310 : vector<8x16xf32>
    %cst_122 = arith.constant 5.000000e-01 : f32
    %312 = vector.broadcast %cst_122 : f32 to vector<8x16xf32>
    %313 = arith.mulf %312, %311 : vector<8x16xf32>
    %314 = math.tanh %313 : vector<8x16xf32>
    %cst_123 = arith.constant 1.000000e+00 : f32
    %315 = vector.broadcast %cst_123 : f32 to vector<8x16xf32>
    %316 = arith.addf %314, %315 : vector<8x16xf32>
    %cst_124 = arith.constant 5.000000e-01 : f32
    %317 = vector.broadcast %cst_124 : f32 to vector<8x16xf32>
    %318 = arith.mulf %317, %316 : vector<8x16xf32>
    %319 = vector.extract_strided_slice %306 {offsets = [0, 16], sizes = [8, 16], strides = [1, 1]} : vector<8x48xf32> to vector<8x16xf32>
    %320 = vector.extract_strided_slice %308 {offsets = [0, 16], sizes = [8, 16], strides = [1, 1]} : vector<8x48xf32> to vector<8x16xf32>
    %321 = arith.addf %319, %320 : vector<8x16xf32>
    %cst_125 = arith.constant 5.000000e-01 : f32
    %322 = vector.broadcast %cst_125 : f32 to vector<8x16xf32>
    %323 = arith.mulf %322, %321 : vector<8x16xf32>
    %324 = math.tanh %323 : vector<8x16xf32>
    %cst_126 = arith.constant 1.000000e+00 : f32
    %325 = vector.broadcast %cst_126 : f32 to vector<8x16xf32>
    %326 = arith.addf %324, %325 : vector<8x16xf32>
    %cst_127 = arith.constant 5.000000e-01 : f32
    %327 = vector.broadcast %cst_127 : f32 to vector<8x16xf32>
    %328 = arith.mulf %327, %326 : vector<8x16xf32>
    %329 = vector.extract_strided_slice %306 {offsets = [0, 32], sizes = [8, 16], strides = [1, 1]} : vector<8x48xf32> to vector<8x16xf32>
    %330 = vector.extract_strided_slice %308 {offsets = [0, 32], sizes = [8, 16], strides = [1, 1]} : vector<8x48xf32> to vector<8x16xf32>
    %331 = arith.mulf %318, %330 : vector<8x16xf32>
    %332 = arith.addf %329, %331 : vector<8x16xf32>
    %333 = math.tanh %332 : vector<8x16xf32>
    %cst_128 = arith.constant 1.000000e+00 : f32
    %334 = vector.broadcast %cst_128 : f32 to vector<8x16xf32>
    %335 = arith.subf %334, %328 : vector<8x16xf32>
    %336 = arith.mulf %335, %305 : vector<8x16xf32>
    %337 = arith.mulf %328, %333 : vector<8x16xf32>
    %338 = arith.addf %336, %337 : vector<8x16xf32>
    %339 = arith.truncf %338 : vector<8x16xf32> to vector<8x16xbf16>
    %cst_129 = arith.constant dense<0.000000e+00> : vector<8x16xf32>
    %340 = tpu.matmul %339, %83, %cst_129 {dimension_numbers = #tpu.dot_dimension_numbers<[1], [0], [0], [1], [0, 0, 1, 1], [], []>} : vector<8x16xbf16>, vector<16x16xbf16>, vector<8x16xf32> -> vector<8x16xf32>
    %341 = arith.truncf %340 : vector<8x16xf32> to vector<8x16xbf16>
    %cst_130 = arith.constant dense<0.000000e+00> : vector<8x16xf32>
    %342 = tpu.matmul %82, %341, %cst_130 {dimension_numbers = #tpu.dot_dimension_numbers<[1], [0], [0], [1], [0, 0, 1, 1], [], []>} : vector<8x8xbf16>, vector<8x16xbf16>, vector<8x16xf32> -> vector<8x16xf32>
    %343 = vector.broadcast %84 : vector<1x16xf32> to vector<8x16xf32>
    %344 = arith.addf %342, %343 : vector<8x16xf32>
    %345 = math.tanh %344 : vector<8x16xf32>
    %346 = arith.addf %338, %345 : vector<8x16xf32>
    %347 = vector.extract_strided_slice %91 {offsets = [0, 288], sizes = [8, 48], strides = [1, 1]} : vector<8x384xf32> to vector<8x48xf32>
    %348 = arith.truncf %346 : vector<8x16xf32> to vector<8x16xbf16>
    %cst_131 = arith.constant dense<0.000000e+00> : vector<8x48xf32>
    %349 = tpu.matmul %348, %85, %cst_131 {dimension_numbers = #tpu.dot_dimension_numbers<[1], [0], [0], [1], [0, 0, 1, 1], [], []>} : vector<8x16xbf16>, vector<16x48xbf16>, vector<8x48xf32> -> vector<8x48xf32>
    %350 = vector.extract_strided_slice %347 {offsets = [0, 0], sizes = [8, 16], strides = [1, 1]} : vector<8x48xf32> to vector<8x16xf32>
    %351 = vector.extract_strided_slice %349 {offsets = [0, 0], sizes = [8, 16], strides = [1, 1]} : vector<8x48xf32> to vector<8x16xf32>
    %352 = arith.addf %350, %351 : vector<8x16xf32>
    %cst_132 = arith.constant 5.000000e-01 : f32
    %353 = vector.broadcast %cst_132 : f32 to vector<8x16xf32>
    %354 = arith.mulf %353, %352 : vector<8x16xf32>
    %355 = math.tanh %354 : vector<8x16xf32>
    %cst_133 = arith.constant 1.000000e+00 : f32
    %356 = vector.broadcast %cst_133 : f32 to vector<8x16xf32>
    %357 = arith.addf %355, %356 : vector<8x16xf32>
    %cst_134 = arith.constant 5.000000e-01 : f32
    %358 = vector.broadcast %cst_134 : f32 to vector<8x16xf32>
    %359 = arith.mulf %358, %357 : vector<8x16xf32>
    %360 = vector.extract_strided_slice %347 {offsets = [0, 16], sizes = [8, 16], strides = [1, 1]} : vector<8x48xf32> to vector<8x16xf32>
    %361 = vector.extract_strided_slice %349 {offsets = [0, 16], sizes = [8, 16], strides = [1, 1]} : vector<8x48xf32> to vector<8x16xf32>
    %362 = arith.addf %360, %361 : vector<8x16xf32>
    %cst_135 = arith.constant 5.000000e-01 : f32
    %363 = vector.broadcast %cst_135 : f32 to vector<8x16xf32>
    %364 = arith.mulf %363, %362 : vector<8x16xf32>
    %365 = math.tanh %364 : vector<8x16xf32>
    %cst_136 = arith.constant 1.000000e+00 : f32
    %366 = vector.broadcast %cst_136 : f32 to vector<8x16xf32>
    %367 = arith.addf %365, %366 : vector<8x16xf32>
    %cst_137 = arith.constant 5.000000e-01 : f32
    %368 = vector.broadcast %cst_137 : f32 to vector<8x16xf32>
    %369 = arith.mulf %368, %367 : vector<8x16xf32>
    %370 = vector.extract_strided_slice %347 {offsets = [0, 32], sizes = [8, 16], strides = [1, 1]} : vector<8x48xf32> to vector<8x16xf32>
    %371 = vector.extract_strided_slice %349 {offsets = [0, 32], sizes = [8, 16], strides = [1, 1]} : vector<8x48xf32> to vector<8x16xf32>
    %372 = arith.mulf %359, %371 : vector<8x16xf32>
    %373 = arith.addf %370, %372 : vector<8x16xf32>
    %374 = math.tanh %373 : vector<8x16xf32>
    %cst_138 = arith.constant 1.000000e+00 : f32
    %375 = vector.broadcast %cst_138 : f32 to vector<8x16xf32>
    %376 = arith.subf %375, %369 : vector<8x16xf32>
    %377 = arith.mulf %376, %346 : vector<8x16xf32>
    %378 = arith.mulf %369, %374 : vector<8x16xf32>
    %379 = arith.addf %377, %378 : vector<8x16xf32>
    %380 = arith.truncf %379 : vector<8x16xf32> to vector<8x16xbf16>
    %cst_139 = arith.constant dense<0.000000e+00> : vector<8x16xf32>
    %381 = tpu.matmul %380, %83, %cst_139 {dimension_numbers = #tpu.dot_dimension_numbers<[1], [0], [0], [1], [0, 0, 1, 1], [], []>} : vector<8x16xbf16>, vector<16x16xbf16>, vector<8x16xf32> -> vector<8x16xf32>
    %382 = arith.truncf %381 : vector<8x16xf32> to vector<8x16xbf16>
    %cst_140 = arith.constant dense<0.000000e+00> : vector<8x16xf32>
    %383 = tpu.matmul %82, %382, %cst_140 {dimension_numbers = #tpu.dot_dimension_numbers<[1], [0], [0], [1], [0, 0, 1, 1], [], []>} : vector<8x8xbf16>, vector<8x16xbf16>, vector<8x16xf32> -> vector<8x16xf32>
    %384 = vector.broadcast %84 : vector<1x16xf32> to vector<8x16xf32>
    %385 = arith.addf %383, %384 : vector<8x16xf32>
    %386 = math.tanh %385 : vector<8x16xf32>
    %387 = arith.addf %379, %386 : vector<8x16xf32>
    %388 = vector.extract_strided_slice %91 {offsets = [0, 336], sizes = [8, 48], strides = [1, 1]} : vector<8x384xf32> to vector<8x48xf32>
    %389 = arith.truncf %387 : vector<8x16xf32> to vector<8x16xbf16>
    %cst_141 = arith.constant dense<0.000000e+00> : vector<8x48xf32>
    %390 = tpu.matmul %389, %85, %cst_141 {dimension_numbers = #tpu.dot_dimension_numbers<[1], [0], [0], [1], [0, 0, 1, 1], [], []>} : vector<8x16xbf16>, vector<16x48xbf16>, vector<8x48xf32> -> vector<8x48xf32>
    %391 = vector.extract_strided_slice %388 {offsets = [0, 0], sizes = [8, 16], strides = [1, 1]} : vector<8x48xf32> to vector<8x16xf32>
    %392 = vector.extract_strided_slice %390 {offsets = [0, 0], sizes = [8, 16], strides = [1, 1]} : vector<8x48xf32> to vector<8x16xf32>
    %393 = arith.addf %391, %392 : vector<8x16xf32>
    %cst_142 = arith.constant 5.000000e-01 : f32
    %394 = vector.broadcast %cst_142 : f32 to vector<8x16xf32>
    %395 = arith.mulf %394, %393 : vector<8x16xf32>
    %396 = math.tanh %395 : vector<8x16xf32>
    %cst_143 = arith.constant 1.000000e+00 : f32
    %397 = vector.broadcast %cst_143 : f32 to vector<8x16xf32>
    %398 = arith.addf %396, %397 : vector<8x16xf32>
    %cst_144 = arith.constant 5.000000e-01 : f32
    %399 = vector.broadcast %cst_144 : f32 to vector<8x16xf32>
    %400 = arith.mulf %399, %398 : vector<8x16xf32>
    %401 = vector.extract_strided_slice %388 {offsets = [0, 16], sizes = [8, 16], strides = [1, 1]} : vector<8x48xf32> to vector<8x16xf32>
    %402 = vector.extract_strided_slice %390 {offsets = [0, 16], sizes = [8, 16], strides = [1, 1]} : vector<8x48xf32> to vector<8x16xf32>
    %403 = arith.addf %401, %402 : vector<8x16xf32>
    %cst_145 = arith.constant 5.000000e-01 : f32
    %404 = vector.broadcast %cst_145 : f32 to vector<8x16xf32>
    %405 = arith.mulf %404, %403 : vector<8x16xf32>
    %406 = math.tanh %405 : vector<8x16xf32>
    %cst_146 = arith.constant 1.000000e+00 : f32
    %407 = vector.broadcast %cst_146 : f32 to vector<8x16xf32>
    %408 = arith.addf %406, %407 : vector<8x16xf32>
    %cst_147 = arith.constant 5.000000e-01 : f32
    %409 = vector.broadcast %cst_147 : f32 to vector<8x16xf32>
    %410 = arith.mulf %409, %408 : vector<8x16xf32>
    %411 = vector.extract_strided_slice %388 {offsets = [0, 32], sizes = [8, 16], strides = [1, 1]} : vector<8x48xf32> to vector<8x16xf32>
    %412 = vector.extract_strided_slice %390 {offsets = [0, 32], sizes = [8, 16], strides = [1, 1]} : vector<8x48xf32> to vector<8x16xf32>
    %413 = arith.mulf %400, %412 : vector<8x16xf32>
    %414 = arith.addf %411, %413 : vector<8x16xf32>
    %415 = math.tanh %414 : vector<8x16xf32>
    %cst_148 = arith.constant 1.000000e+00 : f32
    %416 = vector.broadcast %cst_148 : f32 to vector<8x16xf32>
    %417 = arith.subf %416, %410 : vector<8x16xf32>
    %418 = arith.mulf %417, %387 : vector<8x16xf32>
    %419 = arith.mulf %410, %415 : vector<8x16xf32>
    %420 = arith.addf %418, %419 : vector<8x16xf32>
    %421 = tpu.concatenate %133, %174, %215, %256, %297, %338, %379, %420 in 1 : vector<8x16xf32>, vector<8x16xf32>, vector<8x16xf32>, vector<8x16xf32>, vector<8x16xf32>, vector<8x16xf32>, vector<8x16xf32>, vector<8x16xf32> -> vector<8x128xf32>
    %422 = tpu.concatenate %100, %141, %182, %223, %264, %305, %346, %387 in 1 : vector<8x16xf32>, vector<8x16xf32>, vector<8x16xf32>, vector<8x16xf32>, vector<8x16xf32>, vector<8x16xf32>, vector<8x16xf32>, vector<8x16xf32> -> vector<8x128xf32>
    %423 = tpu.concatenate %421, %422 in 0 : vector<8x128xf32>, vector<8x128xf32> -> vector<16x128xf32>
    %c0_149 = arith.constant 0 : index
    %c0_150 = arith.constant 0 : index
    %424 = vector.load %arg42[%c0_149, %c0_150] : memref<16x128xf32, #tpu.memory_space<vmem>>, vector<16x128xf32>
    tpu.vector_store %arg42[%c0_149, %c0_150], %423 {strides = array<i32>} : memref<16x128xf32, #tpu.memory_space<vmem>>, vector<16x128xf32>,
    %c0_151 = arith.constant 0 : index
    %c0_152 = arith.constant 0 : index
    %425 = vector.load %arg24[%c0_151, %c0_152] : memref<128x128xbf16, #tpu.memory_space<vmem>>, vector<128x128xbf16>
    %426 = arith.truncf %421 : vector<8x128xf32> to vector<8x128xbf16>
    %cst_153 = arith.constant dense<0.000000e+00> : vector<8x128xf32>
    %427 = tpu.matmul %426, %425, %cst_153 {dimension_numbers = #tpu.dot_dimension_numbers<[1], [0], [0], [1], [0, 0, 1, 1], [], []>} : vector<8x128xbf16>, vector<128x128xbf16>, vector<8x128xf32> -> vector<8x128xf32>
    %c0_154 = arith.constant 0 : index
    %c0_155 = arith.constant 0 : index
    %428 = vector.load %arg25[%c0_154, %c0_155] : memref<1x128xf32, #tpu.memory_space<vmem>>, vector<1x128xf32>
    %429 = vector.broadcast %428 : vector<1x128xf32> to vector<8x128xf32>
    %430 = arith.addf %427, %429 : vector<8x128xf32>
    %cst_156 = arith.constant 0.000000e+00 : f32
    %431 = vector.broadcast %cst_156 : f32 to vector<8x128xf32>
    %432 = arith.cmpf ogt, %430, %431 : vector<8x128xf32>
    %cst_157 = arith.constant 0.000000e+00 : f32
    %433 = vector.broadcast %cst_157 : f32 to vector<8x128xf32>
    %434 = arith.minimumf %430, %433 : vector<8x128xf32>
    %435 = math.exp %434 : vector<8x128xf32>
    %cst_158 = arith.constant 1.000000e+00 : f32
    %436 = vector.broadcast %cst_158 : f32 to vector<8x128xf32>
    %437 = arith.subf %435, %436 : vector<8x128xf32>
    %438 = arith.select %432, %430, %437 : vector<8x128xi1>, vector<8x128xf32>
    %c0_159 = arith.constant 0 : index
    %c0_160 = arith.constant 0 : index
    %439 = vector.load %arg26[%c0_159, %c0_160] : memref<128x128xbf16, #tpu.memory_space<vmem>>, vector<128x128xbf16>
    %440 = arith.truncf %438 : vector<8x128xf32> to vector<8x128xbf16>
    %cst_161 = arith.constant dense<0.000000e+00> : vector<8x128xf32>
    %441 = tpu.matmul %440, %439, %cst_161 {dimension_numbers = #tpu.dot_dimension_numbers<[1], [0], [0], [1], [0, 0, 1, 1], [], []>} : vector<8x128xbf16>, vector<128x128xbf16>, vector<8x128xf32> -> vector<8x128xf32>
    %c0_162 = arith.constant 0 : index
    %c0_163 = arith.constant 0 : index
    %442 = vector.load %arg27[%c0_162, %c0_163] : memref<1x128xf32, #tpu.memory_space<vmem>>, vector<1x128xf32>
    %443 = vector.broadcast %442 : vector<1x128xf32> to vector<8x128xf32>
    %444 = arith.addf %441, %443 : vector<8x128xf32>
    %cst_164 = arith.constant 0.000000e+00 : f32
    %445 = vector.broadcast %cst_164 : f32 to vector<8x128xf32>
    %446 = arith.cmpf ogt, %444, %445 : vector<8x128xf32>
    %cst_165 = arith.constant 0.000000e+00 : f32
    %447 = vector.broadcast %cst_165 : f32 to vector<8x128xf32>
    %448 = arith.minimumf %444, %447 : vector<8x128xf32>
    %449 = math.exp %448 : vector<8x128xf32>
    %cst_166 = arith.constant 1.000000e+00 : f32
    %450 = vector.broadcast %cst_166 : f32 to vector<8x128xf32>
    %451 = arith.subf %449, %450 : vector<8x128xf32>
    %452 = arith.select %446, %444, %451 : vector<8x128xi1>, vector<8x128xf32>
    %c0_167 = arith.constant 0 : index
    %c0_168 = arith.constant 0 : index
    %453 = vector.load %arg28[%c0_167, %c0_168] : memref<10x8xbf16, #tpu.memory_space<vmem>>, vector<10x8xbf16>
    %454 = arith.truncf %452 : vector<8x128xf32> to vector<8x128xbf16>
    %cst_169 = arith.constant dense<0.000000e+00> : vector<10x128xf32>
    %455 = tpu.matmul %453, %454, %cst_169 {dimension_numbers = #tpu.dot_dimension_numbers<[1], [0], [0], [1], [0, 0, 1, 1], [], []>} : vector<10x8xbf16>, vector<8x128xbf16>, vector<10x128xf32> -> vector<10x128xf32>
    %c0_170 = arith.constant 0 : index
    %c0_171 = arith.constant 0 : index
    %456 = vector.load %arg29[%c0_170, %c0_171] : memref<128x128xbf16, #tpu.memory_space<vmem>>, vector<128x128xbf16>
    %457 = arith.truncf %455 : vector<10x128xf32> to vector<10x128xbf16>
    %cst_172 = arith.constant dense<0.000000e+00> : vector<10x128xf32>
    %458 = tpu.matmul %457, %456, %cst_172 {dimension_numbers = #tpu.dot_dimension_numbers<[1], [0], [0], [1], [0, 0, 1, 1], [], []>} : vector<10x128xbf16>, vector<128x128xbf16>, vector<10x128xf32> -> vector<10x128xf32>
    %c0_173 = arith.constant 0 : index
    %c0_174 = arith.constant 0 : index
    %459 = vector.load %arg30[%c0_173, %c0_174] : memref<1x128xf32, #tpu.memory_space<vmem>>, vector<1x128xf32>
    %460 = vector.broadcast %459 : vector<1x128xf32> to vector<10x128xf32>
    %461 = arith.addf %458, %460 : vector<10x128xf32>
    %cst_175 = arith.constant 0.000000e+00 : f32
    %462 = vector.broadcast %cst_175 : f32 to vector<10x128xf32>
    %463 = arith.cmpf ogt, %461, %462 : vector<10x128xf32>
    %cst_176 = arith.constant 0.000000e+00 : f32
    %464 = vector.broadcast %cst_176 : f32 to vector<10x128xf32>
    %465 = arith.minimumf %461, %464 : vector<10x128xf32>
    %466 = math.exp %465 : vector<10x128xf32>
    %cst_177 = arith.constant 1.000000e+00 : f32
    %467 = vector.broadcast %cst_177 : f32 to vector<10x128xf32>
    %468 = arith.subf %466, %467 : vector<10x128xf32>
    %469 = arith.select %463, %461, %468 : vector<10x128xi1>, vector<10x128xf32>
    %c0_178 = arith.constant 0 : index
    %c0_179 = arith.constant 0 : index
    %470 = vector.load %arg31[%c0_178, %c0_179] : memref<12x10xbf16, #tpu.memory_space<vmem>>, vector<12x10xbf16>
    %c0_180 = arith.constant 0 : index
    %c0_181 = arith.constant 0 : index
    %471 = vector.load %arg32[%c0_180, %c0_181] : memref<128x64xbf16, #tpu.memory_space<vmem>>, vector<128x64xbf16>
    %c0_182 = arith.constant 0 : index
    %c0_183 = arith.constant 0 : index
    %472 = vector.load %arg33[%c0_182, %c0_183] : memref<1x64xf32, #tpu.memory_space<vmem>>, vector<1x64xf32>
    %473 = arith.truncf %469 : vector<10x128xf32> to vector<10x128xbf16>
    %cst_184 = arith.constant dense<0.000000e+00> : vector<12x128xf32>
    %474 = tpu.matmul %470, %473, %cst_184 {dimension_numbers = #tpu.dot_dimension_numbers<[1], [0], [0], [1], [0, 0, 1, 1], [], []>} : vector<12x10xbf16>, vector<10x128xbf16>, vector<12x128xf32> -> vector<12x128xf32>
    %475 = arith.truncf %474 : vector<12x128xf32> to vector<12x128xbf16>
    %cst_185 = arith.constant dense<0.000000e+00> : vector<12x64xf32>
    %476 = tpu.matmul %475, %471, %cst_185 {dimension_numbers = #tpu.dot_dimension_numbers<[1], [0], [0], [1], [0, 0, 1, 1], [], []>} : vector<12x128xbf16>, vector<128x64xbf16>, vector<12x64xf32> -> vector<12x64xf32>
    %477 = vector.broadcast %472 : vector<1x64xf32> to vector<12x64xf32>
    %478 = arith.addf %476, %477 : vector<12x64xf32>
    %cst_186 = arith.constant 0.000000e+00 : f32
    %479 = vector.broadcast %cst_186 : f32 to vector<12x64xf32>
    %480 = arith.cmpf ogt, %478, %479 : vector<12x64xf32>
    %cst_187 = arith.constant 0.000000e+00 : f32
    %481 = vector.broadcast %cst_187 : f32 to vector<12x64xf32>
    %482 = arith.minimumf %478, %481 : vector<12x64xf32>
    %483 = math.exp %482 : vector<12x64xf32>
    %cst_188 = arith.constant 1.000000e+00 : f32
    %484 = vector.broadcast %cst_188 : f32 to vector<12x64xf32>
    %485 = arith.subf %483, %484 : vector<12x64xf32>
    %486 = arith.select %480, %478, %485 : vector<12x64xi1>, vector<12x64xf32>
    %c0_189 = arith.constant 0 : index
    %c0_190 = arith.constant 0 : index
    %487 = vector.load %arg34[%c0_189, %c0_190] : memref<14x12xbf16, #tpu.memory_space<vmem>>, vector<14x12xbf16>
    %c0_191 = arith.constant 0 : index
    %c0_192 = arith.constant 0 : index
    %488 = vector.load %arg35[%c0_191, %c0_192] : memref<64x64xbf16, #tpu.memory_space<vmem>>, vector<64x64xbf16>
    %c0_193 = arith.constant 0 : index
    %c0_194 = arith.constant 0 : index
    %489 = vector.load %arg36[%c0_193, %c0_194] : memref<1x64xf32, #tpu.memory_space<vmem>>, vector<1x64xf32>
    %490 = arith.truncf %486 : vector<12x64xf32> to vector<12x64xbf16>
    %cst_195 = arith.constant dense<0.000000e+00> : vector<14x64xf32>
    %491 = tpu.matmul %487, %490, %cst_195 {dimension_numbers = #tpu.dot_dimension_numbers<[1], [0], [0], [1], [0, 0, 1, 1], [], []>} : vector<14x12xbf16>, vector<12x64xbf16>, vector<14x64xf32> -> vector<14x64xf32>
    %492 = arith.truncf %491 : vector<14x64xf32> to vector<14x64xbf16>
    %cst_196 = arith.constant dense<0.000000e+00> : vector<14x64xf32>
    %493 = tpu.matmul %492, %488, %cst_196 {dimension_numbers = #tpu.dot_dimension_numbers<[1], [0], [0], [1], [0, 0, 1, 1], [], []>} : vector<14x64xbf16>, vector<64x64xbf16>, vector<14x64xf32> -> vector<14x64xf32>
    %494 = vector.broadcast %489 : vector<1x64xf32> to vector<14x64xf32>
    %495 = arith.addf %493, %494 : vector<14x64xf32>
    %cst_197 = arith.constant 0.000000e+00 : f32
    %496 = vector.broadcast %cst_197 : f32 to vector<14x64xf32>
    %497 = arith.cmpf ogt, %495, %496 : vector<14x64xf32>
    %cst_198 = arith.constant 0.000000e+00 : f32
    %498 = vector.broadcast %cst_198 : f32 to vector<14x64xf32>
    %499 = arith.minimumf %495, %498 : vector<14x64xf32>
    %500 = math.exp %499 : vector<14x64xf32>
    %cst_199 = arith.constant 1.000000e+00 : f32
    %501 = vector.broadcast %cst_199 : f32 to vector<14x64xf32>
    %502 = arith.subf %500, %501 : vector<14x64xf32>
    %503 = arith.select %497, %495, %502 : vector<14x64xi1>, vector<14x64xf32>
    %c0_200 = arith.constant 0 : index
    %c0_201 = arith.constant 0 : index
    %504 = vector.load %arg37[%c0_200, %c0_201] : memref<16x14xbf16, #tpu.memory_space<vmem>>, vector<16x14xbf16>
    %505 = arith.truncf %503 : vector<14x64xf32> to vector<14x64xbf16>
    %cst_202 = arith.constant dense<0.000000e+00> : vector<16x64xf32>
    %506 = tpu.matmul %504, %505, %cst_202 {dimension_numbers = #tpu.dot_dimension_numbers<[1], [0], [0], [1], [0, 0, 1, 1], [], []>} : vector<16x14xbf16>, vector<14x64xbf16>, vector<16x64xf32> -> vector<16x64xf32>
    %c0_203 = arith.constant 0 : index
    %c0_204 = arith.constant 0 : index
    %507 = vector.load %arg38[%c0_203, %c0_204] : memref<64x16xbf16, #tpu.memory_space<vmem>>, vector<64x16xbf16>
    %508 = arith.truncf %506 : vector<16x64xf32> to vector<16x64xbf16>
    %cst_205 = arith.constant dense<0.000000e+00> : vector<16x16xf32>
    %509 = tpu.matmul %508, %507, %cst_205 {dimension_numbers = #tpu.dot_dimension_numbers<[1], [0], [0], [1], [0, 0, 1, 1], [], []>} : vector<16x64xbf16>, vector<64x16xbf16>, vector<16x16xf32> -> vector<16x16xf32>
    %c0_206 = arith.constant 0 : index
    %c0_207 = arith.constant 0 : index
    %510 = vector.load %arg39[%c0_206, %c0_207] : memref<1x16xf32, #tpu.memory_space<vmem>>, vector<1x16xf32>
    %511 = vector.broadcast %510 : vector<1x16xf32> to vector<16x16xf32>
    %512 = arith.addf %509, %511 : vector<16x16xf32>
    %c0_208 = arith.constant 0 : index
    %c0_209 = arith.constant 0 : index
    %513 = vector.load %arg40[%c0_208, %c0_209] : memref<16x16xbf16, #tpu.memory_space<vmem>>, vector<16x16xbf16>
    %514 = arith.truncf %512 : vector<16x16xf32> to vector<16x16xbf16>
    %cst_210 = arith.constant dense<0.000000e+00> : vector<16x16xf32>
    %515 = tpu.matmul %513, %514, %cst_210 {dimension_numbers = #tpu.dot_dimension_numbers<[1], [0], [0], [1], [0, 0, 1, 1], [], []>} : vector<16x16xbf16>, vector<16x16xbf16>, vector<16x16xf32> -> vector<16x16xf32>
    %c0_211 = arith.constant 0 : index
    %c0_212 = arith.constant 0 : index
    %516 = vector.load %arg41[%c0_211, %c0_212] : memref<16x16xbf16, #tpu.memory_space<vmem>>, vector<16x16xbf16>
    %517 = arith.truncf %512 : vector<16x16xf32> to vector<16x16xbf16>
    %cst_213 = arith.constant dense<0.000000e+00> : vector<16x16xf32>
    %518 = tpu.matmul %516, %517, %cst_213 {dimension_numbers = #tpu.dot_dimension_numbers<[1], [0], [0], [1], [0, 0, 1, 1], [], []>} : vector<16x16xbf16>, vector<16x16xbf16>, vector<16x16xf32> -> vector<16x16xf32>
    %519 = tpu.concatenate %512, %515, %518 in 1 : vector<16x16xf32>, vector<16x16xf32>, vector<16x16xf32> -> vector<16x48xf32>
    %c0_214 = arith.constant 0 : index
    %c0_215 = arith.constant 0 : index
    %520 = vector.load %arg43[%c0_214, %c0_215] : memref<16x48xf32, #tpu.memory_space<vmem>>, vector<16x48xf32>
    tpu.vector_store %arg43[%c0_214, %c0_215], %519 {strides = array<i32>} : memref<16x48xf32, #tpu.memory_space<vmem>>, vector<16x48xf32>,
    return
  }
  func.func @transform_0(%arg0: i32) -> (i32, i32) {
    %c0_i32 = arith.constant 0 : i32
    %c0_i32_0 = arith.constant 0 : i32
    %c0_i32_1 = arith.constant 0 : i32
    return %c0_i32, %c0_i32_0 : i32, i32
  }
  func.func @transform_1(%arg0: i32) -> (i32, i32) {
    %c0_i32 = arith.constant 0 : i32
    %c0_i32_0 = arith.constant 0 : i32
    %c0_i32_1 = arith.constant 0 : i32
    return %c0_i32, %c0_i32_0 : i32, i32
  }
  func.func @transform_2(%arg0: i32) -> (i32, i32) {
    %c0_i32 = arith.constant 0 : i32
    %c0_i32_0 = arith.constant 0 : i32
    %c0_i32_1 = arith.constant 0 : i32
    return %c0_i32, %c0_i32_0 : i32, i32
  }
  func.func @transform_3(%arg0: i32) -> (i32, i32) {
    %c0_i32 = arith.constant 0 : i32
    %c0_i32_0 = arith.constant 0 : i32
    %c0_i32_1 = arith.constant 0 : i32
    return %c0_i32, %c0_i32_0 : i32, i32
  }
  func.func @transform_4(%arg0: i32) -> (i32, i32) {
    %c0_i32 = arith.constant 0 : i32
    %c0_i32_0 = arith.constant 0 : i32
    %c0_i32_1 = arith.constant 0 : i32
    return %c0_i32, %c0_i32_0 : i32, i32
  }
  func.func @transform_5(%arg0: i32) -> (i32, i32) {
    %c0_i32 = arith.constant 0 : i32
    %c0_i32_0 = arith.constant 0 : i32
    %c0_i32_1 = arith.constant 0 : i32
    return %c0_i32, %c0_i32_0 : i32, i32
  }
  func.func @transform_6(%arg0: i32) -> (i32, i32) {
    %c0_i32 = arith.constant 0 : i32
    %c0_i32_0 = arith.constant 0 : i32
    %c0_i32_1 = arith.constant 0 : i32
    return %c0_i32, %c0_i32_0 : i32, i32
  }
  func.func @transform_7(%arg0: i32) -> (i32, i32) {
    %c0_i32 = arith.constant 0 : i32
    %c0_i32_0 = arith.constant 0 : i32
    %c0_i32_1 = arith.constant 0 : i32
    return %c0_i32, %c0_i32_0 : i32, i32
  }
  func.func @transform_8(%arg0: i32) -> (i32, i32) {
    %c0_i32 = arith.constant 0 : i32
    %c0_i32_0 = arith.constant 0 : i32
    %c0_i32_1 = arith.constant 0 : i32
    return %c0_i32, %c0_i32_0 : i32, i32
  }
  func.func @transform_9(%arg0: i32) -> (i32, i32) {
    %c0_i32 = arith.constant 0 : i32
    %c0_i32_0 = arith.constant 0 : i32
    %c0_i32_1 = arith.constant 0 : i32
    return %c0_i32, %c0_i32_0 : i32, i32
  }
  func.func @transform_10(%arg0: i32) -> (i32, i32) {
    %c0_i32 = arith.constant 0 : i32
    %c0_i32_0 = arith.constant 0 : i32
    %c0_i32_1 = arith.constant 0 : i32
    return %c0_i32, %c0_i32_0 : i32, i32
  }
  func.func @transform_11(%arg0: i32) -> (i32, i32) {
    %c0_i32 = arith.constant 0 : i32
    %c0_i32_0 = arith.constant 0 : i32
    %c0_i32_1 = arith.constant 0 : i32
    return %c0_i32, %c0_i32_0 : i32, i32
  }
  func.func @transform_12(%arg0: i32) -> (i32, i32) {
    %c0_i32 = arith.constant 0 : i32
    %c0_i32_0 = arith.constant 0 : i32
    %c0_i32_1 = arith.constant 0 : i32
    return %c0_i32, %c0_i32_0 : i32, i32
  }
  func.func @transform_13(%arg0: i32) -> (i32, i32) {
    %c0_i32 = arith.constant 0 : i32
    %c0_i32_0 = arith.constant 0 : i32
    %c0_i32_1 = arith.constant 0 : i32
    return %c0_i32, %c0_i32_0 : i32, i32
  }
  func.func @transform_14(%arg0: i32) -> (i32, i32) {
    %c0_i32 = arith.constant 0 : i32
    %c0_i32_0 = arith.constant 0 : i32
    %c0_i32_1 = arith.constant 0 : i32
    return %c0_i32, %c0_i32_0 : i32, i32
  }
  func.func @transform_15(%arg0: i32) -> (i32, i32) {
    %c0_i32 = arith.constant 0 : i32
    %c0_i32_0 = arith.constant 0 : i32
    %c0_i32_1 = arith.constant 0 : i32
    return %c0_i32, %c0_i32_0 : i32, i32
  }
  func.func @transform_16(%arg0: i32) -> (i32, i32) {
    %c0_i32 = arith.constant 0 : i32
    %c0_i32_0 = arith.constant 0 : i32
    %c0_i32_1 = arith.constant 0 : i32
    return %c0_i32, %c0_i32_0 : i32, i32
  }
  func.func @transform_17(%arg0: i32) -> (i32, i32) {
    %c0_i32 = arith.constant 0 : i32
    %c0_i32_0 = arith.constant 0 : i32
    %c0_i32_1 = arith.constant 0 : i32
    return %c0_i32, %c0_i32_0 : i32, i32
  }
  func.func @transform_18(%arg0: i32) -> (i32, i32) {
    %c0_i32 = arith.constant 0 : i32
    %c0_i32_0 = arith.constant 0 : i32
    %c0_i32_1 = arith.constant 0 : i32
    return %c0_i32, %c0_i32_0 : i32, i32
  }
  func.func @transform_19(%arg0: i32) -> (i32, i32) {
    %c0_i32 = arith.constant 0 : i32
    %c0_i32_0 = arith.constant 0 : i32
    %c0_i32_1 = arith.constant 0 : i32
    return %c0_i32, %c0_i32_0 : i32, i32
  }
  func.func @transform_20(%arg0: i32) -> (i32, i32) {
    %c0_i32 = arith.constant 0 : i32
    %c0_i32_0 = arith.constant 0 : i32
    %c0_i32_1 = arith.constant 0 : i32
    return %c0_i32, %c0_i32_0 : i32, i32
  }
  func.func @transform_21(%arg0: i32) -> (i32, i32) {
    %c0_i32 = arith.constant 0 : i32
    %c0_i32_0 = arith.constant 0 : i32
    %c0_i32_1 = arith.constant 0 : i32
    return %c0_i32, %c0_i32_0 : i32, i32
  }
  func.func @transform_22(%arg0: i32) -> (i32, i32) {
    %c0_i32 = arith.constant 0 : i32
    %c0_i32_0 = arith.constant 0 : i32
    %c0_i32_1 = arith.constant 0 : i32
    return %c0_i32, %c0_i32_0 : i32, i32
  }
  func.func @transform_23(%arg0: i32) -> (i32, i32) {
    %c0_i32 = arith.constant 0 : i32
    %c0_i32_0 = arith.constant 0 : i32
    %c0_i32_1 = arith.constant 0 : i32
    return %c0_i32, %c0_i32_0 : i32, i32
  }
  func.func @transform_24(%arg0: i32) -> (i32, i32) {
    %c0_i32 = arith.constant 0 : i32
    %c0_i32_0 = arith.constant 0 : i32
    %c0_i32_1 = arith.constant 0 : i32
    return %c0_i32, %c0_i32_0 : i32, i32
  }
  func.func @transform_25(%arg0: i32) -> (i32, i32) {
    %c0_i32 = arith.constant 0 : i32
    %c0_i32_0 = arith.constant 0 : i32
    %c0_i32_1 = arith.constant 0 : i32
    return %c0_i32, %c0_i32_0 : i32, i32
  }
  func.func @transform_26(%arg0: i32) -> (i32, i32) {
    %c0_i32 = arith.constant 0 : i32
    %c0_i32_0 = arith.constant 0 : i32
    %c0_i32_1 = arith.constant 0 : i32
    return %c0_i32, %c0_i32_0 : i32, i32
  }
  func.func @transform_27(%arg0: i32) -> (i32, i32) {
    %c0_i32 = arith.constant 0 : i32
    %c0_i32_0 = arith.constant 0 : i32
    %c0_i32_1 = arith.constant 0 : i32
    return %c0_i32, %c0_i32_0 : i32, i32
  }
  func.func @transform_28(%arg0: i32) -> (i32, i32) {
    %c0_i32 = arith.constant 0 : i32
    %c0_i32_0 = arith.constant 0 : i32
    %c0_i32_1 = arith.constant 0 : i32
    return %c0_i32, %c0_i32_0 : i32, i32
  }
  func.func @transform_29(%arg0: i32) -> (i32, i32) {
    %c0_i32 = arith.constant 0 : i32
    %c0_i32_0 = arith.constant 0 : i32
    %c0_i32_1 = arith.constant 0 : i32
    return %c0_i32, %c0_i32_0 : i32, i32
  }
  func.func @transform_30(%arg0: i32) -> (i32, i32) {
    %c0_i32 = arith.constant 0 : i32
    %c0_i32_0 = arith.constant 0 : i32
    %c0_i32_1 = arith.constant 0 : i32
    return %c0_i32, %c0_i32_0 : i32, i32
  }
  func.func @transform_31(%arg0: i32) -> (i32, i32) {
    %c0_i32 = arith.constant 0 : i32
    %c0_i32_0 = arith.constant 0 : i32
    %c0_i32_1 = arith.constant 0 : i32
    return %c0_i32, %c0_i32_0 : i32, i32
  }
  func.func @transform_32(%arg0: i32) -> (i32, i32) {
    %c0_i32 = arith.constant 0 : i32
    %c0_i32_0 = arith.constant 0 : i32
    %c0_i32_1 = arith.constant 0 : i32
    return %c0_i32, %c0_i32_0 : i32, i32
  }
  func.func @transform_33(%arg0: i32) -> (i32, i32) {
    %c0_i32 = arith.constant 0 : i32
    %c0_i32_0 = arith.constant 0 : i32
    %c0_i32_1 = arith.constant 0 : i32
    return %c0_i32, %c0_i32_0 : i32, i32
  }
  func.func @transform_34(%arg0: i32) -> (i32, i32) {
    %c0_i32 = arith.constant 0 : i32
    %c0_i32_0 = arith.constant 0 : i32
    %c0_i32_1 = arith.constant 0 : i32
    return %c0_i32, %c0_i32_0 : i32, i32
  }
  func.func @transform_35(%arg0: i32) -> (i32, i32) {
    %c0_i32 = arith.constant 0 : i32
    %c0_i32_0 = arith.constant 0 : i32
    %c0_i32_1 = arith.constant 0 : i32
    return %c0_i32, %c0_i32_0 : i32, i32
  }
  func.func @transform_36(%arg0: i32) -> (i32, i32) {
    %c0_i32 = arith.constant 0 : i32
    %c0_i32_0 = arith.constant 0 : i32
    %c0_i32_1 = arith.constant 0 : i32
    return %c0_i32, %c0_i32_0 : i32, i32
  }
  func.func @transform_37(%arg0: i32) -> (i32, i32) {
    %c0_i32 = arith.constant 0 : i32
    %c0_i32_0 = arith.constant 0 : i32
    %c0_i32_1 = arith.constant 0 : i32
    return %c0_i32, %c0_i32_0 : i32, i32
  }
  func.func @transform_38(%arg0: i32) -> (i32, i32) {
    %c0_i32 = arith.constant 0 : i32
    %c0_i32_0 = arith.constant 0 : i32
    %c0_i32_1 = arith.constant 0 : i32
    return %c0_i32, %c0_i32_0 : i32, i32
  }
  func.func @transform_39(%arg0: i32) -> (i32, i32) {
    %c0_i32 = arith.constant 0 : i32
    %c0_i32_0 = arith.constant 0 : i32
    %c0_i32_1 = arith.constant 0 : i32
    return %c0_i32, %c0_i32_0 : i32, i32
  }
  func.func @transform_40(%arg0: i32) -> (i32, i32) {
    %c0_i32 = arith.constant 0 : i32
    %c0_i32_0 = arith.constant 0 : i32
    %c0_i32_1 = arith.constant 0 : i32
    return %c0_i32, %c0_i32_0 : i32, i32
  }
  func.func @transform_41(%arg0: i32) -> (i32, i32) {
    %c0_i32 = arith.constant 0 : i32
    %c0_i32_0 = arith.constant 0 : i32
    %c0_i32_1 = arith.constant 0 : i32
    return %c0_i32, %c0_i32_0 : i32, i32
  }
  func.func @transform_42(%arg0: i32) -> (i32, i32) {
    %c0_i32 = arith.constant 0 : i32
    %c0_i32_0 = arith.constant 0 : i32
    %c0_i32_1 = arith.constant 0 : i32
    return %c0_i32, %c0_i32_0 : i32, i32
  }
}

</mosaic_0001>

<llo_original>
// kernel: forward.1
$region0: #{forward.1}
  #allocation0 [shape = 'u32[]', space=smem, size = 0x4, offset = 0x4, fixed_abs, tag = 'smem constant byte address 0x4 - core index']
  #allocation1 [shape = 'u32[144,128]{1,0:T(1,128)}', space=vmem, size = 0x12000, scoped, tag = 'internal scratch']
  %s0 = inlined_call_operand.smem [shape: u32[43], index: -1, kind: input, shape index: {}]
  %s1 = sld [smem:[%s0]]
  %s2 = scalar_lea.smem %s0, 1
  %s3 = sld [smem:[%s2]]
  %s4 = scalar_lea.smem %s0, 2
  %s5 = sld [smem:[%s4]]
  %s6 = scalar_lea.smem %s0, 3
  %s7 = sld [smem:[%s6]]
  %s8 = scalar_lea.smem %s0, 4
  %s9 = sld [smem:[%s8]]
  %s10 = scalar_lea.smem %s0, 5
  %s11 = sld [smem:[%s10]]
  %s12 = scalar_lea.smem %s0, 6
  %s13 = sld [smem:[%s12]]
  %s14 = scalar_lea.smem %s0, 7
  %s15 = sld [smem:[%s14]]
  %s16 = scalar_lea.smem %s0, 8
  %s17 = sld [smem:[%s16]]
  %s18 = scalar_lea.smem %s0, 9
  %s19 = sld [smem:[%s18]]
  %s20 = scalar_lea.smem %s0, 10
  %s21 = sld [smem:[%s20]]
  %s22 = scalar_lea.smem %s0, 11
  %s23 = sld [smem:[%s22]]
  %s24 = scalar_lea.smem %s0, 12
  %s25 = sld [smem:[%s24]]
  %s26 = scalar_lea.smem %s0, 13
  %s27 = sld [smem:[%s26]]
  %s28 = scalar_lea.smem %s0, 14
  %s29 = sld [smem:[%s28]]
  %s30 = scalar_lea.smem %s0, 15
  %s31 = sld [smem:[%s30]]
  %s32 = scalar_lea.smem %s0, 16
  %s33 = sld [smem:[%s32]]
  %s34 = scalar_lea.smem %s0, 17
  %s35 = sld [smem:[%s34]]
  %s36 = scalar_lea.smem %s0, 18
  %s37 = sld [smem:[%s36]]
  %s38 = scalar_lea.smem %s0, 19
  %s39 = sld [smem:[%s38]]
  %s40 = scalar_lea.smem %s0, 20
  %s41 = sld [smem:[%s40]]
  %s42 = scalar_lea.smem %s0, 21
  %s43 = sld [smem:[%s42]]
  %s44 = scalar_lea.smem %s0, 22
  %s45 = sld [smem:[%s44]]
  %s46 = scalar_lea.smem %s0, 23
  %s47 = sld [smem:[%s46]]
  %s48 = scalar_lea.smem %s0, 24
  %s49 = sld [smem:[%s48]]
  %s50 = scalar_lea.smem %s0, 25
  %s51 = sld [smem:[%s50]]
  %s52 = scalar_lea.smem %s0, 26
  %s53 = sld [smem:[%s52]]
  %s54 = scalar_lea.smem %s0, 27
  %s55 = sld [smem:[%s54]]
  %s56 = scalar_lea.smem %s0, 28
  %s57 = sld [smem:[%s56]]
  %s58 = scalar_lea.smem %s0, 29
  %s59 = sld [smem:[%s58]]
  %s60 = scalar_lea.smem %s0, 30
  %s61 = sld [smem:[%s60]]
  %s62 = scalar_lea.smem %s0, 31
  %s63 = sld [smem:[%s62]]
  %s64 = scalar_lea.smem %s0, 32
  %s65 = sld [smem:[%s64]]
  %s66 = scalar_lea.smem %s0, 33
  %s67 = sld [smem:[%s66]]
  %s68 = scalar_lea.smem %s0, 34
  %s69 = sld [smem:[%s68]]
  %s70 = scalar_lea.smem %s0, 35
  %s71 = sld [smem:[%s70]]
  %s72 = scalar_lea.smem %s0, 36
  %s73 = sld [smem:[%s72]]
  %s74 = scalar_lea.smem %s0, 37
  %s75 = sld [smem:[%s74]]
  %s76 = scalar_lea.smem %s0, 38
  %s77 = sld [smem:[%s76]]
  %s78 = scalar_lea.smem %s0, 39
  %s79 = sld [smem:[%s78]]
  %s80 = scalar_lea.smem %s0, 40
  %s81 = sld [smem:[%s80]]
  %s82 = scalar_lea.smem %s0, 41
  %s83 = sld [smem:[%s82]]
  %s84 = scalar_lea.smem %s0, 42
  %s85 = sld [smem:[%s84]]
  %86 = xla_tuple %s83, %s85
  %s87 = sld [smem:[#allocation0]]
  $region306: #{forward.1} parent=0
    _
  %s89 = ssub.s32 1, %s87
  %s90 = scalar_select 0, %s89, %s87
  $region1: #{forward.1} parent=0
    #allocation2 [shape = 'u8[4096]{0}', space=vmem, size = 0x1000, scoped, tag = 'input window, operand 2, single buffered']
    #allocation3 [shape = 's32[1]{0}', space=sflag, size = 0x4, scoped, tag = 'scoped memory for forward.1']
    #allocation4 [shape = 'u8[512]{0}', space=vmem, size = 0x400, scoped, tag = 'input window, operand 3, single buffered']
    #allocation5 [shape = 's32[1]{0}', space=sflag, size = 0x4, scoped, tag = 'scoped memory for forward.1']
    #allocation6 [shape = 'u8[4096]{0}', space=vmem, size = 0x1000, scoped, tag = 'input window, operand 4, single buffered']
    #allocation7 [shape = 'u8[16384]{0}', space=vmem, size = 0x4000, scoped, tag = 'input window, operand 5, single buffered']
    #allocation8 [shape = 's32[1]{0}', space=sflag, size = 0x4, scoped, tag = 'scoped memory for forward.1']
    #allocation9 [shape = 'u8[512]{0}', space=vmem, size = 0x400, scoped, tag = 'input window, operand 6, single buffered']
    #allocation10 [shape = 'u8[4096]{0}', space=vmem, size = 0x1000, scoped, tag = 'input window, operand 7, single buffered']
    #allocation11 [shape = 's32[1]{0}', space=sflag, size = 0x4, scoped, tag = 'scoped memory for forward.1']
    #allocation12 [shape = 'u8[32768]{0}', space=vmem, size = 0x8000, scoped, tag = 'input window, operand 8, single buffered']
    #allocation13 [shape = 'u8[512]{0}', space=vmem, size = 0x400, scoped, tag = 'input window, operand 9, single buffered']
    #allocation14 [shape = 's32[1]{0}', space=sflag, size = 0x4, scoped, tag = 'scoped memory for forward.1']
    #allocation15 [shape = 'u8[2048]{0}', space=vmem, size = 0x800, scoped, tag = 'input window, operand 10, single buffered']
    #allocation16 [shape = 'u8[1024]{0}', space=vmem, size = 0x400, scoped, tag = 'input window, operand 12, single buffered']
    #allocation17 [shape = 's32[1]{0}', space=sflag, size = 0x4, scoped, tag = 'scoped memory for forward.1']
    #allocation18 [shape = 'u8[65536]{0}', space=vmem, size = 0x10000, scoped, tag = 'input window, operand 13, single buffered']
    #allocation19 [shape = 'u8[512]{0}', space=vmem, size = 0x400, scoped, tag = 'input window, operand 14, single buffered']
    #allocation20 [shape = 's32[1]{0}', space=sflag, size = 0x4, scoped, tag = 'scoped memory for forward.1']
    #allocation21 [shape = 'u8[2048]{0}', space=vmem, size = 0x800, scoped, tag = 'input window, operand 15, single buffered']
    #allocation22 [shape = 'u8[32768]{0}', space=vmem, size = 0x8000, scoped, tag = 'input window, operand 16, single buffered']
    #allocation23 [shape = 's32[1]{0}', space=sflag, size = 0x4, scoped, tag = 'scoped memory for forward.1']
    #allocation24 [shape = 'u8[1536]{0}', space=vmem, size = 0x800, scoped, tag = 'input window, operand 21, single buffered']
    #allocation25 [shape = 'u8[4096]{0}', space=vmem, size = 0x1000, scoped, tag = 'input window, operand 22, single buffered']
    #allocation26 [shape = 's32[1]{0}', space=sflag, size = 0x4, scoped, tag = 'scoped memory for forward.1']
    #allocation27 [shape = 'u8[32768]{0}', space=vmem, size = 0x8000, scoped, tag = 'input window, operand 23, single buffered']
    #allocation28 [shape = 'u8[512]{0}', space=vmem, size = 0x400, scoped, tag = 'input window, operand 24, single buffered']
    #allocation29 [shape = 's32[1]{0}', space=sflag, size = 0x4, scoped, tag = 'scoped memory for forward.1']
    #allocation30 [shape = 'u8[32768]{0}', space=vmem, size = 0x8000, scoped, tag = 'input window, operand 25, single buffered']
    #allocation31 [shape = 'u8[512]{0}', space=vmem, size = 0x400, scoped, tag = 'input window, operand 26, single buffered']
    #allocation32 [shape = 's32[1]{0}', space=sflag, size = 0x4, scoped, tag = 'scoped memory for forward.1']
    #allocation33 [shape = 'u8[32768]{0}', space=vmem, size = 0x8000, scoped, tag = 'input window, operand 28, single buffered']
    #allocation34 [shape = 'u8[512]{0}', space=vmem, size = 0x400, scoped, tag = 'input window, operand 29, single buffered']
    #allocation35 [shape = 's32[1]{0}', space=sflag, size = 0x4, scoped, tag = 'scoped memory for forward.1']
    #allocation36 [shape = 'u8[4096]{0}', space=vmem, size = 0x1000, scoped, tag = 'input window, operand 30, single buffered']
    #allocation37 [shape = 'u8[512]{0}', space=vmem, size = 0x400, scoped, tag = 'input window, operand 32, single buffered']
    #allocation38 [shape = 's32[1]{0}', space=sflag, size = 0x4, scoped, tag = 'scoped memory for forward.1']
    #allocation39 [shape = 'u8[4096]{0}', space=vmem, size = 0x1000, scoped, tag = 'input window, operand 33, single buffered']
    #allocation40 [shape = 'u8[16384]{0}', space=vmem, size = 0x4000, scoped, tag = 'input window, operand 34, single buffered']
    #allocation41 [shape = 's32[1]{0}', space=sflag, size = 0x4, scoped, tag = 'scoped memory for forward.1']
    #allocation42 [shape = 'u8[512]{0}', space=vmem, size = 0x400, scoped, tag = 'input window, operand 35, single buffered']
    #allocation43 [shape = 'u8[4096]{0}', space=vmem, size = 0x1000, scoped, tag = 'input window, operand 36, single buffered']
    #allocation44 [shape = 's32[1]{0}', space=sflag, size = 0x4, scoped, tag = 'scoped memory for forward.1']
    #allocation45 [shape = 'u8[512]{0}', space=vmem, size = 0x400, scoped, tag = 'input window, operand 38, single buffered']
    #allocation46 [shape = 'u8[4096]{0}', space=vmem, size = 0x1000, scoped, tag = 'input window, operand 39, single buffered']
    #allocation47 [shape = 's32[1]{0}', space=sflag, size = 0x4, scoped, tag = 'scoped memory for forward.1']
    #allocation48 [shape = 'u8[4096]{0}', space=vmem, size = 0x1000, scoped, tag = 'input window, operand 40, single buffered']
    %91 = vsyncpa [#allocation3], 0
    %92 = vsyncpa [#allocation5], 0
    %93 = vsyncpa [#allocation8], 0
    %94 = vsyncpa [#allocation11], 0
    %95 = vsyncpa [#allocation14], 0
    %96 = vsyncpa [#allocation17], 0
    %97 = vsyncpa [#allocation20], 0
    %98 = vsyncpa [#allocation23], 0
    %99 = vsyncpa [#allocation26], 0
    %100 = vsyncpa [#allocation29], 0
    %101 = vsyncpa [#allocation32], 0
    %102 = vsyncpa [#allocation35], 0
    %103 = vsyncpa [#allocation38], 0
    %104 = vsyncpa [#allocation41], 0
    %105 = vsyncpa [#allocation44], 0
    %106 = vsyncpa [#allocation47], 0
    // Predicated region
    $region2: #{forward.1} parent=1 // pred_check
      _
    $region3: #{forward.1} parent=1 // pred_check_branch
      %108 = sbr.rel (0) target = $region5
    $region4: #{forward.1} parent=1 // pred_region
      _
    $region5: #{forward.1} parent=1 // pred_fallthru
      _
    // Predicated region
    $region6: #{forward.1} parent=1 // pred_check
      _
    $region7: #{forward.1} parent=1 // pred_check_branch
      %110 = sbr.rel (0) target = $region9
    $region8: #{forward.1} parent=1 // pred_region
      _
    $region9: #{forward.1} parent=1 // pred_fallthru
      _
    // Predicated region
    $region10: #{forward.1} parent=1 // pred_check
      _
    $region11: #{forward.1} parent=1 // pred_check_branch
      %112 = sbr.rel (0) target = $region13
    $region12: #{forward.1} parent=1 // pred_region
      %s114 = ssub.s32 128, 128
      %115 = vsyncadd [#allocation3], %s114
      %s116 = sshll.u32 [#allocation2], 4
      %s117 = int_to_ptr.vmem [resolvable:$true] %s116
      %122 = dma.hbm_to_vmem [thread:$0]  %s5, 128, %s117, [#allocation3], 64, 64, 4
    $region13: #{forward.1} parent=1 // pred_fallthru
      _
    // Predicated region
    $region14: #{forward.1} parent=1 // pred_check
      _
    $region15: #{forward.1} parent=1 // pred_check_branch
      %124 = sbr.rel (0) target = $region17
    $region16: #{forward.1} parent=1 // pred_region
      %s126 = ssub.s32 16, 16
      %127 = vsyncadd [#allocation5], %s126
      %s129 = sshll.u32 [#allocation4], 4
      %s130 = int_to_ptr.vmem [resolvable:$true] %s129
      %132 = dma.hbm_to_vmem [thread:$0]  %s7, 16, %s130, [#allocation5]
    $region17: #{forward.1} parent=1 // pred_fallthru
      _
    // Predicated region
    $region18: #{forward.1} parent=1 // pred_check
      _
    $region19: #{forward.1} parent=1 // pred_check_branch
      %134 = sbr.rel (0) target = $region21
    $region20: #{forward.1} parent=1 // pred_region
      %s136 = ssub.s32 128, 128
      %137 = vsyncadd [#allocation5], %s136
      %s138 = sshll.u32 [#allocation6], 4
      %s139 = int_to_ptr.vmem [resolvable:$true] %s138
      %144 = dma.hbm_to_vmem [thread:$0]  %s9, 128, %s139, [#allocation5], 64, 64, 4
    $region21: #{forward.1} parent=1 // pred_fallthru
      _
    // Predicated region
    $region22: #{forward.1} parent=1 // pred_check
      _
    $region23: #{forward.1} parent=1 // pred_check_branch
      %146 = sbr.rel (0) target = $region25
    $region24: #{forward.1} parent=1 // pred_region
      %s148 = ssub.s32 512, 512
      %149 = vsyncadd [#allocation8], %s148
      %s150 = sshll.u32 [#allocation7], 4
      %s151 = int_to_ptr.vmem [resolvable:$true] %s150
      %156 = dma.hbm_to_vmem [thread:$0]  %s11, 512, %s151, [#allocation8], 64, 64, 4
    $region25: #{forward.1} parent=1 // pred_fallthru
      _
    // Predicated region
    $region26: #{forward.1} parent=1 // pred_check
      _
    $region27: #{forward.1} parent=1 // pred_check_branch
      %158 = sbr.rel (0) target = $region29
    $region28: #{forward.1} parent=1 // pred_region
      %s160 = ssub.s32 16, 16
      %161 = vsyncadd [#allocation8], %s160
      %s163 = sshll.u32 [#allocation9], 4
      %s164 = int_to_ptr.vmem [resolvable:$true] %s163
      %166 = dma.hbm_to_vmem [thread:$0]  %s13, 16, %s164, [#allocation8]
    $region29: #{forward.1} parent=1 // pred_fallthru
      _
    // Predicated region
    $region30: #{forward.1} parent=1 // pred_check
      _
    $region31: #{forward.1} parent=1 // pred_check_branch
      %168 = sbr.rel (0) target = $region33
    $region32: #{forward.1} parent=1 // pred_region
      %s170 = ssub.s32 128, 128
      %171 = vsyncadd [#allocation11], %s170
      %s172 = sshll.u32 [#allocation10], 4
      %s173 = int_to_ptr.vmem [resolvable:$true] %s172
      %178 = dma.hbm_to_vmem [thread:$0]  %s15, 128, %s173, [#allocation11], 64, 64, 4
    $region33: #{forward.1} parent=1 // pred_fallthru
      _
    // Predicated region
    $region34: #{forward.1} parent=1 // pred_check
      _
    $region35: #{forward.1} parent=1 // pred_check_branch
      %180 = sbr.rel (0) target = $region37
    $region36: #{forward.1} parent=1 // pred_region
      %s182 = ssub.s32 1024, 1024
      %183 = vsyncadd [#allocation11], %s182
      %s184 = sshll.u32 [#allocation12], 4
      %s185 = int_to_ptr.vmem [resolvable:$true] %s184
      %190 = dma.hbm_to_vmem [thread:$0]  %s17, 1024, %s185, [#allocation11], 64, 64, 4
    $region37: #{forward.1} parent=1 // pred_fallthru
      _
    // Predicated region
    $region38: #{forward.1} parent=1 // pred_check
      _
    $region39: #{forward.1} parent=1 // pred_check_branch
      %192 = sbr.rel (0) target = $region41
    $region40: #{forward.1} parent=1 // pred_region
      %s194 = ssub.s32 16, 16
      %195 = vsyncadd [#allocation14], %s194
      %s197 = sshll.u32 [#allocation13], 4
      %s198 = int_to_ptr.vmem [resolvable:$true] %s197
      %200 = dma.hbm_to_vmem [thread:$0]  %s19, 16, %s198, [#allocation14]
    $region41: #{forward.1} parent=1 // pred_fallthru
      _
    // Predicated region
    $region42: #{forward.1} parent=1 // pred_check
      _
    $region43: #{forward.1} parent=1 // pred_check_branch
      %202 = sbr.rel (0) target = $region45
    $region44: #{forward.1} parent=1 // pred_region
      %s204 = ssub.s32 64, 64
      %205 = vsyncadd [#allocation14], %s204
      %s207 = sshll.u32 [#allocation15], 4
      %s208 = int_to_ptr.vmem [resolvable:$true] %s207
      %210 = dma.hbm_to_vmem [thread:$0]  %s21, 64, %s208, [#allocation14]
    $region45: #{forward.1} parent=1 // pred_fallthru
      _
    // Predicated region
    $region46: #{forward.1} parent=1 // pred_check
      _
    $region47: #{forward.1} parent=1 // pred_check_branch
      %212 = sbr.rel (0) target = $region49
    $region48: #{forward.1} parent=1 // pred_region
      _
    $region49: #{forward.1} parent=1 // pred_fallthru
      _
    // Predicated region
    $region50: #{forward.1} parent=1 // pred_check
      _
    $region51: #{forward.1} parent=1 // pred_check_branch
      %214 = sbr.rel (0) target = $region53
    $region52: #{forward.1} parent=1 // pred_region
      %s216 = ssub.s32 32, 32
      %217 = vsyncadd [#allocation17], %s216
      %s219 = sshll.u32 [#allocation16], 4
      %s220 = int_to_ptr.vmem [resolvable:$true] %s219
      %222 = dma.hbm_to_vmem [thread:$0]  %s25, 32, %s220, [#allocation17]
    $region53: #{forward.1} parent=1 // pred_fallthru
      _
    // Predicated region
    $region54: #{forward.1} parent=1 // pred_check
      _
    $region55: #{forward.1} parent=1 // pred_check_branch
      %224 = sbr.rel (0) target = $region57
    $region56: #{forward.1} parent=1 // pred_region
      %s226 = ssub.s32 2048, 2048
      %227 = vsyncadd [#allocation17], %s226
      %s228 = sshll.u32 [#allocation18], 4
      %s229 = int_to_ptr.vmem [resolvable:$true] %s228
      %234 = dma.hbm_to_vmem [thread:$0]  %s27, 2048, %s229, [#allocation17], 64, 64, 4
    $region57: #{forward.1} parent=1 // pred_fallthru
      _
    // Predicated region
    $region58: #{forward.1} parent=1 // pred_check
      _
    $region59: #{forward.1} parent=1 // pred_check_branch
      %236 = sbr.rel (0) target = $region61
    $region60: #{forward.1} parent=1 // pred_region
      %s238 = ssub.s32 16, 16
      %239 = vsyncadd [#allocation20], %s238
      %s241 = sshll.u32 [#allocation19], 4
      %s242 = int_to_ptr.vmem [resolvable:$true] %s241
      %244 = dma.hbm_to_vmem [thread:$0]  %s29, 16, %s242, [#allocation20]
    $region61: #{forward.1} parent=1 // pred_fallthru
      _
    // Predicated region
    $region62: #{forward.1} parent=1 // pred_check
      _
    $region63: #{forward.1} parent=1 // pred_check_branch
      %246 = sbr.rel (0) target = $region65
    $region64: #{forward.1} parent=1 // pred_region
      %s248 = ssub.s32 64, 64
      %249 = vsyncadd [#allocation20], %s248
      %s251 = sshll.u32 [#allocation21], 4
      %s252 = int_to_ptr.vmem [resolvable:$true] %s251
      %254 = dma.hbm_to_vmem [thread:$0]  %s31, 64, %s252, [#allocation20]
    $region65: #{forward.1} parent=1 // pred_fallthru
      _
    // Predicated region
    $region66: #{forward.1} parent=1 // pred_check
      _
    $region67: #{forward.1} parent=1 // pred_check_branch
      %256 = sbr.rel (0) target = $region69
    $region68: #{forward.1} parent=1 // pred_region
      %s258 = ssub.s32 1024, 1024
      %259 = vsyncadd [#allocation23], %s258
      %s260 = sshll.u32 [#allocation22], 4
      %s261 = int_to_ptr.vmem [resolvable:$true] %s260
      %266 = dma.hbm_to_vmem [thread:$0]  %s33, 1024, %s261, [#allocation23], 64, 64, 4
    $region69: #{forward.1} parent=1 // pred_fallthru
      _
    // Predicated region
    $region70: #{forward.1} parent=1 // pred_check
      _
    $region71: #{forward.1} parent=1 // pred_check_branch
      %268 = sbr.rel (0) target = $region73
    $region72: #{forward.1} parent=1 // pred_region
      _
    $region73: #{forward.1} parent=1 // pred_fallthru
      _
    // Predicated region
    $region74: #{forward.1} parent=1 // pred_check
      _
    $region75: #{forward.1} parent=1 // pred_check_branch
      %270 = sbr.rel (0) target = $region77
    $region76: #{forward.1} parent=1 // pred_region
      _
    $region77: #{forward.1} parent=1 // pred_fallthru
      _
    // Predicated region
    $region78: #{forward.1} parent=1 // pred_check
      _
    $region79: #{forward.1} parent=1 // pred_check_branch
      %272 = sbr.rel (0) target = $region81
    $region80: #{forward.1} parent=1 // pred_region
      _
    $region81: #{forward.1} parent=1 // pred_fallthru
      _
    // Predicated region
    $region82: #{forward.1} parent=1 // pred_check
      _
    $region83: #{forward.1} parent=1 // pred_check_branch
      %274 = sbr.rel (0) target = $region85
    $region84: #{forward.1} parent=1 // pred_region
      _
    $region85: #{forward.1} parent=1 // pred_fallthru
      _
    // Predicated region
    $region86: #{forward.1} parent=1 // pred_check
      _
    $region87: #{forward.1} parent=1 // pred_check_branch
      %276 = sbr.rel (0) target = $region89
    $region88: #{forward.1} parent=1 // pred_region
      %s278 = ssub.s32 48, 48
      %279 = vsyncadd [#allocation23], %s278
      %s281 = sshll.u32 [#allocation24], 4
      %s282 = int_to_ptr.vmem [resolvable:$true] %s281
      %284 = dma.hbm_to_vmem [thread:$0]  %s43, 48, %s282, [#allocation23]
    $region89: #{forward.1} parent=1 // pred_fallthru
      _
    // Predicated region
    $region90: #{forward.1} parent=1 // pred_check
      _
    $region91: #{forward.1} parent=1 // pred_check_branch
      %286 = sbr.rel (0) target = $region93
    $region92: #{forward.1} parent=1 // pred_region
      %s288 = ssub.s32 128, 128
      %289 = vsyncadd [#allocation26], %s288
      %s290 = sshll.u32 [#allocation25], 4
      %s291 = int_to_ptr.vmem [resolvable:$true] %s290
      %296 = dma.hbm_to_vmem [thread:$0]  %s45, 128, %s291, [#allocation26], 64, 64, 4
    $region93: #{forward.1} parent=1 // pred_fallthru
      _
    // Predicated region
    $region94: #{forward.1} parent=1 // pred_check
      _
    $region95: #{forward.1} parent=1 // pred_check_branch
      %298 = sbr.rel (0) target = $region97
    $region96: #{forward.1} parent=1 // pred_region
      %s300 = ssub.s32 1024, 1024
      %301 = vsyncadd [#allocation26], %s300
      %s302 = sshll.u32 [#allocation27], 4
      %s303 = int_to_ptr.vmem [resolvable:$true] %s302
      %308 = dma.hbm_to_vmem [thread:$0]  %s47, 1024, %s303, [#allocation26], 64, 64, 4
    $region97: #{forward.1} parent=1 // pred_fallthru
      _
    // Predicated region
    $region98: #{forward.1} parent=1 // pred_check
      _
    $region99: #{forward.1} parent=1 // pred_check_branch
      %310 = sbr.rel (0) target = $region101
    $region100: #{forward.1} parent=1 // pred_region
      %s312 = ssub.s32 16, 16
      %313 = vsyncadd [#allocation29], %s312
      %s315 = sshll.u32 [#allocation28], 4
      %s316 = int_to_ptr.vmem [resolvable:$true] %s315
      %318 = dma.hbm_to_vmem [thread:$0]  %s49, 16, %s316, [#allocation29]
    $region101: #{forward.1} parent=1 // pred_fallthru
      _
    // Predicated region
    $region102: #{forward.1} parent=1 // pred_check
      _
    $region103: #{forward.1} parent=1 // pred_check_branch
      %320 = sbr.rel (0) target = $region105
    $region104: #{forward.1} parent=1 // pred_region
      %s322 = ssub.s32 1024, 1024
      %323 = vsyncadd [#allocation29], %s322
      %s324 = sshll.u32 [#allocation30], 4
      %s325 = int_to_ptr.vmem [resolvable:$true] %s324
      %330 = dma.hbm_to_vmem [thread:$0]  %s51, 1024, %s325, [#allocation29], 64, 64, 4
    $region105: #{forward.1} parent=1 // pred_fallthru
      _
    // Predicated region
    $region106: #{forward.1} parent=1 // pred_check
      _
    $region107: #{forward.1} parent=1 // pred_check_branch
      %332 = sbr.rel (0) target = $region109
    $region108: #{forward.1} parent=1 // pred_region
      %s334 = ssub.s32 16, 16
      %335 = vsyncadd [#allocation32], %s334
      %s337 = sshll.u32 [#allocation31], 4
      %s338 = int_to_ptr.vmem [resolvable:$true] %s337
      %340 = dma.hbm_to_vmem [thread:$0]  %s53, 16, %s338, [#allocation32]
    $region109: #{forward.1} parent=1 // pred_fallthru
      _
    // Predicated region
    $region110: #{forward.1} parent=1 // pred_check
      _
    $region111: #{forward.1} parent=1 // pred_check_branch
      %342 = sbr.rel (0) target = $region113
    $region112: #{forward.1} parent=1 // pred_region
      _
    $region113: #{forward.1} parent=1 // pred_fallthru
      _
    // Predicated region
    $region114: #{forward.1} parent=1 // pred_check
      _
    $region115: #{forward.1} parent=1 // pred_check_branch
      %344 = sbr.rel (0) target = $region117
    $region116: #{forward.1} parent=1 // pred_region
      %s346 = ssub.s32 1024, 1024
      %347 = vsyncadd [#allocation32], %s346
      %s348 = sshll.u32 [#allocation33], 4
      %s349 = int_to_ptr.vmem [resolvable:$true] %s348
      %354 = dma.hbm_to_vmem [thread:$0]  %s57, 1024, %s349, [#allocation32], 64, 64, 4
    $region117: #{forward.1} parent=1 // pred_fallthru
      _
    // Predicated region
    $region118: #{forward.1} parent=1 // pred_check
      _
    $region119: #{forward.1} parent=1 // pred_check_branch
      %356 = sbr.rel (0) target = $region121
    $region120: #{forward.1} parent=1 // pred_region
      %s358 = ssub.s32 16, 16
      %359 = vsyncadd [#allocation35], %s358
      %s361 = sshll.u32 [#allocation34], 4
      %s362 = int_to_ptr.vmem [resolvable:$true] %s361
      %364 = dma.hbm_to_vmem [thread:$0]  %s59, 16, %s362, [#allocation35]
    $region121: #{forward.1} parent=1 // pred_fallthru
      _
    // Predicated region
    $region122: #{forward.1} parent=1 // pred_check
      _
    $region123: #{forward.1} parent=1 // pred_check_branch
      %366 = sbr.rel (0) target = $region125
    $region124: #{forward.1} parent=1 // pred_region
      %s368 = ssub.s32 128, 128
      %369 = vsyncadd [#allocation35], %s368
      %s370 = sshll.u32 [#allocation36], 4
      %s371 = int_to_ptr.vmem [resolvable:$true] %s370
      %376 = dma.hbm_to_vmem [thread:$0]  %s61, 128, %s371, [#allocation35], 64, 64, 4
    $region125: #{forward.1} parent=1 // pred_fallthru
      _
    // Predicated region
    $region126: #{forward.1} parent=1 // pred_check
      _
    $region127: #{forward.1} parent=1 // pred_check_branch
      %378 = sbr.rel (0) target = $region129
    $region128: #{forward.1} parent=1 // pred_region
      _
    $region129: #{forward.1} parent=1 // pred_fallthru
      _
    // Predicated region
    $region130: #{forward.1} parent=1 // pred_check
      _
    $region131: #{forward.1} parent=1 // pred_check_branch
      %380 = sbr.rel (0) target = $region133
    $region132: #{forward.1} parent=1 // pred_region
      %s382 = ssub.s32 16, 16
      %383 = vsyncadd [#allocation38], %s382
      %s385 = sshll.u32 [#allocation37], 4
      %s386 = int_to_ptr.vmem [resolvable:$true] %s385
      %388 = dma.hbm_to_vmem [thread:$0]  %s65, 16, %s386, [#allocation38]
    $region133: #{forward.1} parent=1 // pred_fallthru
      _
    // Predicated region
    $region134: #{forward.1} parent=1 // pred_check
      _
    $region135: #{forward.1} parent=1 // pred_check_branch
      %390 = sbr.rel (0) target = $region137
    $region136: #{forward.1} parent=1 // pred_region
      %s392 = ssub.s32 128, 128
      %393 = vsyncadd [#allocation38], %s392
      %s394 = sshll.u32 [#allocation39], 4
      %s395 = int_to_ptr.vmem [resolvable:$true] %s394
      %400 = dma.hbm_to_vmem [thread:$0]  %s67, 128, %s395, [#allocation38], 64, 64, 4
    $region137: #{forward.1} parent=1 // pred_fallthru
      _
    // Predicated region
    $region138: #{forward.1} parent=1 // pred_check
      _
    $region139: #{forward.1} parent=1 // pred_check_branch
      %402 = sbr.rel (0) target = $region141
    $region140: #{forward.1} parent=1 // pred_region
      %s404 = ssub.s32 512, 512
      %405 = vsyncadd [#allocation41], %s404
      %s406 = sshll.u32 [#allocation40], 4
      %s407 = int_to_ptr.vmem [resolvable:$true] %s406
      %412 = dma.hbm_to_vmem [thread:$0]  %s69, 512, %s407, [#allocation41], 64, 64, 4
    $region141: #{forward.1} parent=1 // pred_fallthru
      _
    // Predicated region
    $region142: #{forward.1} parent=1 // pred_check
      _
    $region143: #{forward.1} parent=1 // pred_check_branch
      %414 = sbr.rel (0) target = $region145
    $region144: #{forward.1} parent=1 // pred_region
      %s416 = ssub.s32 16, 16
      %417 = vsyncadd [#allocation41], %s416
      %s419 = sshll.u32 [#allocation42], 4
      %s420 = int_to_ptr.vmem [resolvable:$true] %s419
      %422 = dma.hbm_to_vmem [thread:$0]  %s71, 16, %s420, [#allocation41]
    $region145: #{forward.1} parent=1 // pred_fallthru
      _
    // Predicated region
    $region146: #{forward.1} parent=1 // pred_check
      _
    $region147: #{forward.1} parent=1 // pred_check_branch
      %424 = sbr.rel (0) target = $region149
    $region148: #{forward.1} parent=1 // pred_region
      %s426 = ssub.s32 128, 128
      %427 = vsyncadd [#allocation44], %s426
      %s428 = sshll.u32 [#allocation43], 4
      %s429 = int_to_ptr.vmem [resolvable:$true] %s428
      %434 = dma.hbm_to_vmem [thread:$0]  %s73, 128, %s429, [#allocation44], 64, 64, 4
    $region149: #{forward.1} parent=1 // pred_fallthru
      _
    // Predicated region
    $region150: #{forward.1} parent=1 // pred_check
      _
    $region151: #{forward.1} parent=1 // pred_check_branch
      %436 = sbr.rel (0) target = $region153
    $region152: #{forward.1} parent=1 // pred_region
      _
    $region153: #{forward.1} parent=1 // pred_fallthru
      _
    // Predicated region
    $region154: #{forward.1} parent=1 // pred_check
      _
    $region155: #{forward.1} parent=1 // pred_check_branch
      %438 = sbr.rel (0) target = $region157
    $region156: #{forward.1} parent=1 // pred_region
      %s440 = ssub.s32 16, 16
      %441 = vsyncadd [#allocation44], %s440
      %s443 = sshll.u32 [#allocation45], 4
      %s444 = int_to_ptr.vmem [resolvable:$true] %s443
      %446 = dma.hbm_to_vmem [thread:$0]  %s77, 16, %s444, [#allocation44]
    $region157: #{forward.1} parent=1 // pred_fallthru
      _
    // Predicated region
    $region158: #{forward.1} parent=1 // pred_check
      _
    $region159: #{forward.1} parent=1 // pred_check_branch
      %448 = sbr.rel (0) target = $region161
    $region160: #{forward.1} parent=1 // pred_region
      %s450 = ssub.s32 128, 128
      %451 = vsyncadd [#allocation47], %s450
      %s452 = sshll.u32 [#allocation46], 4
      %s453 = int_to_ptr.vmem [resolvable:$true] %s452
      %458 = dma.hbm_to_vmem [thread:$0]  %s79, 128, %s453, [#allocation47], 64, 64, 4
    $region161: #{forward.1} parent=1 // pred_fallthru
      _
    // Predicated region
    $region162: #{forward.1} parent=1 // pred_check
      _
    $region163: #{forward.1} parent=1 // pred_check_branch
      %460 = sbr.rel (0) target = $region165
    $region164: #{forward.1} parent=1 // pred_region
      %s462 = ssub.s32 128, 128
      %463 = vsyncadd [#allocation47], %s462
      %s464 = sshll.u32 [#allocation48], 4
      %s465 = int_to_ptr.vmem [resolvable:$true] %s464
      %470 = dma.hbm_to_vmem [thread:$0]  %s81, 128, %s465, [#allocation47], 64, 64, 4
    $region165: #{forward.1} parent=1 // pred_fallthru
      _
    // Predicated region
    $region166: #{forward.1} parent=1 // pred_check
      _
    $region167: #{forward.1} parent=1 // pred_check_branch
      %472 = sbr.rel (0) target = $region169
    $region168: #{forward.1} parent=1 // pred_region
      %473 = dma.done [#allocation3], 128
    $region169: #{forward.1} parent=1 // pred_fallthru
      _
    // Predicated region
    $region170: #{forward.1} parent=1 // pred_check
      _
    $region171: #{forward.1} parent=1 // pred_check_branch
      %475 = sbr.rel (0) target = $region173
    $region172: #{forward.1} parent=1 // pred_region
      %476 = dma.done [#allocation5], 16
    $region173: #{forward.1} parent=1 // pred_fallthru
      _
    // Predicated region
    $region174: #{forward.1} parent=1 // pred_check
      _
    $region175: #{forward.1} parent=1 // pred_check_branch
      %478 = sbr.rel (0) target = $region177
    $region176: #{forward.1} parent=1 // pred_region
      %479 = dma.done [#allocation5], 128
    $region177: #{forward.1} parent=1 // pred_fallthru
      _
    // Predicated region
    $region178: #{forward.1} parent=1 // pred_check
      _
    $region179: #{forward.1} parent=1 // pred_check_branch
      %481 = sbr.rel (0) target = $region181
    $region180: #{forward.1} parent=1 // pred_region
      %482 = dma.done [#allocation8], 512
    $region181: #{forward.1} parent=1 // pred_fallthru
      _
    // Predicated region
    $region182: #{forward.1} parent=1 // pred_check
      _
    $region183: #{forward.1} parent=1 // pred_check_branch
      %484 = sbr.rel (0) target = $region185
    $region184: #{forward.1} parent=1 // pred_region
      %485 = dma.done [#allocation8], 16
    $region185: #{forward.1} parent=1 // pred_fallthru
      _
    // Predicated region
    $region186: #{forward.1} parent=1 // pred_check
      _
    $region187: #{forward.1} parent=1 // pred_check_branch
      %487 = sbr.rel (0) target = $region189
    $region188: #{forward.1} parent=1 // pred_region
      %488 = dma.done [#allocation11], 128
    $region189: #{forward.1} parent=1 // pred_fallthru
      _
    // Predicated region
    $region190: #{forward.1} parent=1 // pred_check
      _
    $region191: #{forward.1} parent=1 // pred_check_branch
      %490 = sbr.rel (0) target = $region193
    $region192: #{forward.1} parent=1 // pred_region
      %491 = dma.done [#allocation11], 1024
    $region193: #{forward.1} parent=1 // pred_fallthru
      _
    // Predicated region
    $region194: #{forward.1} parent=1 // pred_check
      _
    $region195: #{forward.1} parent=1 // pred_check_branch
      %493 = sbr.rel (0) target = $region197
    $region196: #{forward.1} parent=1 // pred_region
      %494 = dma.done [#allocation14], 16
    $region197: #{forward.1} parent=1 // pred_fallthru
      _
    // Predicated region
    $region198: #{forward.1} parent=1 // pred_check
      _
    $region199: #{forward.1} parent=1 // pred_check_branch
      %496 = sbr.rel (0) target = $region201
    $region200: #{forward.1} parent=1 // pred_region
      %497 = dma.done [#allocation14], 64
    $region201: #{forward.1} parent=1 // pred_fallthru
      _
    // Predicated region
    $region202: #{forward.1} parent=1 // pred_check
      _
    $region203: #{forward.1} parent=1 // pred_check_branch
      %499 = sbr.rel (0) target = $region205
    $region204: #{forward.1} parent=1 // pred_region
      %500 = dma.done [#allocation17], 32
    $region205: #{forward.1} parent=1 // pred_fallthru
      _
    // Predicated region
    $region206: #{forward.1} parent=1 // pred_check
      _
    $region207: #{forward.1} parent=1 // pred_check_branch
      %502 = sbr.rel (0) target = $region209
    $region208: #{forward.1} parent=1 // pred_region
      %503 = dma.done [#allocation17], 2048
    $region209: #{forward.1} parent=1 // pred_fallthru
      _
    // Predicated region
    $region210: #{forward.1} parent=1 // pred_check
      _
    $region211: #{forward.1} parent=1 // pred_check_branch
      %505 = sbr.rel (0) target = $region213
    $region212: #{forward.1} parent=1 // pred_region
      %506 = dma.done [#allocation20], 16
    $region213: #{forward.1} parent=1 // pred_fallthru
      _
    // Predicated region
    $region214: #{forward.1} parent=1 // pred_check
      _
    $region215: #{forward.1} parent=1 // pred_check_branch
      %508 = sbr.rel (0) target = $region217
    $region216: #{forward.1} parent=1 // pred_region
      %509 = dma.done [#allocation20], 64
    $region217: #{forward.1} parent=1 // pred_fallthru
      _
    // Predicated region
    $region218: #{forward.1} parent=1 // pred_check
      _
    $region219: #{forward.1} parent=1 // pred_check_branch
      %511 = sbr.rel (0) target = $region221
    $region220: #{forward.1} parent=1 // pred_region
      %512 = dma.done [#allocation23], 1024
    $region221: #{forward.1} parent=1 // pred_fallthru
      _
    // Predicated region
    $region222: #{forward.1} parent=1 // pred_check
      _
    $region223: #{forward.1} parent=1 // pred_check_branch
      %514 = sbr.rel (0) target = $region225
    $region224: #{forward.1} parent=1 // pred_region
      %515 = dma.done [#allocation23], 48
    $region225: #{forward.1} parent=1 // pred_fallthru
      _
    // Predicated region
    $region226: #{forward.1} parent=1 // pred_check
      _
    $region227: #{forward.1} parent=1 // pred_check_branch
      %517 = sbr.rel (0) target = $region229
    $region228: #{forward.1} parent=1 // pred_region
      %518 = dma.done [#allocation26], 128
    $region229: #{forward.1} parent=1 // pred_fallthru
      _
    // Predicated region
    $region230: #{forward.1} parent=1 // pred_check
      _
    $region231: #{forward.1} parent=1 // pred_check_branch
      %520 = sbr.rel (0) target = $region233
    $region232: #{forward.1} parent=1 // pred_region
      %521 = dma.done [#allocation26], 1024
    $region233: #{forward.1} parent=1 // pred_fallthru
      _
    // Predicated region
    $region234: #{forward.1} parent=1 // pred_check
      _
    $region235: #{forward.1} parent=1 // pred_check_branch
      %523 = sbr.rel (0) target = $region237
    $region236: #{forward.1} parent=1 // pred_region
      %524 = dma.done [#allocation29], 16
    $region237: #{forward.1} parent=1 // pred_fallthru
      _
    // Predicated region
    $region238: #{forward.1} parent=1 // pred_check
      _
    $region239: #{forward.1} parent=1 // pred_check_branch
      %526 = sbr.rel (0) target = $region241
    $region240: #{forward.1} parent=1 // pred_region
      %527 = dma.done [#allocation29], 1024
    $region241: #{forward.1} parent=1 // pred_fallthru
      _
    // Predicated region
    $region242: #{forward.1} parent=1 // pred_check
      _
    $region243: #{forward.1} parent=1 // pred_check_branch
      %529 = sbr.rel (0) target = $region245
    $region244: #{forward.1} parent=1 // pred_region
      %530 = dma.done [#allocation32], 16
    $region245: #{forward.1} parent=1 // pred_fallthru
      _
    // Predicated region
    $region246: #{forward.1} parent=1 // pred_check
      _
    $region247: #{forward.1} parent=1 // pred_check_branch
      %532 = sbr.rel (0) target = $region249
    $region248: #{forward.1} parent=1 // pred_region
      %533 = dma.done [#allocation32], 1024
    $region249: #{forward.1} parent=1 // pred_fallthru
      _
    // Predicated region
    $region250: #{forward.1} parent=1 // pred_check
      _
    $region251: #{forward.1} parent=1 // pred_check_branch
      %535 = sbr.rel (0) target = $region253
    $region252: #{forward.1} parent=1 // pred_region
      %536 = dma.done [#allocation35], 16
    $region253: #{forward.1} parent=1 // pred_fallthru
      _
    // Predicated region
    $region254: #{forward.1} parent=1 // pred_check
      _
    $region255: #{forward.1} parent=1 // pred_check_branch
      %538 = sbr.rel (0) target = $region257
    $region256: #{forward.1} parent=1 // pred_region
      %539 = dma.done [#allocation35], 128
    $region257: #{forward.1} parent=1 // pred_fallthru
      _
    // Predicated region
    $region258: #{forward.1} parent=1 // pred_check
      _
    $region259: #{forward.1} parent=1 // pred_check_branch
      %541 = sbr.rel (0) target = $region261
    $region260: #{forward.1} parent=1 // pred_region
      %542 = dma.done [#allocation38], 16
    $region261: #{forward.1} parent=1 // pred_fallthru
      _
    // Predicated region
    $region262: #{forward.1} parent=1 // pred_check
      _
    $region263: #{forward.1} parent=1 // pred_check_branch
      %544 = sbr.rel (0) target = $region265
    $region264: #{forward.1} parent=1 // pred_region
      %545 = dma.done [#allocation38], 128
    $region265: #{forward.1} parent=1 // pred_fallthru
      _
    // Predicated region
    $region266: #{forward.1} parent=1 // pred_check
      _
    $region267: #{forward.1} parent=1 // pred_check_branch
      %547 = sbr.rel (0) target = $region269
    $region268: #{forward.1} parent=1 // pred_region
      %548 = dma.done [#allocation41], 512
    $region269: #{forward.1} parent=1 // pred_fallthru
      _
    // Predicated region
    $region270: #{forward.1} parent=1 // pred_check
      _
    $region271: #{forward.1} parent=1 // pred_check_branch
      %550 = sbr.rel (0) target = $region273
    $region272: #{forward.1} parent=1 // pred_region
      %551 = dma.done [#allocation41], 16
    $region273: #{forward.1} parent=1 // pred_fallthru
      _
    // Predicated region
    $region274: #{forward.1} parent=1 // pred_check
      _
    $region275: #{forward.1} parent=1 // pred_check_branch
      %553 = sbr.rel (0) target = $region277
    $region276: #{forward.1} parent=1 // pred_region
      %554 = dma.done [#allocation44], 128
    $region277: #{forward.1} parent=1 // pred_fallthru
      _
    // Predicated region
    $region278: #{forward.1} parent=1 // pred_check
      _
    $region279: #{forward.1} parent=1 // pred_check_branch
      %556 = sbr.rel (0) target = $region281
    $region280: #{forward.1} parent=1 // pred_region
      %557 = dma.done [#allocation44], 16
    $region281: #{forward.1} parent=1 // pred_fallthru
      _
    // Predicated region
    $region282: #{forward.1} parent=1 // pred_check
      _
    $region283: #{forward.1} parent=1 // pred_check_branch
      %559 = sbr.rel (0) target = $region285
    $region284: #{forward.1} parent=1 // pred_region
      %560 = dma.done [#allocation47], 128
    $region285: #{forward.1} parent=1 // pred_fallthru
      _
    // Predicated region
    $region286: #{forward.1} parent=1 // pred_check
      _
    $region287: #{forward.1} parent=1 // pred_check_branch
      %562 = sbr.rel (0) target = $region289
    $region288: #{forward.1} parent=1 // pred_region
      %563 = dma.done [#allocation47], 128
    $region289: #{forward.1} parent=1 // pred_fallthru
      _
    %v565 = vld [vmem:[%s1] sm:$0xff]
    %v566 = vld [vmem:[%s1 + $0x8] sm:$0xff]
    %v567 = vld [vmem:[%s3] sm:$0xf]
    %v568 = vld [vmem:[%s3 + $0x4] sm:$0xf]
    %v569 = vld [vmem:[#allocation2] sm:$0xf]
    %v570 = vld [vmem:[#allocation2 + $0x4] sm:$0xf]
    %v571 = vld [vmem:[#allocation4] sm:$0x1]
    %v572 = vpack.c.bf16 %v566, %v565
    %v575 = vunpack.c.l.b16 %v567
    %v576 = vunpack.c.l.b16 %v568
    %v577 = vpack.c.b16 %v576, %v575
    %vm578 = vcmask 130048
    %v580 = vsel %vm578, %v577, 0
    %582 = vmatprep.subr.bf16.mxu0 0
    %583 = vmatpush1.bf16.msra.mxu0 %v572
    %584 = vmatprep.subr.bf16.mxu0 0
    %585 = vmatpush1.bf16.msra.mxu0 0
    %586 = vmatprep.subr.bf16.mxu0 0
    %587 = vmatpush1.bf16.msra.mxu0 0
    %588 = vmatprep.subr.bf16.mxu0 0
    %589 = vmatpush1.bf16.msra.mxu0 0
    %590 = vmatprep.subr.bf16.mxu0 0
    %591 = vmatpush1.bf16.msra.mxu0 0
    %592 = vmatprep.subr.bf16.mxu0 0
    %593 = vmatpush1.bf16.msra.mxu0 0
    %594 = vmatprep.subr.bf16.mxu0 0
    %595 = vmatpush1.bf16.msra.mxu0 0
    %596 = vmatprep.subr.bf16.mxu0 0
    %597 = vmatpush1.bf16.msra.mxu0 0
    %598 = vmatprep.subr.bf16.mxu0 0
    %599 = vmatpush1.bf16.msra.mxu0 0
    %600 = vmatprep.subr.bf16.mxu0 0
    %601 = vmatpush1.bf16.msra.mxu0 0
    %602 = vmatprep.subr.bf16.mxu0 0
    %603 = vmatpush1.bf16.msra.mxu0 0
    %604 = vmatprep.subr.bf16.mxu0 0
    %605 = vmatpush1.bf16.msra.mxu0 0
    %606 = vmatprep.subr.bf16.mxu0 0
    %607 = vmatpush1.bf16.msra.mxu0 0
    %608 = vmatprep.subr.bf16.mxu0 0
    %609 = vmatpush1.bf16.msra.mxu0 0
    %610 = vmatprep.subr.bf16.mxu0 0
    %611 = vmatpush1.bf16.msra.mxu0 0
    %612 = vmatprep.subr.bf16.mxu0 0
    %613 = vmatpush1.bf16.msra.mxu0 0
    %614 = vmatprep.mubr.bf16.mxu0 0
    %615 = vmatmul.mubr.bf16.gmra.mrb[0].mxu0 %v580
    %v616 = vpop.f32.mrb[0].mxu0
    %v617 = vadd.f32 0.0, %v616
    %v618 = vpop.f32.mrb[0].mxu0
    %v619 = vpop.f32.mrb[0].mxu0
    %v620 = vadd.f32 0.0, %v619
    %v621 = vpop.f32.mrb[0].mxu0
    %622 = vdwg.mxu0
    %v623 = vpack.c.bf16 %v620, %v617
    %v625 = vlaneseq
    %v626 = vshrl.u32 %v625, 7
    %v627 = vsub.s32 0, %v626
    %v628 = vrot.slane %v571, %v627
    %v632 = vunpack.c.l.b16 %v569
    %v633 = vunpack.c.l.b16 %v570
    %v634 = vpack.c.b16 %v633, %v632
    %v637 = vsel %vm578, %v623, 0
    %639 = vmatprep.subr.bf16.mxu0 0
    %640 = vmatpush1.bf16.msra.mxu0 %v634
    %641 = vmatprep.subr.bf16.mxu0 0
    %642 = vmatpush1.bf16.msra.mxu0 0
    %643 = vmatprep.subr.bf16.mxu0 0
    %644 = vmatpush1.bf16.msra.mxu0 0
    %645 = vmatprep.subr.bf16.mxu0 0
    %646 = vmatpush1.bf16.msra.mxu0 0
    %647 = vmatprep.subr.bf16.mxu0 0
    %648 = vmatpush1.bf16.msra.mxu0 0
    %649 = vmatprep.subr.bf16.mxu0 0
    %650 = vmatpush1.bf16.msra.mxu0 0
    %651 = vmatprep.subr.bf16.mxu0 0
    %652 = vmatpush1.bf16.msra.mxu0 0
    %653 = vmatprep.subr.bf16.mxu0 0
    %654 = vmatpush1.bf16.msra.mxu0 0
    %655 = vmatprep.subr.bf16.mxu0 0
    %656 = vmatpush1.bf16.msra.mxu0 0
    %657 = vmatprep.subr.bf16.mxu0 0
    %658 = vmatpush1.bf16.msra.mxu0 0
    %659 = vmatprep.subr.bf16.mxu0 0
    %660 = vmatpush1.bf16.msra.mxu0 0
    %661 = vmatprep.subr.bf16.mxu0 0
    %662 = vmatpush1.bf16.msra.mxu0 0
    %663 = vmatprep.subr.bf16.mxu0 0
    %664 = vmatpush1.bf16.msra.mxu0 0
    %665 = vmatprep.subr.bf16.mxu0 0
    %666 = vmatpush1.bf16.msra.mxu0 0
    %667 = vmatprep.subr.bf16.mxu0 0
    %668 = vmatpush1.bf16.msra.mxu0 0
    %669 = vmatprep.subr.bf16.mxu0 0
    %670 = vmatpush1.bf16.msra.mxu0 0
    %671 = vmatprep.mubr.bf16.mxu0 0
    %672 = vmatmul.mubr.bf16.gmra.mrb[0].mxu0 %v637
    %v673 = vpop.f32.mrb[0].mxu0
    %v674 = vadd.f32 %v628, %v673
    %v675 = vpop.f32.mrb[0].mxu0
    %v676 = vpop.f32.mrb[0].mxu0
    %v677 = vadd.f32 %v628, %v676
    %v678 = vpop.f32.mrb[0].mxu0
    %679 = vdwg.mxu0
    %vm680 = vcmp.gt.f32.partialorder %v674, 0.0
    %vm681 = vcmp.gt.f32.partialorder %v677, 0.0
    %v682 = vmin.f32 %v674, 0.0
    %v683 = vmin.f32 %v677, 0.0
    %v684 = vmul.f32 %v682, 1.442695
    %v685 = vpow.pop %v684
    %v686 = vmul.f32 %v683, 1.442695
    %v687 = vpow.pop %v686
    %v688 = vsub.f32 %v685, 1.0
    %v689 = vsub.f32 %v687, 1.0
    %v690 = vsel %vm680, %v674, %v688
    %v691 = vsel %vm681, %v677, %v689
    %v692 = vld [vmem:[#allocation6] sm:$0xf]
    %v693 = vld [vmem:[#allocation6 + $0x4] sm:$0x3]
    %v694 = vld [vmem:[#allocation7] sm:$0xf]
    %v695 = vld [vmem:[#allocation7 + $0x4] sm:$0xf]
    %v696 = vld [vmem:[#allocation7 + $0x8] sm:$0xf]
    %v697 = vld [vmem:[#allocation7 + $0xc] sm:$0xf]
    %v698 = vld [vmem:[#allocation7 + $0x10] sm:$0xf]
    %v699 = vld [vmem:[#allocation7 + $0x14] sm:$0xf]
    %v700 = vld [vmem:[#allocation7 + $0x18] sm:$0xf]
    %v701 = vld [vmem:[#allocation7 + $0x1c] sm:$0xf]
    %v702 = vld [vmem:[#allocation9] sm:$0x1]
    %v703 = vpack.c.bf16 %v691, %v690
    %v706 = vunpack.c.l.b16 %v692
    %v707 = vunpack.c.l.b16 %v693
    %v708 = vpack.c.b16 %v707, %v706
    %v710 = vsel %vm578, %v708, 0
    %712 = vmatprep.subr.bf16.mxu0 0
    %713 = vmatpush1.bf16.msra.mxu0 %v703
    %714 = vmatprep.subr.bf16.mxu0 0
    %715 = vmatpush1.bf16.msra.mxu0 0
    %716 = vmatprep.subr.bf16.mxu0 0
    %717 = vmatpush1.bf16.msra.mxu0 0
    %718 = vmatprep.subr.bf16.mxu0 0
    %719 = vmatpush1.bf16.msra.mxu0 0
    %720 = vmatprep.subr.bf16.mxu0 0
    %721 = vmatpush1.bf16.msra.mxu0 0
    %722 = vmatprep.subr.bf16.mxu0 0
    %723 = vmatpush1.bf16.msra.mxu0 0
    %724 = vmatprep.subr.bf16.mxu0 0
    %725 = vmatpush1.bf16.msra.mxu0 0
    %726 = vmatprep.subr.bf16.mxu0 0
    %727 = vmatpush1.bf16.msra.mxu0 0
    %728 = vmatprep.subr.bf16.mxu0 0
    %729 = vmatpush1.bf16.msra.mxu0 0
    %730 = vmatprep.subr.bf16.mxu0 0
    %731 = vmatpush1.bf16.msra.mxu0 0
    %732 = vmatprep.subr.bf16.mxu0 0
    %733 = vmatpush1.bf16.msra.mxu0 0
    %734 = vmatprep.subr.bf16.mxu0 0
    %735 = vmatpush1.bf16.msra.mxu0 0
    %736 = vmatprep.subr.bf16.mxu0 0
    %737 = vmatpush1.bf16.msra.mxu0 0
    %738 = vmatprep.subr.bf16.mxu0 0
    %739 = vmatpush1.bf16.msra.mxu0 0
    %740 = vmatprep.subr.bf16.mxu0 0
    %741 = vmatpush1.bf16.msra.mxu0 0
    %742 = vmatprep.subr.bf16.mxu0 0
    %743 = vmatpush1.bf16.msra.mxu0 0
    %744 = vmatprep.mubr.bf16.mxu0 0
    %745 = vmatmul.mubr.bf16.gmra.mrb[0].mxu0 %v710
    %v746 = vpop.f32.mrb[0].mxu0
    %v747 = vadd.f32 0.0, %v746
    %v748 = vpop.f32.mrb[0].mxu0
    %v749 = vpop.f32.mrb[0].mxu0
    %v750 = vadd.f32 0.0, %v749
    %v751 = vpop.f32.mrb[0].mxu0
    %752 = vdwg.mxu0
    %v753 = vpack.c.bf16 %v750, %v747
    %v755 = vlaneseq
    %v756 = vshrl.u32 %v755, 7
    %v757 = vsub.s32 0, %v756
    %v758 = vrot.slane %v702, %v757
    %v768 = vunpack.c.l.b16 %v694
    %v769 = vunpack.c.l.b16 %v695
    %v770 = vunpack.c.l.b16 %v696
    %v771 = vunpack.c.l.b16 %v697
    %v772 = vunpack.c.l.b16 %v698
    %v773 = vunpack.c.l.b16 %v699
    %v774 = vunpack.c.l.b16 %v700
    %v775 = vunpack.c.l.b16 %v701
    %v776 = vpack.c.b16 %v769, %v768
    %v777 = vpack.c.b16 %v771, %v770
    %v778 = vpack.c.b16 %v773, %v772
    %v779 = vpack.c.b16 %v775, %v774
    %vm784 = vcmask 523264
    %v786 = vsel %vm784, %v753, 0
    %788 = vmatprep.subr.bf16.mxu0 0
    %789 = vmatpush1.bf16.msra.mxu0 %v776
    %790 = vmatprep.subr.bf16.mxu0 0
    %791 = vmatpush1.bf16.msra.mxu0 %v777
    %792 = vmatprep.subr.bf16.mxu0 0
    %793 = vmatpush1.bf16.msra.mxu0 %v778
    %794 = vmatprep.subr.bf16.mxu0 0
    %795 = vmatpush1.bf16.msra.mxu0 %v779
    %796 = vmatprep.subr.bf16.mxu0 0
    %797 = vmatpush1.bf16.msra.mxu0 0
    %798 = vmatprep.subr.bf16.mxu0 0
    %799 = vmatpush1.bf16.msra.mxu0 0
    %800 = vmatprep.subr.bf16.mxu0 0
    %801 = vmatpush1.bf16.msra.mxu0 0
    %802 = vmatprep.subr.bf16.mxu0 0
    %803 = vmatpush1.bf16.msra.mxu0 0
    %804 = vmatprep.subr.bf16.mxu0 0
    %805 = vmatpush1.bf16.msra.mxu0 0
    %806 = vmatprep.subr.bf16.mxu0 0
    %807 = vmatpush1.bf16.msra.mxu0 0
    %808 = vmatprep.subr.bf16.mxu0 0
    %809 = vmatpush1.bf16.msra.mxu0 0
    %810 = vmatprep.subr.bf16.mxu0 0
    %811 = vmatpush1.bf16.msra.mxu0 0
    %812 = vmatprep.subr.bf16.mxu0 0
    %813 = vmatpush1.bf16.msra.mxu0 0
    %814 = vmatprep.subr.bf16.mxu0 0
    %815 = vmatpush1.bf16.msra.mxu0 0
    %816 = vmatprep.subr.bf16.mxu0 0
    %817 = vmatpush1.bf16.msra.mxu0 0
    %818 = vmatprep.subr.bf16.mxu0 0
    %819 = vmatpush1.bf16.msra.mxu0 0
    %820 = vmatprep.mubr.bf16.mxu0 0
    %821 = vmatmul.mubr.bf16.gmra.mrb[0].mxu0 %v786
    %v822 = vpop.f32.mrb[0].mxu0
    %v823 = vadd.f32 %v758, %v822
    %v824 = vpop.f32.mrb[0].mxu0
    %v825 = vpop.f32.mrb[0].mxu0
    %v826 = vadd.f32 %v758, %v825
    %v827 = vpop.f32.mrb[0].mxu0
    %828 = vdwg.mxu0
    %vm829 = vcmp.gt.f32.partialorder %v823, 0.0
    %vm830 = vcmp.gt.f32.partialorder %v826, 0.0
    %v831 = vmin.f32 %v823, 0.0
    %v832 = vmin.f32 %v826, 0.0
    %v833 = vmul.f32 %v831, 1.442695
    %v834 = vpow.pop %v833
    %v835 = vmul.f32 %v832, 1.442695
    %v836 = vpow.pop %v835
    %v837 = vsub.f32 %v834, 1.0
    %v838 = vsub.f32 %v836, 1.0
    %v839 = vsel %vm829, %v823, %v837
    %v840 = vsel %vm830, %v826, %v838
    %v841 = vld [vmem:[#allocation10] sm:$0xf]
    %v842 = vld [vmem:[#allocation10 + $0x4] sm:$0x1]
    %v843 = vld [vmem:[#allocation12] sm:$0xf]
    %v844 = vld [vmem:[#allocation12 + $0x4] sm:$0xf]
    %v845 = vld [vmem:[#allocation12 + $0x8] sm:$0xf]
    %v846 = vld [vmem:[#allocation12 + $0xc] sm:$0xf]
    %v847 = vld [vmem:[#allocation12 + $0x10] sm:$0xf]
    %v848 = vld [vmem:[#allocation12 + $0x14] sm:$0xf]
    %v849 = vld [vmem:[#allocation12 + $0x18] sm:$0xf]
    %v850 = vld [vmem:[#allocation12 + $0x1c] sm:$0xf]
    %v851 = vld [vmem:[#allocation12 + $0x20] sm:$0xf]
    %v852 = vld [vmem:[#allocation12 + $0x24] sm:$0xf]
    %v853 = vld [vmem:[#allocation12 + $0x28] sm:$0xf]
    %v854 = vld [vmem:[#allocation12 + $0x2c] sm:$0xf]
    %v855 = vld [vmem:[#allocation12 + $0x30] sm:$0xf]
    %v856 = vld [vmem:[#allocation12 + $0x34] sm:$0xf]
    %v857 = vld [vmem:[#allocation12 + $0x38] sm:$0xf]
    %v858 = vld [vmem:[#allocation12 + $0x3c] sm:$0xf]
    %v859 = vld [vmem:[#allocation13] sm:$0x1]
    %v860 = vpack.c.bf16 %v840, %v839
    %v863 = vunpack.c.l.b16 %v841
    %v864 = vunpack.c.l.b16 %v842
    %v865 = vpack.c.b16 %v864, %v863
    %vm866 = vcmask 97280
    %v868 = vsel %vm866, %v865, 0
    %vm870 = vcmask 1045504
    %v872 = vsel %vm870, %v860, 0
    %874 = vmatprep.subr.bf16.mxu0 0
    %875 = vmatpush1.bf16.msra.mxu0 %v872
    %876 = vmatprep.subr.bf16.mxu0 0
    %877 = vmatpush1.bf16.msra.mxu0 0
    %878 = vmatprep.subr.bf16.mxu0 0
    %879 = vmatpush1.bf16.msra.mxu0 0
    %880 = vmatprep.subr.bf16.mxu0 0
    %881 = vmatpush1.bf16.msra.mxu0 0
    %882 = vmatprep.subr.bf16.mxu0 0
    %883 = vmatpush1.bf16.msra.mxu0 0
    %884 = vmatprep.subr.bf16.mxu0 0
    %885 = vmatpush1.bf16.msra.mxu0 0
    %886 = vmatprep.subr.bf16.mxu0 0
    %887 = vmatpush1.bf16.msra.mxu0 0
    %888 = vmatprep.subr.bf16.mxu0 0
    %889 = vmatpush1.bf16.msra.mxu0 0
    %890 = vmatprep.subr.bf16.mxu0 0
    %891 = vmatpush1.bf16.msra.mxu0 0
    %892 = vmatprep.subr.bf16.mxu0 0
    %893 = vmatpush1.bf16.msra.mxu0 0
    %894 = vmatprep.subr.bf16.mxu0 0
    %895 = vmatpush1.bf16.msra.mxu0 0
    %896 = vmatprep.subr.bf16.mxu0 0
    %897 = vmatpush1.bf16.msra.mxu0 0
    %898 = vmatprep.subr.bf16.mxu0 0
    %899 = vmatpush1.bf16.msra.mxu0 0
    %900 = vmatprep.subr.bf16.mxu0 0
    %901 = vmatpush1.bf16.msra.mxu0 0
    %902 = vmatprep.subr.bf16.mxu0 0
    %903 = vmatpush1.bf16.msra.mxu0 0
    %904 = vmatprep.subr.bf16.mxu0 0
    %905 = vmatpush1.bf16.msra.mxu0 0
    %906 = vmatprep.mubr.bf16.mxu0 0
    %907 = vmatmul.mubr.bf16.gmra.mrb[0].mxu0 %v868
    %v908 = vpop.f32.mrb[0].mxu0
    %v909 = vadd.f32 0.0, %v908
    %v910 = vpop.f32.mrb[0].mxu0
    %v911 = vpop.f32.mrb[0].mxu0
    %v912 = vadd.f32 0.0, %v911
    %v913 = vpop.f32.mrb[0].mxu0
    %914 = vdwg.mxu0
    %v915 = vpack.c.bf16 %v912, %v909
    %v917 = vlaneseq
    %v918 = vshrl.u32 %v917, 7
    %v919 = vsub.s32 0, %v918
    %v920 = vrot.slane %v859, %v919
    %v938 = vunpack.c.l.b16 %v843
    %v939 = vunpack.c.l.b16 %v844
    %v940 = vunpack.c.l.b16 %v845
    %v941 = vunpack.c.l.b16 %v846
    %v942 = vunpack.c.l.b16 %v847
    %v943 = vunpack.c.l.b16 %v848
    %v944 = vunpack.c.l.b16 %v849
    %v945 = vunpack.c.l.b16 %v850
    %v946 = vunpack.c.l.b16 %v851
    %v947 = vunpack.c.l.b16 %v852
    %v948 = vunpack.c.l.b16 %v853
    %v949 = vunpack.c.l.b16 %v854
    %v950 = vunpack.c.l.b16 %v855
    %v951 = vunpack.c.l.b16 %v856
    %v952 = vunpack.c.l.b16 %v857
    %v953 = vunpack.c.l.b16 %v858
    %v954 = vpack.c.b16 %v939, %v938
    %v955 = vpack.c.b16 %v941, %v940
    %v956 = vpack.c.b16 %v943, %v942
    %v957 = vpack.c.b16 %v945, %v944
    %v958 = vpack.c.b16 %v947, %v946
    %v959 = vpack.c.b16 %v949, %v948
    %v960 = vpack.c.b16 %v951, %v950
    %v961 = vpack.c.b16 %v953, %v952
    %970 = vmatprep.subr.bf16.mxu0 0
    %971 = vmatpush1.bf16.msra.mxu0 %v954
    %972 = vmatprep.subr.bf16.mxu0 0
    %973 = vmatpush1.bf16.msra.mxu0 %v955
    %974 = vmatprep.subr.bf16.mxu0 0
    %975 = vmatpush1.bf16.msra.mxu0 %v956
    %976 = vmatprep.subr.bf16.mxu0 0
    %977 = vmatpush1.bf16.msra.mxu0 %v957
    %978 = vmatprep.subr.bf16.mxu0 0
    %979 = vmatpush1.bf16.msra.mxu0 %v958
    %980 = vmatprep.subr.bf16.mxu0 0
    %981 = vmatpush1.bf16.msra.mxu0 %v959
    %982 = vmatprep.subr.bf16.mxu0 0
    %983 = vmatpush1.bf16.msra.mxu0 %v960
    %984 = vmatprep.subr.bf16.mxu0 0
    %985 = vmatpush1.bf16.msra.mxu0 %v961
    %986 = vmatprep.subr.bf16.mxu0 0
    %987 = vmatpush1.bf16.msra.mxu0 0
    %988 = vmatprep.subr.bf16.mxu0 0
    %989 = vmatpush1.bf16.msra.mxu0 0
    %990 = vmatprep.subr.bf16.mxu0 0
    %991 = vmatpush1.bf16.msra.mxu0 0
    %992 = vmatprep.subr.bf16.mxu0 0
    %993 = vmatpush1.bf16.msra.mxu0 0
    %994 = vmatprep.subr.bf16.mxu0 0
    %995 = vmatpush1.bf16.msra.mxu0 0
    %996 = vmatprep.subr.bf16.mxu0 0
    %997 = vmatpush1.bf16.msra.mxu0 0
    %998 = vmatprep.subr.bf16.mxu0 0
    %999 = vmatpush1.bf16.msra.mxu0 0
    %1000 = vmatprep.subr.bf16.mxu0 0
    %1001 = vmatpush1.bf16.msra.mxu0 0
    %1002 = vmatprep.mubr.bf16.mxu0 0
    %1003 = vmatmul.mubr.bf16.gmra.mrb[0].mxu0 %v915
    %v1004 = vpop.f32.mrb[0].mxu0
    %v1005 = vadd.f32 %v920, %v1004
    %v1006 = vpop.f32.mrb[0].mxu0
    %v1007 = vpop.f32.mrb[0].mxu0
    %v1008 = vadd.f32 %v920, %v1007
    %v1009 = vpop.f32.mrb[0].mxu0
    %1010 = vdwg.mxu0
    %vm1011 = vcmp.gt.f32.partialorder %v1005, 0.0
    %vm1012 = vcmp.gt.f32.partialorder %v1008, 0.0
    %v1013 = vmin.f32 %v1005, 0.0
    %v1014 = vmin.f32 %v1008, 0.0
    %v1015 = vmul.f32 %v1013, 1.442695
    %v1016 = vpow.pop %v1015
    %v1017 = vmul.f32 %v1014, 1.442695
    %v1018 = vpow.pop %v1017
    %v1019 = vsub.f32 %v1016, 1.0
    %v1020 = vsub.f32 %v1018, 1.0
    %v1021 = vsel %vm1011, %v1005, %v1019
    %v1022 = vsel %vm1012, %v1008, %v1020
    %v1023 = vld [vmem:[#allocation15] sm:$0xf]
    %v1024 = vpack.c.bf16 %v1022, %v1021
    %vm1025 = vcmask 80896
    %v1027 = vsel %vm1025, %v1023, 0
    %vm1029 = vcmask 1044480
    %v1031 = vsel %vm1029, %v1024, 0
    %1033 = vmatprep.subr.bf16.mxu0 0
    %1034 = vmatpush1.bf16.msra.mxu0 %v1031
    %1035 = vmatprep.subr.bf16.mxu0 0
    %1036 = vmatpush1.bf16.msra.mxu0 0
    %1037 = vmatprep.subr.bf16.mxu0 0
    %1038 = vmatpush1.bf16.msra.mxu0 0
    %1039 = vmatprep.subr.bf16.mxu0 0
    %1040 = vmatpush1.bf16.msra.mxu0 0
    %1041 = vmatprep.subr.bf16.mxu0 0
    %1042 = vmatpush1.bf16.msra.mxu0 0
    %1043 = vmatprep.subr.bf16.mxu0 0
    %1044 = vmatpush1.bf16.msra.mxu0 0
    %1045 = vmatprep.subr.bf16.mxu0 0
    %1046 = vmatpush1.bf16.msra.mxu0 0
    %1047 = vmatprep.subr.bf16.mxu0 0
    %1048 = vmatpush1.bf16.msra.mxu0 0
    %1049 = vmatprep.subr.bf16.mxu0 0
    %1050 = vmatpush1.bf16.msra.mxu0 0
    %1051 = vmatprep.subr.bf16.mxu0 0
    %1052 = vmatpush1.bf16.msra.mxu0 0
    %1053 = vmatprep.subr.bf16.mxu0 0
    %1054 = vmatpush1.bf16.msra.mxu0 0
    %1055 = vmatprep.subr.bf16.mxu0 0
    %1056 = vmatpush1.bf16.msra.mxu0 0
    %1057 = vmatprep.subr.bf16.mxu0 0
    %1058 = vmatpush1.bf16.msra.mxu0 0
    %1059 = vmatprep.subr.bf16.mxu0 0
    %1060 = vmatpush1.bf16.msra.mxu0 0
    %1061 = vmatprep.subr.bf16.mxu0 0
    %1062 = vmatpush1.bf16.msra.mxu0 0
    %1063 = vmatprep.subr.bf16.mxu0 0
    %1064 = vmatpush1.bf16.msra.mxu0 0
    %1065 = vmatprep.mubr.bf16.mxu0 0
    %1066 = vmatmul.mubr.bf16.gmra.mrb[0].mxu0 %v1027
    %v1067 = vpop.f32.mrb[0].mxu0
    %v1068 = vadd.f32 0.0, %v1067
    %v1069 = vpop.f32.mrb[0].mxu0
    %v1070 = vpop.f32.mrb[0].mxu0
    %v1071 = vpop.f32.mrb[0].mxu0
    %1072 = vdwg.mxu0
    %v1073 = vld [vmem:[%s23] sm:$0xff]
    %v1074 = vld [vmem:[%s23 + $0x8] sm:$0xff]
    %v1075 = vld [vmem:[%s23 + $0x10] sm:$0xff]
    %v1076 = vld [vmem:[%s23 + $0x18] sm:$0xff]
    %v1077 = vld [vmem:[%s23 + $0x20] sm:$0xff]
    %v1078 = vld [vmem:[%s23 + $0x28] sm:$0xff]
    %v1079 = vld [vmem:[%s23 + $0x30] sm:$0xff]
    %v1080 = vld [vmem:[%s23 + $0x38] sm:$0xff]
    %v1081 = vld [vmem:[%s23 + $0x40] sm:$0xff]
    %v1082 = vld [vmem:[%s23 + $0x48] sm:$0xff]
    %v1083 = vld [vmem:[%s23 + $0x50] sm:$0xff]
    %v1084 = vld [vmem:[%s23 + $0x58] sm:$0xff]
    %v1085 = vld [vmem:[%s23 + $0x60] sm:$0xff]
    %v1086 = vld [vmem:[%s23 + $0x68] sm:$0xff]
    %v1087 = vld [vmem:[%s23 + $0x70] sm:$0xff]
    %v1088 = vld [vmem:[%s23 + $0x78] sm:$0xff]
    %v1089 = vpack.c.bf16 %v1068, %v1068
    %v1090 = vld [vmem:[#allocation16] sm:$0x3]
    %v1092 = vlaneseq
    %v1093 = vshrl.u32 %v1092, 7
    %v1094 = vsub.s32 0, %v1093
    %v1095 = vrot.slane %v1090, %v1094
    %v1096 = vlaneseq
    %v1097 = vshrl.u32 %v1096, 7
    %v1098 = vsub.s32 1, %v1097
    %v1099 = vrot.slane %v1090, %v1098
    %v1118 = vunpack.c.l.b16 %v1073
    %v1119 = vunpack.c.h.b16 %v1073
    %v1120 = vunpack.c.l.b16 %v1074
    %v1121 = vunpack.c.h.b16 %v1074
    %v1122 = vunpack.c.l.b16 %v1075
    %v1123 = vunpack.c.h.b16 %v1075
    %v1124 = vunpack.c.l.b16 %v1076
    %v1125 = vunpack.c.h.b16 %v1076
    %v1126 = vunpack.c.l.b16 %v1077
    %v1127 = vunpack.c.h.b16 %v1077
    %v1128 = vunpack.c.l.b16 %v1078
    %v1129 = vunpack.c.h.b16 %v1078
    %v1130 = vunpack.c.l.b16 %v1079
    %v1131 = vunpack.c.h.b16 %v1079
    %v1132 = vunpack.c.l.b16 %v1080
    %v1133 = vunpack.c.h.b16 %v1080
    %v1134 = vunpack.c.l.b16 %v1081
    %v1135 = vunpack.c.h.b16 %v1081
    %v1136 = vunpack.c.l.b16 %v1082
    %v1137 = vunpack.c.h.b16 %v1082
    %v1138 = vunpack.c.l.b16 %v1083
    %v1139 = vunpack.c.h.b16 %v1083
    %v1140 = vunpack.c.l.b16 %v1084
    %v1141 = vunpack.c.h.b16 %v1084
    %v1142 = vunpack.c.l.b16 %v1085
    %v1143 = vunpack.c.h.b16 %v1085
    %v1144 = vunpack.c.l.b16 %v1086
    %v1145 = vunpack.c.h.b16 %v1086
    %v1146 = vunpack.c.l.b16 %v1087
    %v1147 = vunpack.c.h.b16 %v1087
    %v1148 = vunpack.c.l.b16 %v1088
    %v1149 = vunpack.c.h.b16 %v1088
    %v1150 = vpack.c.b16 %v1120, %v1118
    %v1151 = vpack.c.b16 %v1121, %v1119
    %v1152 = vpack.c.b16 %v1124, %v1122
    %v1153 = vpack.c.b16 %v1125, %v1123
    %v1154 = vpack.c.b16 %v1128, %v1126
    %v1155 = vpack.c.b16 %v1129, %v1127
    %v1156 = vpack.c.b16 %v1132, %v1130
    %v1157 = vpack.c.b16 %v1133, %v1131
    %v1158 = vpack.c.b16 %v1136, %v1134
    %v1159 = vpack.c.b16 %v1137, %v1135
    %v1160 = vpack.c.b16 %v1140, %v1138
    %v1161 = vpack.c.b16 %v1141, %v1139
    %v1162 = vpack.c.b16 %v1144, %v1142
    %v1163 = vpack.c.b16 %v1145, %v1143
    %v1164 = vpack.c.b16 %v1148, %v1146
    %v1165 = vpack.c.b16 %v1149, %v1147
    %1182 = vmatprep.subr.bf16.mxu0 %v1151
    %1183 = vmatpush1.bf16.msra.mxu0 %v1150
    %1184 = vmatprep.subr.bf16.mxu0 %v1153
    %1185 = vmatpush1.bf16.msra.mxu0 %v1152
    %1186 = vmatprep.subr.bf16.mxu0 %v1155
    %1187 = vmatpush1.bf16.msra.mxu0 %v1154
    %1188 = vmatprep.subr.bf16.mxu0 %v1157
    %1189 = vmatpush1.bf16.msra.mxu0 %v1156
    %1190 = vmatprep.subr.bf16.mxu0 %v1159
    %1191 = vmatpush1.bf16.msra.mxu0 %v1158
    %1192 = vmatprep.subr.bf16.mxu0 %v1161
    %1193 = vmatpush1.bf16.msra.mxu0 %v1160
    %1194 = vmatprep.subr.bf16.mxu0 %v1163
    %1195 = vmatpush1.bf16.msra.mxu0 %v1162
    %1196 = vmatprep.subr.bf16.mxu0 %v1165
    %1197 = vmatpush1.bf16.msra.mxu0 %v1164
    %1198 = vmatprep.subr.bf16.mxu0 0
    %1199 = vmatpush1.bf16.msra.mxu0 0
    %1200 = vmatprep.subr.bf16.mxu0 0
    %1201 = vmatpush1.bf16.msra.mxu0 0
    %1202 = vmatprep.subr.bf16.mxu0 0
    %1203 = vmatpush1.bf16.msra.mxu0 0
    %1204 = vmatprep.subr.bf16.mxu0 0
    %1205 = vmatpush1.bf16.msra.mxu0 0
    %1206 = vmatprep.subr.bf16.mxu0 0
    %1207 = vmatpush1.bf16.msra.mxu0 0
    %1208 = vmatprep.subr.bf16.mxu0 0
    %1209 = vmatpush1.bf16.msra.mxu0 0
    %1210 = vmatprep.subr.bf16.mxu0 0
    %1211 = vmatpush1.bf16.msra.mxu0 0
    %1212 = vmatprep.subr.bf16.mxu0 0
    %1213 = vmatpush1.bf16.msra.mxu0 0
    %1214 = vmatprep.mubr.bf16.mxu0 0
    %1215 = vmatmul.mubr.bf16.gmra.mrb[0].mxu0 %v1089
    %v1216 = vpop.f32.mrb[0].mxu0
    %v1217 = vadd.f32 %v1095, %v1216
    %v1218 = vpop.f32.mrb[0].mxu0
    %v1219 = vadd.f32 %v1099, %v1218
    %v1220 = vpop.f32.mrb[0].mxu0
    %v1221 = vpop.f32.mrb[0].mxu0
    %1222 = vdwg.mxu0
    %vm1223 = vcmp.gt.f32.partialorder %v1217, 0.0
    %vm1224 = vcmp.gt.f32.partialorder %v1219, 0.0
    %v1225 = vmin.f32 %v1217, 0.0
    %v1226 = vmin.f32 %v1219, 0.0
    %v1227 = vmul.f32 %v1225, 1.442695
    %v1228 = vpow.pop %v1227
    %v1229 = vmul.f32 %v1226, 1.442695
    %v1230 = vpow.pop %v1229
    %v1231 = vsub.f32 %v1228, 1.0
    %v1232 = vsub.f32 %v1230, 1.0
    %v1233 = vsel %vm1223, %v1217, %v1231
    %v1234 = vsel %vm1224, %v1219, %v1232
    %v1235 = vld [vmem:[#allocation18] sm:$0xf]
    %v1236 = vld [vmem:[#allocation18 + $0x4] sm:$0xf]
    %v1237 = vld [vmem:[#allocation18 + $0x8] sm:$0xf]
    %v1238 = vld [vmem:[#allocation18 + $0xc] sm:$0xf]
    %v1239 = vld [vmem:[#allocation18 + $0x10] sm:$0xf]
    %v1240 = vld [vmem:[#allocation18 + $0x14] sm:$0xf]
    %v1241 = vld [vmem:[#allocation18 + $0x18] sm:$0xf]
    %v1242 = vld [vmem:[#allocation18 + $0x1c] sm:$0xf]
    %v1243 = vld [vmem:[#allocation18 + $0x20] sm:$0xf]
    %v1244 = vld [vmem:[#allocation18 + $0x24] sm:$0xf]
    %v1245 = vld [vmem:[#allocation18 + $0x28] sm:$0xf]
    %v1246 = vld [vmem:[#allocation18 + $0x2c] sm:$0xf]
    %v1247 = vld [vmem:[#allocation18 + $0x30] sm:$0xf]
    %v1248 = vld [vmem:[#allocation18 + $0x34] sm:$0xf]
    %v1249 = vld [vmem:[#allocation18 + $0x38] sm:$0xf]
    %v1250 = vld [vmem:[#allocation18 + $0x3c] sm:$0xf]
    %v1251 = vld [vmem:[#allocation18 + $0x40] sm:$0xf]
    %v1252 = vld [vmem:[#allocation18 + $0x44] sm:$0xf]
    %v1253 = vld [vmem:[#allocation18 + $0x48] sm:$0xf]
    %v1254 = vld [vmem:[#allocation18 + $0x4c] sm:$0xf]
    %v1255 = vld [vmem:[#allocation18 + $0x50] sm:$0xf]
    %v1256 = vld [vmem:[#allocation18 + $0x54] sm:$0xf]
    %v1257 = vld [vmem:[#allocation18 + $0x58] sm:$0xf]
    %v1258 = vld [vmem:[#allocation18 + $0x5c] sm:$0xf]
    %v1259 = vld [vmem:[#allocation18 + $0x60] sm:$0xf]
    %v1260 = vld [vmem:[#allocation18 + $0x64] sm:$0xf]
    %v1261 = vld [vmem:[#allocation18 + $0x68] sm:$0xf]
    %v1262 = vld [vmem:[#allocation18 + $0x6c] sm:$0xf]
    %v1263 = vld [vmem:[#allocation18 + $0x70] sm:$0xf]
    %v1264 = vld [vmem:[#allocation18 + $0x74] sm:$0xf]
    %v1265 = vld [vmem:[#allocation18 + $0x78] sm:$0xf]
    %v1266 = vld [vmem:[#allocation18 + $0x7c] sm:$0xf]
    %v1267 = vpack.c.bf16 %v1233, %v1233
    %v1268 = vpack.c.bf16 %v1234, %v1234
    %v1269 = vld [vmem:[#allocation19] sm:$0x1]
    %v1271 = vlaneseq
    %v1272 = vshrl.u32 %v1271, 7
    %v1273 = vsub.s32 0, %v1272
    %v1274 = vrot.slane %v1269, %v1273
    %v1308 = vunpack.c.l.b16 %v1235
    %v1309 = vunpack.c.l.b16 %v1236
    %v1310 = vunpack.c.l.b16 %v1237
    %v1311 = vunpack.c.l.b16 %v1238
    %v1312 = vunpack.c.l.b16 %v1239
    %v1313 = vunpack.c.l.b16 %v1240
    %v1314 = vunpack.c.l.b16 %v1241
    %v1315 = vunpack.c.l.b16 %v1242
    %v1316 = vunpack.c.l.b16 %v1243
    %v1317 = vunpack.c.l.b16 %v1244
    %v1318 = vunpack.c.l.b16 %v1245
    %v1319 = vunpack.c.l.b16 %v1246
    %v1320 = vunpack.c.l.b16 %v1247
    %v1321 = vunpack.c.l.b16 %v1248
    %v1322 = vunpack.c.l.b16 %v1249
    %v1323 = vunpack.c.l.b16 %v1250
    %v1324 = vunpack.c.l.b16 %v1251
    %v1325 = vunpack.c.l.b16 %v1252
    %v1326 = vunpack.c.l.b16 %v1253
    %v1327 = vunpack.c.l.b16 %v1254
    %v1328 = vunpack.c.l.b16 %v1255
    %v1329 = vunpack.c.l.b16 %v1256
    %v1330 = vunpack.c.l.b16 %v1257
    %v1331 = vunpack.c.l.b16 %v1258
    %v1332 = vunpack.c.l.b16 %v1259
    %v1333 = vunpack.c.l.b16 %v1260
    %v1334 = vunpack.c.l.b16 %v1261
    %v1335 = vunpack.c.l.b16 %v1262
    %v1336 = vunpack.c.l.b16 %v1263
    %v1337 = vunpack.c.l.b16 %v1264
    %v1338 = vunpack.c.l.b16 %v1265
    %v1339 = vunpack.c.l.b16 %v1266
    %v1340 = vpack.c.b16 %v1309, %v1308
    %v1341 = vpack.c.b16 %v1311, %v1310
    %v1342 = vpack.c.b16 %v1313, %v1312
    %v1343 = vpack.c.b16 %v1315, %v1314
    %v1344 = vpack.c.b16 %v1317, %v1316
    %v1345 = vpack.c.b16 %v1319, %v1318
    %v1346 = vpack.c.b16 %v1321, %v1320
    %v1347 = vpack.c.b16 %v1323, %v1322
    %v1348 = vpack.c.b16 %v1325, %v1324
    %v1349 = vpack.c.b16 %v1327, %v1326
    %v1350 = vpack.c.b16 %v1329, %v1328
    %v1351 = vpack.c.b16 %v1331, %v1330
    %v1352 = vpack.c.b16 %v1333, %v1332
    %v1353 = vpack.c.b16 %v1335, %v1334
    %v1354 = vpack.c.b16 %v1337, %v1336
    %v1355 = vpack.c.b16 %v1339, %v1338
    %1372 = vmatprep.subr.bf16.mxu0 0
    %1373 = vmatpush1.bf16.msra.mxu0 %v1340
    %1374 = vmatprep.subr.bf16.mxu0 0
    %1375 = vmatpush1.bf16.msra.mxu0 %v1341
    %1376 = vmatprep.subr.bf16.mxu0 0
    %1377 = vmatpush1.bf16.msra.mxu0 %v1342
    %1378 = vmatprep.subr.bf16.mxu0 0
    %1379 = vmatpush1.bf16.msra.mxu0 %v1343
    %1380 = vmatprep.subr.bf16.mxu0 0
    %1381 = vmatpush1.bf16.msra.mxu0 %v1344
    %1382 = vmatprep.subr.bf16.mxu0 0
    %1383 = vmatpush1.bf16.msra.mxu0 %v1345
    %1384 = vmatprep.subr.bf16.mxu0 0
    %1385 = vmatpush1.bf16.msra.mxu0 %v1346
    %1386 = vmatprep.subr.bf16.mxu0 0
    %1387 = vmatpush1.bf16.msra.mxu0 %v1347
    %1388 = vmatprep.subr.bf16.mxu0 0
    %1389 = vmatpush1.bf16.msra.mxu0 %v1348
    %1390 = vmatprep.subr.bf16.mxu0 0
    %1391 = vmatpush1.bf16.msra.mxu0 %v1349
    %1392 = vmatprep.subr.bf16.mxu0 0
    %1393 = vmatpush1.bf16.msra.mxu0 %v1350
    %1394 = vmatprep.subr.bf16.mxu0 0
    %1395 = vmatpush1.bf16.msra.mxu0 %v1351
    %1396 = vmatprep.subr.bf16.mxu0 0
    %1397 = vmatpush1.bf16.msra.mxu0 %v1352
    %1398 = vmatprep.subr.bf16.mxu0 0
    %1399 = vmatpush1.bf16.msra.mxu0 %v1353
    %1400 = vmatprep.subr.bf16.mxu0 0
    %1401 = vmatpush1.bf16.msra.mxu0 %v1354
    %1402 = vmatprep.subr.bf16.mxu0 0
    %1403 = vmatpush1.bf16.msra.mxu0 %v1355
    %1404 = vmatprep.mubr.bf16.mxu0 %v1268
    %1405 = vmatmul.mubr.bf16.gmra.mrb[0].mxu0 %v1267
    %v1406 = vpop.f32.mrb[0].mxu0
    %v1407 = vadd.f32 %v1274, %v1406
    %v1408 = vpop.f32.mrb[0].mxu0
    %v1409 = vpop.f32.mrb[0].mxu0
    %v1410 = vpop.f32.mrb[0].mxu0
    %1411 = vdwg.mxu0
    %v1412 = vtanh.pop %v1407
    %v1413 = vld [vmem:[#allocation21] sm:$0xf]
    %v1414 = vpack.c.bf16 %v1412, %v1412
    %vm1415 = vcmask 64512
    %v1417 = vsel %vm1415, %v1413, 0
    %vm1419 = vcmask 1043456
    %v1421 = vsel %vm1419, %v1414, 0
    %1423 = vmatprep.subr.bf16.mxu0 0
    %1424 = vmatpush1.bf16.msra.mxu0 %v1421
    %1425 = vmatprep.subr.bf16.mxu0 0
    %1426 = vmatpush1.bf16.msra.mxu0 0
    %1427 = vmatprep.subr.bf16.mxu0 0
    %1428 = vmatpush1.bf16.msra.mxu0 0
    %1429 = vmatprep.subr.bf16.mxu0 0
    %1430 = vmatpush1.bf16.msra.mxu0 0
    %1431 = vmatprep.subr.bf16.mxu0 0
    %1432 = vmatpush1.bf16.msra.mxu0 0
    %1433 = vmatprep.subr.bf16.mxu0 0
    %1434 = vmatpush1.bf16.msra.mxu0 0
    %1435 = vmatprep.subr.bf16.mxu0 0
    %1436 = vmatpush1.bf16.msra.mxu0 0
    %1437 = vmatprep.subr.bf16.mxu0 0
    %1438 = vmatpush1.bf16.msra.mxu0 0
    %1439 = vmatprep.subr.bf16.mxu0 0
    %1440 = vmatpush1.bf16.msra.mxu0 0
    %1441 = vmatprep.subr.bf16.mxu0 0
    %1442 = vmatpush1.bf16.msra.mxu0 0
    %1443 = vmatprep.subr.bf16.mxu0 0
    %1444 = vmatpush1.bf16.msra.mxu0 0
    %1445 = vmatprep.subr.bf16.mxu0 0
    %1446 = vmatpush1.bf16.msra.mxu0 0
    %1447 = vmatprep.subr.bf16.mxu0 0
    %1448 = vmatpush1.bf16.msra.mxu0 0
    %1449 = vmatprep.subr.bf16.mxu0 0
    %1450 = vmatpush1.bf16.msra.mxu0 0
    %1451 = vmatprep.subr.bf16.mxu0 0
    %1452 = vmatpush1.bf16.msra.mxu0 0
    %1453 = vmatprep.subr.bf16.mxu0 0
    %1454 = vmatpush1.bf16.msra.mxu0 0
    %1455 = vmatprep.mubr.bf16.mxu0 0
    %1456 = vmatmul.mubr.bf16.gmra.mrb[0].mxu0 %v1417
    %v1457 = vpop.f32.mrb[0].mxu0
    %v1458 = vadd.f32 0.0, %v1457
    %v1459 = vpop.f32.mrb[0].mxu0
    %v1460 = vpop.f32.mrb[0].mxu0
    %v1461 = vpop.f32.mrb[0].mxu0
    %1462 = vdwg.mxu0
    %v1463 = vld [vmem:[#allocation22] sm:$0xf]
    %v1464 = vld [vmem:[#allocation22 + $0x4] sm:$0xf]
    %v1465 = vld [vmem:[#allocation22 + $0x8] sm:$0xf]
    %v1466 = vld [vmem:[#allocation22 + $0xc] sm:$0xf]
    %v1467 = vld [vmem:[#allocation22 + $0x10] sm:$0xf]
    %v1468 = vld [vmem:[#allocation22 + $0x14] sm:$0xf]
    %v1469 = vld [vmem:[#allocation22 + $0x18] sm:$0xf]
    %v1470 = vld [vmem:[#allocation22 + $0x1c] sm:$0xf]
    %v1471 = vld [vmem:[#allocation22 + $0x20] sm:$0xf]
    %v1472 = vld [vmem:[#allocation22 + $0x24] sm:$0xf]
    %v1473 = vld [vmem:[#allocation22 + $0x28] sm:$0xf]
    %v1474 = vld [vmem:[#allocation22 + $0x2c] sm:$0xf]
    %v1475 = vld [vmem:[#allocation22 + $0x30] sm:$0xf]
    %v1476 = vld [vmem:[#allocation22 + $0x34] sm:$0xf]
    %v1477 = vld [vmem:[#allocation22 + $0x38] sm:$0xf]
    %v1478 = vld [vmem:[#allocation22 + $0x3c] sm:$0xf]
    %v1479 = vpack.c.bf16 %v1458, %v1458
    %v1496 = vunpack.c.l.b16 %v1463
    %v1497 = vunpack.c.l.b16 %v1464
    %v1498 = vunpack.c.l.b16 %v1465
    %v1499 = vunpack.c.l.b16 %v1466
    %v1500 = vunpack.c.l.b16 %v1467
    %v1501 = vunpack.c.l.b16 %v1468
    %v1502 = vunpack.c.l.b16 %v1469
    %v1503 = vunpack.c.l.b16 %v1470
    %v1504 = vunpack.c.l.b16 %v1471
    %v1505 = vunpack.c.l.b16 %v1472
    %v1506 = vunpack.c.l.b16 %v1473
    %v1507 = vunpack.c.l.b16 %v1474
    %v1508 = vunpack.c.l.b16 %v1475
    %v1509 = vunpack.c.l.b16 %v1476
    %v1510 = vunpack.c.l.b16 %v1477
    %v1511 = vunpack.c.l.b16 %v1478
    %v1512 = vpack.c.b16 %v1497, %v1496
    %v1513 = vpack.c.b16 %v1499, %v1498
    %v1514 = vpack.c.b16 %v1501, %v1500
    %v1515 = vpack.c.b16 %v1503, %v1502
    %v1516 = vpack.c.b16 %v1505, %v1504
    %v1517 = vpack.c.b16 %v1507, %v1506
    %v1518 = vpack.c.b16 %v1509, %v1508
    %v1519 = vpack.c.b16 %v1511, %v1510
    %1528 = vmatprep.subr.bf16.mxu0 0
    %1529 = vmatpush1.bf16.msra.mxu0 %v1512
    %1530 = vmatprep.subr.bf16.mxu0 0
    %1531 = vmatpush1.bf16.msra.mxu0 %v1513
    %1532 = vmatprep.subr.bf16.mxu0 0
    %1533 = vmatpush1.bf16.msra.mxu0 %v1514
    %1534 = vmatprep.subr.bf16.mxu0 0
    %1535 = vmatpush1.bf16.msra.mxu0 %v1515
    %1536 = vmatprep.subr.bf16.mxu0 0
    %1537 = vmatpush1.bf16.msra.mxu0 %v1516
    %1538 = vmatprep.subr.bf16.mxu0 0
    %1539 = vmatpush1.bf16.msra.mxu0 %v1517
    %1540 = vmatprep.subr.bf16.mxu0 0
    %1541 = vmatpush1.bf16.msra.mxu0 %v1518
    %1542 = vmatprep.subr.bf16.mxu0 0
    %1543 = vmatpush1.bf16.msra.mxu0 %v1519
    %1544 = vmatprep.subr.bf16.mxu0 0
    %1545 = vmatpush1.bf16.msra.mxu0 0
    %1546 = vmatprep.subr.bf16.mxu0 0
    %1547 = vmatpush1.bf16.msra.mxu0 0
    %1548 = vmatprep.subr.bf16.mxu0 0
    %1549 = vmatpush1.bf16.msra.mxu0 0
    %1550 = vmatprep.subr.bf16.mxu0 0
    %1551 = vmatpush1.bf16.msra.mxu0 0
    %1552 = vmatprep.subr.bf16.mxu0 0
    %1553 = vmatpush1.bf16.msra.mxu0 0
    %1554 = vmatprep.subr.bf16.mxu0 0
    %1555 = vmatpush1.bf16.msra.mxu0 0
    %1556 = vmatprep.subr.bf16.mxu0 0
    %1557 = vmatpush1.bf16.msra.mxu0 0
    %1558 = vmatprep.subr.bf16.mxu0 0
    %1559 = vmatpush1.bf16.msra.mxu0 0
    %1560 = vmatprep.mubr.bf16.mxu0 0
    %1561 = vmatmul.mubr.bf16.gmra.mrb[0].mxu0 %v1479
    %v1562 = vpop.f32.mrb[0].mxu0
    %v1563 = vadd.f32 0.0, %v1562
    %v1564 = vpop.f32.mrb[0].mxu0
    %v1565 = vpop.f32.mrb[0].mxu0
    %v1566 = vpop.f32.mrb[0].mxu0
    %1567 = vdwg.mxu0
    %v1568 = vld [vmem:[%s35] sm:$0xf]
    %v1569 = vld [vmem:[%s37] sm:$0xf]
    %v1570 = vld [vmem:[%s37 + $0x4] sm:$0xf]
    %v1571 = vld [vmem:[%s39] sm:$0x1]
    %v1572 = vld [vmem:[#allocation25] sm:$0xf]
    %v1573 = vld [vmem:[#allocation25 + $0x4] sm:$0xf]
    %v1574 = vld [vmem:[%s41] sm:$0xff]
    %v1575 = vld [vmem:[%s41 + $0x8] sm:$0xf]
    %v1576 = vld [vmem:[%s41 + $0xc] sm:$0xff]
    %v1577 = vld [vmem:[%s41 + $0x14] sm:$0xf]
    %v1578 = vld [vmem:[%s41 + $0x18] sm:$0xff]
    %v1579 = vld [vmem:[%s41 + $0x20] sm:$0xf]
    %v1580 = vld [vmem:[%s41 + $0x24] sm:$0xff]
    %v1581 = vld [vmem:[%s41 + $0x2c] sm:$0xf]
    %v1582 = vld [vmem:[%s41 + $0x30] sm:$0xff]
    %v1583 = vld [vmem:[%s41 + $0x38] sm:$0xf]
    %v1584 = vld [vmem:[%s41 + $0x3c] sm:$0xff]
    %v1585 = vld [vmem:[%s41 + $0x44] sm:$0xf]
    %v1586 = vld [vmem:[%s41 + $0x48] sm:$0xff]
    %v1587 = vld [vmem:[%s41 + $0x50] sm:$0xf]
    %v1588 = vld [vmem:[%s41 + $0x54] sm:$0xff]
    %v1589 = vld [vmem:[%s41 + $0x5c] sm:$0xf]
    %v1590 = vld [vmem:[%s41 + $0x60] sm:$0xff]
    %v1591 = vld [vmem:[%s41 + $0x68] sm:$0xf]
    %v1592 = vld [vmem:[%s41 + $0x6c] sm:$0xff]
    %v1593 = vld [vmem:[%s41 + $0x74] sm:$0xf]
    %v1594 = vld [vmem:[%s41 + $0x78] sm:$0xff]
    %v1595 = vld [vmem:[%s41 + $0x80] sm:$0xf]
    %v1596 = vld [vmem:[%s41 + $0x84] sm:$0xff]
    %v1597 = vld [vmem:[%s41 + $0x8c] sm:$0xf]
    %v1598 = vld [vmem:[%s41 + $0x90] sm:$0xff]
    %v1599 = vld [vmem:[%s41 + $0x98] sm:$0xf]
    %v1600 = vld [vmem:[%s41 + $0x9c] sm:$0xff]
    %v1601 = vld [vmem:[%s41 + $0xa4] sm:$0xf]
    %v1602 = vld [vmem:[%s41 + $0xa8] sm:$0xff]
    %v1603 = vld [vmem:[%s41 + $0xb0] sm:$0xf]
    %v1604 = vld [vmem:[%s41 + $0xb4] sm:$0xff]
    %v1605 = vld [vmem:[%s41 + $0xbc] sm:$0xf]
    %v1606 = vpack.c.bf16 %v1563, %v1563
    %v1607 = vld [vmem:[#allocation24] sm:$0x7]
    %v1609 = vlaneseq
    %v1610 = vshrl.u32 %v1609, 7
    %v1611 = vsub.s32 0, %v1610
    %v1612 = vrot.slane %v1607, %v1611
    %v1613 = vlaneseq
    %v1614 = vshrl.u32 %v1613, 7
    %v1615 = vsub.s32 1, %v1614
    %v1616 = vrot.slane %v1607, %v1615
    %v1617 = vlaneseq
    %v1618 = vshrl.u32 %v1617, 7
    %v1619 = vsub.s32 2, %v1618
    %v1620 = vrot.slane %v1607, %v1619
    %v1656 = vunpack.c.l.b16 %v1574
    %v1657 = vunpack.c.h.b16 %v1574
    %v1658 = vunpack.c.l.b16 %v1575
    %v1659 = vunpack.c.l.b16 %v1576
    %v1660 = vunpack.c.h.b16 %v1576
    %v1661 = vunpack.c.l.b16 %v1577
    %v1662 = vunpack.c.l.b16 %v1578
    %v1663 = vunpack.c.h.b16 %v1578
    %v1664 = vunpack.c.l.b16 %v1579
    %v1665 = vunpack.c.l.b16 %v1580
    %v1666 = vunpack.c.h.b16 %v1580
    %v1667 = vunpack.c.l.b16 %v1581
    %v1668 = vunpack.c.l.b16 %v1582
    %v1669 = vunpack.c.h.b16 %v1582
    %v1670 = vunpack.c.l.b16 %v1583
    %v1671 = vunpack.c.l.b16 %v1584
    %v1672 = vunpack.c.h.b16 %v1584
    %v1673 = vunpack.c.l.b16 %v1585
    %v1674 = vunpack.c.l.b16 %v1586
    %v1675 = vunpack.c.h.b16 %v1586
    %v1676 = vunpack.c.l.b16 %v1587
    %v1677 = vunpack.c.l.b16 %v1588
    %v1678 = vunpack.c.h.b16 %v1588
    %v1679 = vunpack.c.l.b16 %v1589
    %v1680 = vunpack.c.l.b16 %v1590
    %v1681 = vunpack.c.h.b16 %v1590
    %v1682 = vunpack.c.l.b16 %v1591
    %v1683 = vunpack.c.l.b16 %v1592
    %v1684 = vunpack.c.h.b16 %v1592
    %v1685 = vunpack.c.l.b16 %v1593
    %v1686 = vunpack.c.l.b16 %v1594
    %v1687 = vunpack.c.h.b16 %v1594
    %v1688 = vunpack.c.l.b16 %v1595
    %v1689 = vunpack.c.l.b16 %v1596
    %v1690 = vunpack.c.h.b16 %v1596
    %v1691 = vunpack.c.l.b16 %v1597
    %v1692 = vunpack.c.l.b16 %v1598
    %v1693 = vunpack.c.h.b16 %v1598
    %v1694 = vunpack.c.l.b16 %v1599
    %v1695 = vunpack.c.l.b16 %v1600
    %v1696 = vunpack.c.h.b16 %v1600
    %v1697 = vunpack.c.l.b16 %v1601
    %v1698 = vunpack.c.l.b16 %v1602
    %v1699 = vunpack.c.h.b16 %v1602
    %v1700 = vunpack.c.l.b16 %v1603
    %v1701 = vunpack.c.l.b16 %v1604
    %v1702 = vunpack.c.h.b16 %v1604
    %v1703 = vunpack.c.l.b16 %v1605
    %v1704 = vpack.c.b16 %v1659, %v1656
    %v1705 = vpack.c.b16 %v1660, %v1657
    %v1706 = vpack.c.b16 %v1661, %v1658
    %v1707 = vpack.c.b16 %v1665, %v1662
    %v1708 = vpack.c.b16 %v1666, %v1663
    %v1709 = vpack.c.b16 %v1667, %v1664
    %v1710 = vpack.c.b16 %v1671, %v1668
    %v1711 = vpack.c.b16 %v1672, %v1669
    %v1712 = vpack.c.b16 %v1673, %v1670
    %v1713 = vpack.c.b16 %v1677, %v1674
    %v1714 = vpack.c.b16 %v1678, %v1675
    %v1715 = vpack.c.b16 %v1679, %v1676
    %v1716 = vpack.c.b16 %v1683, %v1680
    %v1717 = vpack.c.b16 %v1684, %v1681
    %v1718 = vpack.c.b16 %v1685, %v1682
    %v1719 = vpack.c.b16 %v1689, %v1686
    %v1720 = vpack.c.b16 %v1690, %v1687
    %v1721 = vpack.c.b16 %v1691, %v1688
    %v1722 = vpack.c.b16 %v1695, %v1692
    %v1723 = vpack.c.b16 %v1696, %v1693
    %v1724 = vpack.c.b16 %v1697, %v1694
    %v1725 = vpack.c.b16 %v1701, %v1698
    %v1726 = vpack.c.b16 %v1702, %v1699
    %v1727 = vpack.c.b16 %v1703, %v1700
    %1752 = vmatprep.subr.bf16.mxu0 %v1705
    %1753 = vmatpush1.bf16.msra.mxu0 %v1704
    %1754 = vmatprep.subr.bf16.mxu0 %v1708
    %1755 = vmatpush1.bf16.msra.mxu0 %v1707
    %1756 = vmatprep.subr.bf16.mxu0 %v1711
    %1757 = vmatpush1.bf16.msra.mxu0 %v1710
    %1758 = vmatprep.subr.bf16.mxu0 %v1714
    %1759 = vmatpush1.bf16.msra.mxu0 %v1713
    %1760 = vmatprep.subr.bf16.mxu0 %v1717
    %1761 = vmatpush1.bf16.msra.mxu0 %v1716
    %1762 = vmatprep.subr.bf16.mxu0 %v1720
    %1763 = vmatpush1.bf16.msra.mxu0 %v1719
    %1764 = vmatprep.subr.bf16.mxu0 %v1723
    %1765 = vmatpush1.bf16.msra.mxu0 %v1722
    %1766 = vmatprep.subr.bf16.mxu0 %v1726
    %1767 = vmatpush1.bf16.msra.mxu0 %v1725
    %1768 = vmatprep.subr.bf16.mxu0 0
    %1769 = vmatpush1.bf16.msra.mxu0 0
    %1770 = vmatprep.subr.bf16.mxu0 0
    %1771 = vmatpush1.bf16.msra.mxu0 0
    %1772 = vmatprep.subr.bf16.mxu0 0
    %1773 = vmatpush1.bf16.msra.mxu0 0
    %1774 = vmatprep.subr.bf16.mxu0 0
    %1775 = vmatpush1.bf16.msra.mxu0 0
    %1776 = vmatprep.subr.bf16.mxu0 0
    %1777 = vmatpush1.bf16.msra.mxu0 0
    %1778 = vmatprep.subr.bf16.mxu0 0
    %1779 = vmatpush1.bf16.msra.mxu0 0
    %1780 = vmatprep.subr.bf16.mxu0 0
    %1781 = vmatpush1.bf16.msra.mxu0 0
    %1782 = vmatprep.subr.bf16.mxu0 0
    %1783 = vmatpush1.bf16.msra.mxu0 0
    %1784 = vmatprep.mubr.bf16.mxu0 0
    %1785 = vmatmul.mubr.bf16.gmra.mrb[0].mxu0 %v1606
    %v1786 = vpop.f32.mrb[0].mxu0
    %v1787 = vadd.f32 %v1612, %v1786
    %v1788 = vpop.f32.mrb[0].mxu0
    %v1789 = vadd.f32 %v1616, %v1788
    %v1790 = vpop.f32.mrb[0].mxu0
    %v1791 = vpop.f32.mrb[0].mxu0
    %1792 = vdwg.mxu0
    %1793 = vmatprep.subr.bf16.mxu0 0
    %1794 = vmatpush1.bf16.msra.mxu0 %v1706
    %1795 = vmatprep.subr.bf16.mxu0 0
    %1796 = vmatpush1.bf16.msra.mxu0 %v1709
    %1797 = vmatprep.subr.bf16.mxu0 0
    %1798 = vmatpush1.bf16.msra.mxu0 %v1712
    %1799 = vmatprep.subr.bf16.mxu0 0
    %1800 = vmatpush1.bf16.msra.mxu0 %v1715
    %1801 = vmatprep.subr.bf16.mxu0 0
    %1802 = vmatpush1.bf16.msra.mxu0 %v1718
    %1803 = vmatprep.subr.bf16.mxu0 0
    %1804 = vmatpush1.bf16.msra.mxu0 %v1721
    %1805 = vmatprep.subr.bf16.mxu0 0
    %1806 = vmatpush1.bf16.msra.mxu0 %v1724
    %1807 = vmatprep.subr.bf16.mxu0 0
    %1808 = vmatpush1.bf16.msra.mxu0 %v1727
    %1809 = vmatprep.subr.bf16.mxu0 0
    %1810 = vmatpush1.bf16.msra.mxu0 0
    %1811 = vmatprep.subr.bf16.mxu0 0
    %1812 = vmatpush1.bf16.msra.mxu0 0
    %1813 = vmatprep.subr.bf16.mxu0 0
    %1814 = vmatpush1.bf16.msra.mxu0 0
    %1815 = vmatprep.subr.bf16.mxu0 0
    %1816 = vmatpush1.bf16.msra.mxu0 0
    %1817 = vmatprep.subr.bf16.mxu0 0
    %1818 = vmatpush1.bf16.msra.mxu0 0
    %1819 = vmatprep.subr.bf16.mxu0 0
    %1820 = vmatpush1.bf16.msra.mxu0 0
    %1821 = vmatprep.subr.bf16.mxu0 0
    %1822 = vmatpush1.bf16.msra.mxu0 0
    %1823 = vmatprep.subr.bf16.mxu0 0
    %1824 = vmatpush1.bf16.msra.mxu0 0
    %1825 = vmatprep.mubr.bf16.mxu0 0
    %1826 = vmatmul.mubr.bf16.gmra.mrb[0].mxu0 %v1606
    %v1827 = vpop.f32.mrb[0].mxu0
    %v1828 = vadd.f32 %v1620, %v1827
    %v1829 = vpop.f32.mrb[0].mxu0
    %v1830 = vpop.f32.mrb[0].mxu0
    %v1831 = vpop.f32.mrb[0].mxu0
    %1832 = vdwg.mxu0
    %v1835 = vunpack.c.l.b16 %v1569
    %v1836 = vunpack.c.l.b16 %v1570
    %v1837 = vpack.c.b16 %v1836, %v1835
    %v1840 = vsel %vm578, 0, 0
    %1842 = vmatprep.subr.bf16.mxu0 0
    %1843 = vmatpush1.bf16.msra.mxu0 %v1837
    %1844 = vmatprep.subr.bf16.mxu0 0
    %1845 = vmatpush1.bf16.msra.mxu0 0
    %1846 = vmatprep.subr.bf16.mxu0 0
    %1847 = vmatpush1.bf16.msra.mxu0 0
    %1848 = vmatprep.subr.bf16.mxu0 0
    %1849 = vmatpush1.bf16.msra.mxu0 0
    %1850 = vmatprep.subr.bf16.mxu0 0
    %1851 = vmatpush1.bf16.msra.mxu0 0
    %1852 = vmatprep.subr.bf16.mxu0 0
    %1853 = vmatpush1.bf16.msra.mxu0 0
    %1854 = vmatprep.subr.bf16.mxu0 0
    %1855 = vmatpush1.bf16.msra.mxu0 0
    %1856 = vmatprep.subr.bf16.mxu0 0
    %1857 = vmatpush1.bf16.msra.mxu0 0
    %1858 = vmatprep.subr.bf16.mxu0 0
    %1859 = vmatpush1.bf16.msra.mxu0 0
    %1860 = vmatprep.subr.bf16.mxu0 0
    %1861 = vmatpush1.bf16.msra.mxu0 0
    %1862 = vmatprep.subr.bf16.mxu0 0
    %1863 = vmatpush1.bf16.msra.mxu0 0
    %1864 = vmatprep.subr.bf16.mxu0 0
    %1865 = vmatpush1.bf16.msra.mxu0 0
    %1866 = vmatprep.subr.bf16.mxu0 0
    %1867 = vmatpush1.bf16.msra.mxu0 0
    %1868 = vmatprep.subr.bf16.mxu0 0
    %1869 = vmatpush1.bf16.msra.mxu0 0
    %1870 = vmatprep.subr.bf16.mxu0 0
    %1871 = vmatpush1.bf16.msra.mxu0 0
    %1872 = vmatprep.subr.bf16.mxu0 0
    %1873 = vmatpush1.bf16.msra.mxu0 0
    %1874 = vmatprep.mubr.bf16.mxu0 0
    %1875 = vmatmul.mubr.bf16.gmra.mrb[0].mxu0 %v1840
    %v1876 = vpop.f32.mrb[0].mxu0
    %v1877 = vadd.f32 0.0, %v1876
    %v1878 = vpop.f32.mrb[0].mxu0
    %v1879 = vpop.f32.mrb[0].mxu0
    %v1880 = vpop.f32.mrb[0].mxu0
    %1881 = vdwg.mxu0
    %v1882 = vpack.c.bf16 %v1877, %v1877
    %v1884 = vlaneseq
    %v1885 = vshrl.u32 %v1884, 7
    %v1886 = vsub.s32 0, %v1885
    %v1887 = vrot.slane %v1571, %v1886
    %v1890 = vsel %vm1415, %v1568, 0
    %v1893 = vsel %vm1419, %v1882, 0
    %1895 = vmatprep.subr.bf16.mxu0 0
    %1896 = vmatpush1.bf16.msra.mxu0 %v1893
    %1897 = vmatprep.subr.bf16.mxu0 0
    %1898 = vmatpush1.bf16.msra.mxu0 0
    %1899 = vmatprep.subr.bf16.mxu0 0
    %1900 = vmatpush1.bf16.msra.mxu0 0
    %1901 = vmatprep.subr.bf16.mxu0 0
    %1902 = vmatpush1.bf16.msra.mxu0 0
    %1903 = vmatprep.subr.bf16.mxu0 0
    %1904 = vmatpush1.bf16.msra.mxu0 0
    %1905 = vmatprep.subr.bf16.mxu0 0
    %1906 = vmatpush1.bf16.msra.mxu0 0
    %1907 = vmatprep.subr.bf16.mxu0 0
    %1908 = vmatpush1.bf16.msra.mxu0 0
    %1909 = vmatprep.subr.bf16.mxu0 0
    %1910 = vmatpush1.bf16.msra.mxu0 0
    %1911 = vmatprep.subr.bf16.mxu0 0
    %1912 = vmatpush1.bf16.msra.mxu0 0
    %1913 = vmatprep.subr.bf16.mxu0 0
    %1914 = vmatpush1.bf16.msra.mxu0 0
    %1915 = vmatprep.subr.bf16.mxu0 0
    %1916 = vmatpush1.bf16.msra.mxu0 0
    %1917 = vmatprep.subr.bf16.mxu0 0
    %1918 = vmatpush1.bf16.msra.mxu0 0
    %1919 = vmatprep.subr.bf16.mxu0 0
    %1920 = vmatpush1.bf16.msra.mxu0 0
    %1921 = vmatprep.subr.bf16.mxu0 0
    %1922 = vmatpush1.bf16.msra.mxu0 0
    %1923 = vmatprep.subr.bf16.mxu0 0
    %1924 = vmatpush1.bf16.msra.mxu0 0
    %1925 = vmatprep.subr.bf16.mxu0 0
    %1926 = vmatpush1.bf16.msra.mxu0 0
    %1927 = vmatprep.mubr.bf16.mxu0 0
    %1928 = vmatmul.mubr.bf16.gmra.mrb[0].mxu0 %v1890
    %v1929 = vpop.f32.mrb[0].mxu0
    %v1930 = vadd.f32 %v1887, %v1929
    %v1931 = vpop.f32.mrb[0].mxu0
    %v1932 = vpop.f32.mrb[0].mxu0
    %v1933 = vpop.f32.mrb[0].mxu0
    %1934 = vdwg.mxu0
    %v1935 = vtanh.pop %v1930
    %v1936 = vadd.f32 %v1935, 0.0
    %v1937 = vpack.c.bf16 %v1936, %v1936
    %v1940 = vunpack.c.l.b16 %v1572
    %v1941 = vunpack.c.l.b16 %v1573
    %v1942 = vpack.c.b16 %v1941, %v1940
    %v1945 = vsel %vm578, %v1937, 0
    %1947 = vmatprep.subr.bf16.mxu0 0
    %1948 = vmatpush1.bf16.msra.mxu0 %v1942
    %1949 = vmatprep.subr.bf16.mxu0 0
    %1950 = vmatpush1.bf16.msra.mxu0 0
    %1951 = vmatprep.subr.bf16.mxu0 0
    %1952 = vmatpush1.bf16.msra.mxu0 0
    %1953 = vmatprep.subr.bf16.mxu0 0
    %1954 = vmatpush1.bf16.msra.mxu0 0
    %1955 = vmatprep.subr.bf16.mxu0 0
    %1956 = vmatpush1.bf16.msra.mxu0 0
    %1957 = vmatprep.subr.bf16.mxu0 0
    %1958 = vmatpush1.bf16.msra.mxu0 0
    %1959 = vmatprep.subr.bf16.mxu0 0
    %1960 = vmatpush1.bf16.msra.mxu0 0
    %1961 = vmatprep.subr.bf16.mxu0 0
    %1962 = vmatpush1.bf16.msra.mxu0 0
    %1963 = vmatprep.subr.bf16.mxu0 0
    %1964 = vmatpush1.bf16.msra.mxu0 0
    %1965 = vmatprep.subr.bf16.mxu0 0
    %1966 = vmatpush1.bf16.msra.mxu0 0
    %1967 = vmatprep.subr.bf16.mxu0 0
    %1968 = vmatpush1.bf16.msra.mxu0 0
    %1969 = vmatprep.subr.bf16.mxu0 0
    %1970 = vmatpush1.bf16.msra.mxu0 0
    %1971 = vmatprep.subr.bf16.mxu0 0
    %1972 = vmatpush1.bf16.msra.mxu0 0
    %1973 = vmatprep.subr.bf16.mxu0 0
    %1974 = vmatpush1.bf16.msra.mxu0 0
    %1975 = vmatprep.subr.bf16.mxu0 0
    %1976 = vmatpush1.bf16.msra.mxu0 0
    %1977 = vmatprep.subr.bf16.mxu0 0
    %1978 = vmatpush1.bf16.msra.mxu0 0
    %1979 = vmatprep.mubr.bf16.mxu0 0
    %1980 = vmatmul.mubr.bf16.gmra.mrb[0].mxu0 %v1945
    %v1981 = vpop.f32.mrb[0].mxu0
    %v1982 = vadd.f32 0.0, %v1981
    %v1983 = vpop.f32.mrb[0].mxu0
    %v1984 = vpop.f32.mrb[0].mxu0
    %v1985 = vpop.f32.mrb[0].mxu0
    %1986 = vdwg.mxu0
    %v1987 = vadd.f32 %v1787, %v1982
    %v1988 = vmul.f32 %v1987, 0.5
    %v1989 = vtanh.pop %v1988
    %v1990 = vadd.f32 %v1989, 1.0
    %v1991 = vmul.f32 %v1990, 0.5
    %1993 = vrot.lane.b32.xlu0 %v1982, 96
    %v1994 = vpop.permute.xlu0 %1993
    %v1996 = vmul.f32 %v1991, %v1994
    %1998 = vrot.lane.b32.xlu0 %v1996, 32
    %v1999 = vpop.permute.xlu0 %1998
    %v2001 = vadd.f32 %v1787, %v1999
    %v2002 = vtanh.pop %v2001
    %v2003 = vsub.f32 1.0, %v1991
    %2005 = vrot.lane.b32.xlu0 %v1936, 16
    %v2006 = vpop.permute.xlu0 %2005
    %v2008 = vmul.f32 %v2003, %v2006
    %2010 = vrot.lane.b32.xlu0 %v2002, 112
    %v2011 = vpop.permute.xlu0 %2010
    %v2013 = vmul.f32 %v1991, %v2011
    %v2014 = vadd.f32 %v2008, %v2013
    %v2015 = vpack.c.bf16 %v2014, %v2014
    %2017 = vrot.lane.b32.xlu0 %v2015, 112
    %v2018 = vpop.permute.xlu0 %2017
    %v2020 = vsel %vm578, %v2018, 0
    %2022 = vmatprep.subr.bf16.mxu0 0
    %2023 = vmatpush1.bf16.msra.mxu0 %v1837
    %2024 = vmatprep.subr.bf16.mxu0 0
    %2025 = vmatpush1.bf16.msra.mxu0 0
    %2026 = vmatprep.subr.bf16.mxu0 0
    %2027 = vmatpush1.bf16.msra.mxu0 0
    %2028 = vmatprep.subr.bf16.mxu0 0
    %2029 = vmatpush1.bf16.msra.mxu0 0
    %2030 = vmatprep.subr.bf16.mxu0 0
    %2031 = vmatpush1.bf16.msra.mxu0 0
    %2032 = vmatprep.subr.bf16.mxu0 0
    %2033 = vmatpush1.bf16.msra.mxu0 0
    %2034 = vmatprep.subr.bf16.mxu0 0
    %2035 = vmatpush1.bf16.msra.mxu0 0
    %2036 = vmatprep.subr.bf16.mxu0 0
    %2037 = vmatpush1.bf16.msra.mxu0 0
    %2038 = vmatprep.subr.bf16.mxu0 0
    %2039 = vmatpush1.bf16.msra.mxu0 0
    %2040 = vmatprep.subr.bf16.mxu0 0
    %2041 = vmatpush1.bf16.msra.mxu0 0
    %2042 = vmatprep.subr.bf16.mxu0 0
    %2043 = vmatpush1.bf16.msra.mxu0 0
    %2044 = vmatprep.subr.bf16.mxu0 0
    %2045 = vmatpush1.bf16.msra.mxu0 0
    %2046 = vmatprep.subr.bf16.mxu0 0
    %2047 = vmatpush1.bf16.msra.mxu0 0
    %2048 = vmatprep.subr.bf16.mxu0 0
    %2049 = vmatpush1.bf16.msra.mxu0 0
    %2050 = vmatprep.subr.bf16.mxu0 0
    %2051 = vmatpush1.bf16.msra.mxu0 0
    %2052 = vmatprep.subr.bf16.mxu0 0
    %2053 = vmatpush1.bf16.msra.mxu0 0
    %2054 = vmatprep.mubr.bf16.mxu0 0
    %2055 = vmatmul.mubr.bf16.gmra.mrb[0].mxu0 %v2020
    %v2056 = vpop.f32.mrb[0].mxu0
    %v2057 = vadd.f32 0.0, %v2056
    %v2058 = vpop.f32.mrb[0].mxu0
    %v2059 = vpop.f32.mrb[0].mxu0
    %v2060 = vpop.f32.mrb[0].mxu0
    %2061 = vdwg.mxu0
    %v2062 = vpack.c.bf16 %v2057, %v2057
    %v2064 = vsel %vm1419, %v2062, 0
    %2066 = vmatprep.subr.bf16.mxu0 0
    %2067 = vmatpush1.bf16.msra.mxu0 %v2064
    %2068 = vmatprep.subr.bf16.mxu0 0
    %2069 = vmatpush1.bf16.msra.mxu0 0
    %2070 = vmatprep.subr.bf16.mxu0 0
    %2071 = vmatpush1.bf16.msra.mxu0 0
    %2072 = vmatprep.subr.bf16.mxu0 0
    %2073 = vmatpush1.bf16.msra.mxu0 0
    %2074 = vmatprep.subr.bf16.mxu0 0
    %2075 = vmatpush1.bf16.msra.mxu0 0
    %2076 = vmatprep.subr.bf16.mxu0 0
    %2077 = vmatpush1.bf16.msra.mxu0 0
    %2078 = vmatprep.subr.bf16.mxu0 0
    %2079 = vmatpush1.bf16.msra.mxu0 0
    %2080 = vmatprep.subr.bf16.mxu0 0
    %2081 = vmatpush1.bf16.msra.mxu0 0
    %2082 = vmatprep.subr.bf16.mxu0 0
    %2083 = vmatpush1.bf16.msra.mxu0 0
    %2084 = vmatprep.subr.bf16.mxu0 0
    %2085 = vmatpush1.bf16.msra.mxu0 0
    %2086 = vmatprep.subr.bf16.mxu0 0
    %2087 = vmatpush1.bf16.msra.mxu0 0
    %2088 = vmatprep.subr.bf16.mxu0 0
    %2089 = vmatpush1.bf16.msra.mxu0 0
    %2090 = vmatprep.subr.bf16.mxu0 0
    %2091 = vmatpush1.bf16.msra.mxu0 0
    %2092 = vmatprep.subr.bf16.mxu0 0
    %2093 = vmatpush1.bf16.msra.mxu0 0
    %2094 = vmatprep.subr.bf16.mxu0 0
    %2095 = vmatpush1.bf16.msra.mxu0 0
    %2096 = vmatprep.subr.bf16.mxu0 0
    %2097 = vmatpush1.bf16.msra.mxu0 0
    %2098 = vmatprep.mubr.bf16.mxu0 0
    %2099 = vmatmul.mubr.bf16.gmra.mrb[0].mxu0 %v1890
    %v2100 = vpop.f32.mrb[0].mxu0
    %v2101 = vadd.f32 %v1887, %v2100
    %v2102 = vpop.f32.mrb[0].mxu0
    %v2103 = vpop.f32.mrb[0].mxu0
    %v2104 = vpop.f32.mrb[0].mxu0
    %2105 = vdwg.mxu0
    %v2106 = vtanh.pop %v2101
    %2108 = vrot.lane.b32.xlu0 %v2106, 16
    %v2109 = vpop.permute.xlu0 %2108
    %v2111 = vadd.f32 %v2014, %v2109
    %v2112 = vpack.c.bf16 %v2111, %v2111
    %2114 = vrot.lane.b32.xlu0 %v2112, 112
    %v2115 = vpop.permute.xlu0 %2114
    %v2117 = vsel %vm578, %v2115, 0
    %2119 = vmatprep.subr.bf16.mxu0 0
    %2120 = vmatpush1.bf16.msra.mxu0 %v1942
    %2121 = vmatprep.subr.bf16.mxu0 0
    %2122 = vmatpush1.bf16.msra.mxu0 0
    %2123 = vmatprep.subr.bf16.mxu0 0
    %2124 = vmatpush1.bf16.msra.mxu0 0
    %2125 = vmatprep.subr.bf16.mxu0 0
    %2126 = vmatpush1.bf16.msra.mxu0 0
    %2127 = vmatprep.subr.bf16.mxu0 0
    %2128 = vmatpush1.bf16.msra.mxu0 0
    %2129 = vmatprep.subr.bf16.mxu0 0
    %2130 = vmatpush1.bf16.msra.mxu0 0
    %2131 = vmatprep.subr.bf16.mxu0 0
    %2132 = vmatpush1.bf16.msra.mxu0 0
    %2133 = vmatprep.subr.bf16.mxu0 0
    %2134 = vmatpush1.bf16.msra.mxu0 0
    %2135 = vmatprep.subr.bf16.mxu0 0
    %2136 = vmatpush1.bf16.msra.mxu0 0
    %2137 = vmatprep.subr.bf16.mxu0 0
    %2138 = vmatpush1.bf16.msra.mxu0 0
    %2139 = vmatprep.subr.bf16.mxu0 0
    %2140 = vmatpush1.bf16.msra.mxu0 0
    %2141 = vmatprep.subr.bf16.mxu0 0
    %2142 = vmatpush1.bf16.msra.mxu0 0
    %2143 = vmatprep.subr.bf16.mxu0 0
    %2144 = vmatpush1.bf16.msra.mxu0 0
    %2145 = vmatprep.subr.bf16.mxu0 0
    %2146 = vmatpush1.bf16.msra.mxu0 0
    %2147 = vmatprep.subr.bf16.mxu0 0
    %2148 = vmatpush1.bf16.msra.mxu0 0
    %2149 = vmatprep.subr.bf16.mxu0 0
    %2150 = vmatpush1.bf16.msra.mxu0 0
    %2151 = vmatprep.mubr.bf16.mxu0 0
    %2152 = vmatmul.mubr.bf16.gmra.mrb[0].mxu0 %v2117
    %v2153 = vpop.f32.mrb[0].mxu0
    %v2154 = vadd.f32 0.0, %v2153
    %v2155 = vpop.f32.mrb[0].mxu0
    %v2156 = vpop.f32.mrb[0].mxu0
    %v2157 = vpop.f32.mrb[0].mxu0
    %2158 = vdwg.mxu0
    %2160 = vrot.lane.b32.xlu0 %v2154, 48
    %v2161 = vpop.permute.xlu0 %2160
    %v2163 = vadd.f32 %v1787, %v2161
    %v2164 = vmul.f32 %v2163, 0.5
    %v2165 = vtanh.pop %v2164
    %v2166 = vadd.f32 %v2165, 1.0
    %v2167 = vmul.f32 %v2166, 0.5
    %2168 = vrot.lane.b32.xlu0 %v2154, 16
    %v2169 = vpop.permute.xlu0 %2168
    %v2171 = vmul.f32 %v2167, %v2169
    %2173 = vrot.lane.b32.xlu0 %v2171, 32
    %v2174 = vpop.permute.xlu0 %2173
    %v2176 = vadd.f32 %v1787, %v2174
    %v2177 = vtanh.pop %v2176
    %v2178 = vsub.f32 1.0, %v2167
    %2180 = vrot.lane.b32.xlu0 %v2111, 48
    %v2181 = vpop.permute.xlu0 %2180
    %v2183 = vmul.f32 %v2178, %v2181
    %2185 = vrot.lane.b32.xlu0 %v2177, 112
    %v2186 = vpop.permute.xlu0 %2185
    %v2188 = vmul.f32 %v2167, %v2186
    %v2189 = vadd.f32 %v2183, %v2188
    %v2190 = vpack.c.bf16 %v2189, %v2189
    %2192 = vrot.lane.b32.xlu0 %v2190, 64
    %v2193 = vpop.permute.xlu0 %2192
    %v2195 = vsel %vm578, %v2193, 0
    %2197 = vmatprep.subr.bf16.mxu0 0
    %2198 = vmatpush1.bf16.msra.mxu0 %v1837
    %2199 = vmatprep.subr.bf16.mxu0 0
    %2200 = vmatpush1.bf16.msra.mxu0 0
    %2201 = vmatprep.subr.bf16.mxu0 0
    %2202 = vmatpush1.bf16.msra.mxu0 0
    %2203 = vmatprep.subr.bf16.mxu0 0
    %2204 = vmatpush1.bf16.msra.mxu0 0
    %2205 = vmatprep.subr.bf16.mxu0 0
    %2206 = vmatpush1.bf16.msra.mxu0 0
    %2207 = vmatprep.subr.bf16.mxu0 0
    %2208 = vmatpush1.bf16.msra.mxu0 0
    %2209 = vmatprep.subr.bf16.mxu0 0
    %2210 = vmatpush1.bf16.msra.mxu0 0
    %2211 = vmatprep.subr.bf16.mxu0 0
    %2212 = vmatpush1.bf16.msra.mxu0 0
    %2213 = vmatprep.subr.bf16.mxu0 0
    %2214 = vmatpush1.bf16.msra.mxu0 0
    %2215 = vmatprep.subr.bf16.mxu0 0
    %2216 = vmatpush1.bf16.msra.mxu0 0
    %2217 = vmatprep.subr.bf16.mxu0 0
    %2218 = vmatpush1.bf16.msra.mxu0 0
    %2219 = vmatprep.subr.bf16.mxu0 0
    %2220 = vmatpush1.bf16.msra.mxu0 0
    %2221 = vmatprep.subr.bf16.mxu0 0
    %2222 = vmatpush1.bf16.msra.mxu0 0
    %2223 = vmatprep.subr.bf16.mxu0 0
    %2224 = vmatpush1.bf16.msra.mxu0 0
    %2225 = vmatprep.subr.bf16.mxu0 0
    %2226 = vmatpush1.bf16.msra.mxu0 0
    %2227 = vmatprep.subr.bf16.mxu0 0
    %2228 = vmatpush1.bf16.msra.mxu0 0
    %2229 = vmatprep.mubr.bf16.mxu0 0
    %2230 = vmatmul.mubr.bf16.gmra.mrb[0].mxu0 %v2195
    %v2231 = vpop.f32.mrb[0].mxu0
    %v2232 = vadd.f32 0.0, %v2231
    %v2233 = vpop.f32.mrb[0].mxu0
    %v2234 = vpop.f32.mrb[0].mxu0
    %v2235 = vpop.f32.mrb[0].mxu0
    %2236 = vdwg.mxu0
    %v2237 = vpack.c.bf16 %v2232, %v2232
    %v2239 = vsel %vm1419, %v2237, 0
    %2241 = vmatprep.subr.bf16.mxu0 0
    %2242 = vmatpush1.bf16.msra.mxu0 %v2239
    %2243 = vmatprep.subr.bf16.mxu0 0
    %2244 = vmatpush1.bf16.msra.mxu0 0
    %2245 = vmatprep.subr.bf16.mxu0 0
    %2246 = vmatpush1.bf16.msra.mxu0 0
    %2247 = vmatprep.subr.bf16.mxu0 0
    %2248 = vmatpush1.bf16.msra.mxu0 0
    %2249 = vmatprep.subr.bf16.mxu0 0
    %2250 = vmatpush1.bf16.msra.mxu0 0
    %2251 = vmatprep.subr.bf16.mxu0 0
    %2252 = vmatpush1.bf16.msra.mxu0 0
    %2253 = vmatprep.subr.bf16.mxu0 0
    %2254 = vmatpush1.bf16.msra.mxu0 0
    %2255 = vmatprep.subr.bf16.mxu0 0
    %2256 = vmatpush1.bf16.msra.mxu0 0
    %2257 = vmatprep.subr.bf16.mxu0 0
    %2258 = vmatpush1.bf16.msra.mxu0 0
    %2259 = vmatprep.subr.bf16.mxu0 0
    %2260 = vmatpush1.bf16.msra.mxu0 0
    %2261 = vmatprep.subr.bf16.mxu0 0
    %2262 = vmatpush1.bf16.msra.mxu0 0
    %2263 = vmatprep.subr.bf16.mxu0 0
    %2264 = vmatpush1.bf16.msra.mxu0 0
    %2265 = vmatprep.subr.bf16.mxu0 0
    %2266 = vmatpush1.bf16.msra.mxu0 0
    %2267 = vmatprep.subr.bf16.mxu0 0
    %2268 = vmatpush1.bf16.msra.mxu0 0
    %2269 = vmatprep.subr.bf16.mxu0 0
    %2270 = vmatpush1.bf16.msra.mxu0 0
    %2271 = vmatprep.subr.bf16.mxu0 0
    %2272 = vmatpush1.bf16.msra.mxu0 0
    %2273 = vmatprep.mubr.bf16.mxu0 0
    %2274 = vmatmul.mubr.bf16.gmra.mrb[0].mxu0 %v1890
    %v2275 = vpop.f32.mrb[0].mxu0
    %v2276 = vadd.f32 %v1887, %v2275
    %v2277 = vpop.f32.mrb[0].mxu0
    %v2278 = vpop.f32.mrb[0].mxu0
    %v2279 = vpop.f32.mrb[0].mxu0
    %2280 = vdwg.mxu0
    %v2281 = vtanh.pop %v2276
    %2283 = vrot.lane.b32.xlu0 %v2281, 64
    %v2284 = vpop.permute.xlu0 %2283
    %v2286 = vadd.f32 %v2189, %v2284
    %v2287 = vpack.c.bf16 %v2286, %v2286
    %2289 = vrot.lane.b32.xlu0 %v2287, 64
    %v2290 = vpop.permute.xlu0 %2289
    %v2292 = vsel %vm578, %v2290, 0
    %2294 = vmatprep.subr.bf16.mxu0 0
    %2295 = vmatpush1.bf16.msra.mxu0 %v1942
    %2296 = vmatprep.subr.bf16.mxu0 0
    %2297 = vmatpush1.bf16.msra.mxu0 0
    %2298 = vmatprep.subr.bf16.mxu0 0
    %2299 = vmatpush1.bf16.msra.mxu0 0
    %2300 = vmatprep.subr.bf16.mxu0 0
    %2301 = vmatpush1.bf16.msra.mxu0 0
    %2302 = vmatprep.subr.bf16.mxu0 0
    %2303 = vmatpush1.bf16.msra.mxu0 0
    %2304 = vmatprep.subr.bf16.mxu0 0
    %2305 = vmatpush1.bf16.msra.mxu0 0
    %2306 = vmatprep.subr.bf16.mxu0 0
    %2307 = vmatpush1.bf16.msra.mxu0 0
    %2308 = vmatprep.subr.bf16.mxu0 0
    %2309 = vmatpush1.bf16.msra.mxu0 0
    %2310 = vmatprep.subr.bf16.mxu0 0
    %2311 = vmatpush1.bf16.msra.mxu0 0
    %2312 = vmatprep.subr.bf16.mxu0 0
    %2313 = vmatpush1.bf16.msra.mxu0 0
    %2314 = vmatprep.subr.bf16.mxu0 0
    %2315 = vmatpush1.bf16.msra.mxu0 0
    %2316 = vmatprep.subr.bf16.mxu0 0
    %2317 = vmatpush1.bf16.msra.mxu0 0
    %2318 = vmatprep.subr.bf16.mxu0 0
    %2319 = vmatpush1.bf16.msra.mxu0 0
    %2320 = vmatprep.subr.bf16.mxu0 0
    %2321 = vmatpush1.bf16.msra.mxu0 0
    %2322 = vmatprep.subr.bf16.mxu0 0
    %2323 = vmatpush1.bf16.msra.mxu0 0
    %2324 = vmatprep.subr.bf16.mxu0 0
    %2325 = vmatpush1.bf16.msra.mxu0 0
    %2326 = vmatprep.mubr.bf16.mxu0 0
    %2327 = vmatmul.mubr.bf16.gmra.mrb[0].mxu0 %v2292
    %v2328 = vpop.f32.mrb[0].mxu0
    %v2329 = vadd.f32 0.0, %v2328
    %v2330 = vpop.f32.mrb[0].mxu0
    %v2331 = vpop.f32.mrb[0].mxu0
    %v2332 = vpop.f32.mrb[0].mxu0
    %2333 = vdwg.mxu0
    %2335 = vrot.lane.b32.xlu0 %v2329, 96
    %v2336 = vpop.permute.xlu0 %2335
    %v2338 = vadd.f32 %v1787, %v2336
    %v2339 = vmul.f32 %v2338, 0.5
    %v2340 = vtanh.pop %v2339
    %v2341 = vadd.f32 %v2340, 1.0
    %v2342 = vmul.f32 %v2341, 0.5
    %2343 = vrot.lane.b32.xlu0 %v2329, 64
    %v2344 = vpop.permute.xlu0 %2343
    %v2346 = vmul.f32 %v2342, %v2344
    %2348 = vrot.lane.b32.xlu0 %v2346, 32
    %v2349 = vpop.permute.xlu0 %2348
    %v2351 = vadd.f32 %v1789, %v2349
    %v2352 = vtanh.pop %v2351
    %v2353 = vsub.f32 1.0, %v2342
    %2355 = vrot.lane.b32.xlu0 %v2286, 48
    %v2356 = vpop.permute.xlu0 %2355
    %v2358 = vmul.f32 %v2353, %v2356
    %2360 = vrot.lane.b32.xlu0 %v2352, 112
    %v2361 = vpop.permute.xlu0 %2360
    %v2363 = vmul.f32 %v2342, %v2361
    %v2364 = vadd.f32 %v2358, %v2363
    %v2365 = vpack.c.bf16 %v2364, %v2364
    %2367 = vrot.lane.b32.xlu0 %v2365, 16
    %v2368 = vpop.permute.xlu0 %2367
    %v2370 = vsel %vm578, %v2368, 0
    %2372 = vmatprep.subr.bf16.mxu0 0
    %2373 = vmatpush1.bf16.msra.mxu0 %v1837
    %2374 = vmatprep.subr.bf16.mxu0 0
    %2375 = vmatpush1.bf16.msra.mxu0 0
    %2376 = vmatprep.subr.bf16.mxu0 0
    %2377 = vmatpush1.bf16.msra.mxu0 0
    %2378 = vmatprep.subr.bf16.mxu0 0
    %2379 = vmatpush1.bf16.msra.mxu0 0
    %2380 = vmatprep.subr.bf16.mxu0 0
    %2381 = vmatpush1.bf16.msra.mxu0 0
    %2382 = vmatprep.subr.bf16.mxu0 0
    %2383 = vmatpush1.bf16.msra.mxu0 0
    %2384 = vmatprep.subr.bf16.mxu0 0
    %2385 = vmatpush1.bf16.msra.mxu0 0
    %2386 = vmatprep.subr.bf16.mxu0 0
    %2387 = vmatpush1.bf16.msra.mxu0 0
    %2388 = vmatprep.subr.bf16.mxu0 0
    %2389 = vmatpush1.bf16.msra.mxu0 0
    %2390 = vmatprep.subr.bf16.mxu0 0
    %2391 = vmatpush1.bf16.msra.mxu0 0
    %2392 = vmatprep.subr.bf16.mxu0 0
    %2393 = vmatpush1.bf16.msra.mxu0 0
    %2394 = vmatprep.subr.bf16.mxu0 0
    %2395 = vmatpush1.bf16.msra.mxu0 0
    %2396 = vmatprep.subr.bf16.mxu0 0
    %2397 = vmatpush1.bf16.msra.mxu0 0
    %2398 = vmatprep.subr.bf16.mxu0 0
    %2399 = vmatpush1.bf16.msra.mxu0 0
    %2400 = vmatprep.subr.bf16.mxu0 0
    %2401 = vmatpush1.bf16.msra.mxu0 0
    %2402 = vmatprep.subr.bf16.mxu0 0
    %2403 = vmatpush1.bf16.msra.mxu0 0
    %2404 = vmatprep.mubr.bf16.mxu0 0
    %2405 = vmatmul.mubr.bf16.gmra.mrb[0].mxu0 %v2370
    %v2406 = vpop.f32.mrb[0].mxu0
    %v2407 = vadd.f32 0.0, %v2406
    %v2408 = vpop.f32.mrb[0].mxu0
    %v2409 = vpop.f32.mrb[0].mxu0
    %v2410 = vpop.f32.mrb[0].mxu0
    %2411 = vdwg.mxu0
    %v2412 = vpack.c.bf16 %v2407, %v2407
    %v2414 = vsel %vm1419, %v2412, 0
    %2416 = vmatprep.subr.bf16.mxu0 0
    %2417 = vmatpush1.bf16.msra.mxu0 %v2414
    %2418 = vmatprep.subr.bf16.mxu0 0
    %2419 = vmatpush1.bf16.msra.mxu0 0
    %2420 = vmatprep.subr.bf16.mxu0 0
    %2421 = vmatpush1.bf16.msra.mxu0 0
    %2422 = vmatprep.subr.bf16.mxu0 0
    %2423 = vmatpush1.bf16.msra.mxu0 0
    %2424 = vmatprep.subr.bf16.mxu0 0
    %2425 = vmatpush1.bf16.msra.mxu0 0
    %2426 = vmatprep.subr.bf16.mxu0 0
    %2427 = vmatpush1.bf16.msra.mxu0 0
    %2428 = vmatprep.subr.bf16.mxu0 0
    %2429 = vmatpush1.bf16.msra.mxu0 0
    %2430 = vmatprep.subr.bf16.mxu0 0
    %2431 = vmatpush1.bf16.msra.mxu0 0
    %2432 = vmatprep.subr.bf16.mxu0 0
    %2433 = vmatpush1.bf16.msra.mxu0 0
    %2434 = vmatprep.subr.bf16.mxu0 0
    %2435 = vmatpush1.bf16.msra.mxu0 0
    %2436 = vmatprep.subr.bf16.mxu0 0
    %2437 = vmatpush1.bf16.msra.mxu0 0
    %2438 = vmatprep.subr.bf16.mxu0 0
    %2439 = vmatpush1.bf16.msra.mxu0 0
    %2440 = vmatprep.subr.bf16.mxu0 0
    %2441 = vmatpush1.bf16.msra.mxu0 0
    %2442 = vmatprep.subr.bf16.mxu0 0
    %2443 = vmatpush1.bf16.msra.mxu0 0
    %2444 = vmatprep.subr.bf16.mxu0 0
    %2445 = vmatpush1.bf16.msra.mxu0 0
    %2446 = vmatprep.subr.bf16.mxu0 0
    %2447 = vmatpush1.bf16.msra.mxu0 0
    %2448 = vmatprep.mubr.bf16.mxu0 0
    %2449 = vmatmul.mubr.bf16.gmra.mrb[0].mxu0 %v1890
    %v2450 = vpop.f32.mrb[0].mxu0
    %v2451 = vadd.f32 %v1887, %v2450
    %v2452 = vpop.f32.mrb[0].mxu0
    %v2453 = vpop.f32.mrb[0].mxu0
    %v2454 = vpop.f32.mrb[0].mxu0
    %2455 = vdwg.mxu0
    %v2456 = vtanh.pop %v2451
    %2458 = vrot.lane.b32.xlu0 %v2456, 112
    %v2459 = vpop.permute.xlu0 %2458
    %v2461 = vadd.f32 %v2364, %v2459
    %v2462 = vpack.c.bf16 %v2461, %v2461
    %2464 = vrot.lane.b32.xlu0 %v2462, 16
    %v2465 = vpop.permute.xlu0 %2464
    %v2467 = vsel %vm578, %v2465, 0
    %2469 = vmatprep.subr.bf16.mxu0 0
    %2470 = vmatpush1.bf16.msra.mxu0 %v1942
    %2471 = vmatprep.subr.bf16.mxu0 0
    %2472 = vmatpush1.bf16.msra.mxu0 0
    %2473 = vmatprep.subr.bf16.mxu0 0
    %2474 = vmatpush1.bf16.msra.mxu0 0
    %2475 = vmatprep.subr.bf16.mxu0 0
    %2476 = vmatpush1.bf16.msra.mxu0 0
    %2477 = vmatprep.subr.bf16.mxu0 0
    %2478 = vmatpush1.bf16.msra.mxu0 0
    %2479 = vmatprep.subr.bf16.mxu0 0
    %2480 = vmatpush1.bf16.msra.mxu0 0
    %2481 = vmatprep.subr.bf16.mxu0 0
    %2482 = vmatpush1.bf16.msra.mxu0 0
    %2483 = vmatprep.subr.bf16.mxu0 0
    %2484 = vmatpush1.bf16.msra.mxu0 0
    %2485 = vmatprep.subr.bf16.mxu0 0
    %2486 = vmatpush1.bf16.msra.mxu0 0
    %2487 = vmatprep.subr.bf16.mxu0 0
    %2488 = vmatpush1.bf16.msra.mxu0 0
    %2489 = vmatprep.subr.bf16.mxu0 0
    %2490 = vmatpush1.bf16.msra.mxu0 0
    %2491 = vmatprep.subr.bf16.mxu0 0
    %2492 = vmatpush1.bf16.msra.mxu0 0
    %2493 = vmatprep.subr.bf16.mxu0 0
    %2494 = vmatpush1.bf16.msra.mxu0 0
    %2495 = vmatprep.subr.bf16.mxu0 0
    %2496 = vmatpush1.bf16.msra.mxu0 0
    %2497 = vmatprep.subr.bf16.mxu0 0
    %2498 = vmatpush1.bf16.msra.mxu0 0
    %2499 = vmatprep.subr.bf16.mxu0 0
    %2500 = vmatpush1.bf16.msra.mxu0 0
    %2501 = vmatprep.mubr.bf16.mxu0 0
    %2502 = vmatmul.mubr.bf16.gmra.mrb[0].mxu0 %v2467
    %v2503 = vpop.f32.mrb[0].mxu0
    %v2504 = vadd.f32 0.0, %v2503
    %v2505 = vpop.f32.mrb[0].mxu0
    %v2506 = vpop.f32.mrb[0].mxu0
    %v2507 = vpop.f32.mrb[0].mxu0
    %2508 = vdwg.mxu0
    %2510 = vrot.lane.b32.xlu0 %v2504, 16
    %v2511 = vpop.permute.xlu0 %2510
    %v2513 = vadd.f32 %v1789, %v2511
    %v2514 = vmul.f32 %v2513, 0.5
    %v2515 = vtanh.pop %v2514
    %v2516 = vadd.f32 %v2515, 1.0
    %v2517 = vmul.f32 %v2516, 0.5
    %2518 = vrot.lane.b32.xlu0 %v2504, 112
    %v2519 = vpop.permute.xlu0 %2518
    %v2521 = vmul.f32 %v2517, %v2519
    %2523 = vrot.lane.b32.xlu0 %v2521, 32
    %v2524 = vpop.permute.xlu0 %2523
    %v2526 = vadd.f32 %v1789, %v2524
    %v2527 = vtanh.pop %v2526
    %v2528 = vsub.f32 1.0, %v2517
    %2530 = vrot.lane.b32.xlu0 %v2461, 48
    %v2531 = vpop.permute.xlu0 %2530
    %v2533 = vmul.f32 %v2528, %v2531
    %2535 = vrot.lane.b32.xlu0 %v2527, 112
    %v2536 = vpop.permute.xlu0 %2535
    %v2538 = vmul.f32 %v2517, %v2536
    %v2539 = vadd.f32 %v2533, %v2538
    %v2540 = vpack.c.bf16 %v2539, %v2539
    %2542 = vrot.lane.b32.xlu0 %v2540, 96
    %v2543 = vpop.permute.xlu0 %2542
    %v2545 = vsel %vm578, %v2543, 0
    %2547 = vmatprep.subr.bf16.mxu0 0
    %2548 = vmatpush1.bf16.msra.mxu0 %v1837
    %2549 = vmatprep.subr.bf16.mxu0 0
    %2550 = vmatpush1.bf16.msra.mxu0 0
    %2551 = vmatprep.subr.bf16.mxu0 0
    %2552 = vmatpush1.bf16.msra.mxu0 0
    %2553 = vmatprep.subr.bf16.mxu0 0
    %2554 = vmatpush1.bf16.msra.mxu0 0
    %2555 = vmatprep.subr.bf16.mxu0 0
    %2556 = vmatpush1.bf16.msra.mxu0 0
    %2557 = vmatprep.subr.bf16.mxu0 0
    %2558 = vmatpush1.bf16.msra.mxu0 0
    %2559 = vmatprep.subr.bf16.mxu0 0
    %2560 = vmatpush1.bf16.msra.mxu0 0
    %2561 = vmatprep.subr.bf16.mxu0 0
    %2562 = vmatpush1.bf16.msra.mxu0 0
    %2563 = vmatprep.subr.bf16.mxu0 0
    %2564 = vmatpush1.bf16.msra.mxu0 0
    %2565 = vmatprep.subr.bf16.mxu0 0
    %2566 = vmatpush1.bf16.msra.mxu0 0
    %2567 = vmatprep.subr.bf16.mxu0 0
    %2568 = vmatpush1.bf16.msra.mxu0 0
    %2569 = vmatprep.subr.bf16.mxu0 0
    %2570 = vmatpush1.bf16.msra.mxu0 0
    %2571 = vmatprep.subr.bf16.mxu0 0
    %2572 = vmatpush1.bf16.msra.mxu0 0
    %2573 = vmatprep.subr.bf16.mxu0 0
    %2574 = vmatpush1.bf16.msra.mxu0 0
    %2575 = vmatprep.subr.bf16.mxu0 0
    %2576 = vmatpush1.bf16.msra.mxu0 0
    %2577 = vmatprep.subr.bf16.mxu0 0
    %2578 = vmatpush1.bf16.msra.mxu0 0
    %2579 = vmatprep.mubr.bf16.mxu0 0
    %2580 = vmatmul.mubr.bf16.gmra.mrb[0].mxu0 %v2545
    %v2581 = vpop.f32.mrb[0].mxu0
    %v2582 = vadd.f32 0.0, %v2581
    %v2583 = vpop.f32.mrb[0].mxu0
    %v2584 = vpop.f32.mrb[0].mxu0
    %v2585 = vpop.f32.mrb[0].mxu0
    %2586 = vdwg.mxu0
    %v2587 = vpack.c.bf16 %v2582, %v2582
    %v2589 = vsel %vm1419, %v2587, 0
    %2591 = vmatprep.subr.bf16.mxu0 0
    %2592 = vmatpush1.bf16.msra.mxu0 %v2589
    %2593 = vmatprep.subr.bf16.mxu0 0
    %2594 = vmatpush1.bf16.msra.mxu0 0
    %2595 = vmatprep.subr.bf16.mxu0 0
    %2596 = vmatpush1.bf16.msra.mxu0 0
    %2597 = vmatprep.subr.bf16.mxu0 0
    %2598 = vmatpush1.bf16.msra.mxu0 0
    %2599 = vmatprep.subr.bf16.mxu0 0
    %2600 = vmatpush1.bf16.msra.mxu0 0
    %2601 = vmatprep.subr.bf16.mxu0 0
    %2602 = vmatpush1.bf16.msra.mxu0 0
    %2603 = vmatprep.subr.bf16.mxu0 0
    %2604 = vmatpush1.bf16.msra.mxu0 0
    %2605 = vmatprep.subr.bf16.mxu0 0
    %2606 = vmatpush1.bf16.msra.mxu0 0
    %2607 = vmatprep.subr.bf16.mxu0 0
    %2608 = vmatpush1.bf16.msra.mxu0 0
    %2609 = vmatprep.subr.bf16.mxu0 0
    %2610 = vmatpush1.bf16.msra.mxu0 0
    %2611 = vmatprep.subr.bf16.mxu0 0
    %2612 = vmatpush1.bf16.msra.mxu0 0
    %2613 = vmatprep.subr.bf16.mxu0 0
    %2614 = vmatpush1.bf16.msra.mxu0 0
    %2615 = vmatprep.subr.bf16.mxu0 0
    %2616 = vmatpush1.bf16.msra.mxu0 0
    %2617 = vmatprep.subr.bf16.mxu0 0
    %2618 = vmatpush1.bf16.msra.mxu0 0
    %2619 = vmatprep.subr.bf16.mxu0 0
    %2620 = vmatpush1.bf16.msra.mxu0 0
    %2621 = vmatprep.subr.bf16.mxu0 0
    %2622 = vmatpush1.bf16.msra.mxu0 0
    %2623 = vmatprep.mubr.bf16.mxu0 0
    %2624 = vmatmul.mubr.bf16.gmra.mrb[0].mxu0 %v1890
    %v2625 = vpop.f32.mrb[0].mxu0
    %v2626 = vadd.f32 %v1887, %v2625
    %v2627 = vpop.f32.mrb[0].mxu0
    %v2628 = vpop.f32.mrb[0].mxu0
    %v2629 = vpop.f32.mrb[0].mxu0
    %2630 = vdwg.mxu0
    %v2631 = vtanh.pop %v2626
    %2633 = vrot.lane.b32.xlu0 %v2631, 32
    %v2634 = vpop.permute.xlu0 %2633
    %v2636 = vadd.f32 %v2539, %v2634
    %v2637 = vpack.c.bf16 %v2636, %v2636
    %2639 = vrot.lane.b32.xlu0 %v2637, 96
    %v2640 = vpop.permute.xlu0 %2639
    %v2642 = vsel %vm578, %v2640, 0
    %2644 = vmatprep.subr.bf16.mxu0 0
    %2645 = vmatpush1.bf16.msra.mxu0 %v1942
    %2646 = vmatprep.subr.bf16.mxu0 0
    %2647 = vmatpush1.bf16.msra.mxu0 0
    %2648 = vmatprep.subr.bf16.mxu0 0
    %2649 = vmatpush1.bf16.msra.mxu0 0
    %2650 = vmatprep.subr.bf16.mxu0 0
    %2651 = vmatpush1.bf16.msra.mxu0 0
    %2652 = vmatprep.subr.bf16.mxu0 0
    %2653 = vmatpush1.bf16.msra.mxu0 0
    %2654 = vmatprep.subr.bf16.mxu0 0
    %2655 = vmatpush1.bf16.msra.mxu0 0
    %2656 = vmatprep.subr.bf16.mxu0 0
    %2657 = vmatpush1.bf16.msra.mxu0 0
    %2658 = vmatprep.subr.bf16.mxu0 0
    %2659 = vmatpush1.bf16.msra.mxu0 0
    %2660 = vmatprep.subr.bf16.mxu0 0
    %2661 = vmatpush1.bf16.msra.mxu0 0
    %2662 = vmatprep.subr.bf16.mxu0 0
    %2663 = vmatpush1.bf16.msra.mxu0 0
    %2664 = vmatprep.subr.bf16.mxu0 0
    %2665 = vmatpush1.bf16.msra.mxu0 0
    %2666 = vmatprep.subr.bf16.mxu0 0
    %2667 = vmatpush1.bf16.msra.mxu0 0
    %2668 = vmatprep.subr.bf16.mxu0 0
    %2669 = vmatpush1.bf16.msra.mxu0 0
    %2670 = vmatprep.subr.bf16.mxu0 0
    %2671 = vmatpush1.bf16.msra.mxu0 0
    %2672 = vmatprep.subr.bf16.mxu0 0
    %2673 = vmatpush1.bf16.msra.mxu0 0
    %2674 = vmatprep.subr.bf16.mxu0 0
    %2675 = vmatpush1.bf16.msra.mxu0 0
    %2676 = vmatprep.mubr.bf16.mxu0 0
    %2677 = vmatmul.mubr.bf16.gmra.mrb[0].mxu0 %v2642
    %v2678 = vpop.f32.mrb[0].mxu0
    %v2679 = vadd.f32 0.0, %v2678
    %v2680 = vpop.f32.mrb[0].mxu0
    %v2681 = vpop.f32.mrb[0].mxu0
    %v2682 = vpop.f32.mrb[0].mxu0
    %2683 = vdwg.mxu0
    %2685 = vrot.lane.b32.xlu0 %v2679, 64
    %v2686 = vpop.permute.xlu0 %2685
    %v2688 = vadd.f32 %v1789, %v2686
    %v2689 = vmul.f32 %v2688, 0.5
    %v2690 = vtanh.pop %v2689
    %v2691 = vadd.f32 %v2690, 1.0
    %v2692 = vmul.f32 %v2691, 0.5
    %2693 = vrot.lane.b32.xlu0 %v2679, 32
    %v2694 = vpop.permute.xlu0 %2693
    %v2696 = vmul.f32 %v2692, %v2694
    %2698 = vrot.lane.b32.xlu0 %v2696, 32
    %v2699 = vpop.permute.xlu0 %2698
    %v2701 = vadd.f32 %v1789, %v2699
    %v2702 = vtanh.pop %v2701
    %v2703 = vsub.f32 1.0, %v2692
    %2705 = vrot.lane.b32.xlu0 %v2636, 48
    %v2706 = vpop.permute.xlu0 %2705
    %v2708 = vmul.f32 %v2703, %v2706
    %2710 = vrot.lane.b32.xlu0 %v2702, 112
    %v2711 = vpop.permute.xlu0 %2710
    %v2713 = vmul.f32 %v2692, %v2711
    %v2714 = vadd.f32 %v2708, %v2713
    %v2715 = vpack.c.bf16 %v2714, %v2714
    %2717 = vrot.lane.b32.xlu0 %v2715, 48
    %v2718 = vpop.permute.xlu0 %2717
    %v2720 = vsel %vm578, %v2718, 0
    %2722 = vmatprep.subr.bf16.mxu0 0
    %2723 = vmatpush1.bf16.msra.mxu0 %v1837
    %2724 = vmatprep.subr.bf16.mxu0 0
    %2725 = vmatpush1.bf16.msra.mxu0 0
    %2726 = vmatprep.subr.bf16.mxu0 0
    %2727 = vmatpush1.bf16.msra.mxu0 0
    %2728 = vmatprep.subr.bf16.mxu0 0
    %2729 = vmatpush1.bf16.msra.mxu0 0
    %2730 = vmatprep.subr.bf16.mxu0 0
    %2731 = vmatpush1.bf16.msra.mxu0 0
    %2732 = vmatprep.subr.bf16.mxu0 0
    %2733 = vmatpush1.bf16.msra.mxu0 0
    %2734 = vmatprep.subr.bf16.mxu0 0
    %2735 = vmatpush1.bf16.msra.mxu0 0
    %2736 = vmatprep.subr.bf16.mxu0 0
    %2737 = vmatpush1.bf16.msra.mxu0 0
    %2738 = vmatprep.subr.bf16.mxu0 0
    %2739 = vmatpush1.bf16.msra.mxu0 0
    %2740 = vmatprep.subr.bf16.mxu0 0
    %2741 = vmatpush1.bf16.msra.mxu0 0
    %2742 = vmatprep.subr.bf16.mxu0 0
    %2743 = vmatpush1.bf16.msra.mxu0 0
    %2744 = vmatprep.subr.bf16.mxu0 0
    %2745 = vmatpush1.bf16.msra.mxu0 0
    %2746 = vmatprep.subr.bf16.mxu0 0
    %2747 = vmatpush1.bf16.msra.mxu0 0
    %2748 = vmatprep.subr.bf16.mxu0 0
    %2749 = vmatpush1.bf16.msra.mxu0 0
    %2750 = vmatprep.subr.bf16.mxu0 0
    %2751 = vmatpush1.bf16.msra.mxu0 0
    %2752 = vmatprep.subr.bf16.mxu0 0
    %2753 = vmatpush1.bf16.msra.mxu0 0
    %2754 = vmatprep.mubr.bf16.mxu0 0
    %2755 = vmatmul.mubr.bf16.gmra.mrb[0].mxu0 %v2720
    %v2756 = vpop.f32.mrb[0].mxu0
    %v2757 = vadd.f32 0.0, %v2756
    %v2758 = vpop.f32.mrb[0].mxu0
    %v2759 = vpop.f32.mrb[0].mxu0
    %v2760 = vpop.f32.mrb[0].mxu0
    %2761 = vdwg.mxu0
    %v2762 = vpack.c.bf16 %v2757, %v2757
    %v2764 = vsel %vm1419, %v2762, 0
    %2766 = vmatprep.subr.bf16.mxu0 0
    %2767 = vmatpush1.bf16.msra.mxu0 %v2764
    %2768 = vmatprep.subr.bf16.mxu0 0
    %2769 = vmatpush1.bf16.msra.mxu0 0
    %2770 = vmatprep.subr.bf16.mxu0 0
    %2771 = vmatpush1.bf16.msra.mxu0 0
    %2772 = vmatprep.subr.bf16.mxu0 0
    %2773 = vmatpush1.bf16.msra.mxu0 0
    %2774 = vmatprep.subr.bf16.mxu0 0
    %2775 = vmatpush1.bf16.msra.mxu0 0
    %2776 = vmatprep.subr.bf16.mxu0 0
    %2777 = vmatpush1.bf16.msra.mxu0 0
    %2778 = vmatprep.subr.bf16.mxu0 0
    %2779 = vmatpush1.bf16.msra.mxu0 0
    %2780 = vmatprep.subr.bf16.mxu0 0
    %2781 = vmatpush1.bf16.msra.mxu0 0
    %2782 = vmatprep.subr.bf16.mxu0 0
    %2783 = vmatpush1.bf16.msra.mxu0 0
    %2784 = vmatprep.subr.bf16.mxu0 0
    %2785 = vmatpush1.bf16.msra.mxu0 0
    %2786 = vmatprep.subr.bf16.mxu0 0
    %2787 = vmatpush1.bf16.msra.mxu0 0
    %2788 = vmatprep.subr.bf16.mxu0 0
    %2789 = vmatpush1.bf16.msra.mxu0 0
    %2790 = vmatprep.subr.bf16.mxu0 0
    %2791 = vmatpush1.bf16.msra.mxu0 0
    %2792 = vmatprep.subr.bf16.mxu0 0
    %2793 = vmatpush1.bf16.msra.mxu0 0
    %2794 = vmatprep.subr.bf16.mxu0 0
    %2795 = vmatpush1.bf16.msra.mxu0 0
    %2796 = vmatprep.subr.bf16.mxu0 0
    %2797 = vmatpush1.bf16.msra.mxu0 0
    %2798 = vmatprep.mubr.bf16.mxu0 0
    %2799 = vmatmul.mubr.bf16.gmra.mrb[0].mxu0 %v1890
    %v2800 = vpop.f32.mrb[0].mxu0
    %v2801 = vadd.f32 %v1887, %v2800
    %v2802 = vpop.f32.mrb[0].mxu0
    %v2803 = vpop.f32.mrb[0].mxu0
    %v2804 = vpop.f32.mrb[0].mxu0
    %2805 = vdwg.mxu0
    %v2806 = vtanh.pop %v2801
    %2808 = vrot.lane.b32.xlu0 %v2806, 80
    %v2809 = vpop.permute.xlu0 %2808
    %v2811 = vadd.f32 %v2714, %v2809
    %v2812 = vpack.c.bf16 %v2811, %v2811
    %2814 = vrot.lane.b32.xlu0 %v2812, 48
    %v2815 = vpop.permute.xlu0 %2814
    %v2817 = vsel %vm578, %v2815, 0
    %2819 = vmatprep.subr.bf16.mxu0 0
    %2820 = vmatpush1.bf16.msra.mxu0 %v1942
    %2821 = vmatprep.subr.bf16.mxu0 0
    %2822 = vmatpush1.bf16.msra.mxu0 0
    %2823 = vmatprep.subr.bf16.mxu0 0
    %2824 = vmatpush1.bf16.msra.mxu0 0
    %2825 = vmatprep.subr.bf16.mxu0 0
    %2826 = vmatpush1.bf16.msra.mxu0 0
    %2827 = vmatprep.subr.bf16.mxu0 0
    %2828 = vmatpush1.bf16.msra.mxu0 0
    %2829 = vmatprep.subr.bf16.mxu0 0
    %2830 = vmatpush1.bf16.msra.mxu0 0
    %2831 = vmatprep.subr.bf16.mxu0 0
    %2832 = vmatpush1.bf16.msra.mxu0 0
    %2833 = vmatprep.subr.bf16.mxu0 0
    %2834 = vmatpush1.bf16.msra.mxu0 0
    %2835 = vmatprep.subr.bf16.mxu0 0
    %2836 = vmatpush1.bf16.msra.mxu0 0
    %2837 = vmatprep.subr.bf16.mxu0 0
    %2838 = vmatpush1.bf16.msra.mxu0 0
    %2839 = vmatprep.subr.bf16.mxu0 0
    %2840 = vmatpush1.bf16.msra.mxu0 0
    %2841 = vmatprep.subr.bf16.mxu0 0
    %2842 = vmatpush1.bf16.msra.mxu0 0
    %2843 = vmatprep.subr.bf16.mxu0 0
    %2844 = vmatpush1.bf16.msra.mxu0 0
    %2845 = vmatprep.subr.bf16.mxu0 0
    %2846 = vmatpush1.bf16.msra.mxu0 0
    %2847 = vmatprep.subr.bf16.mxu0 0
    %2848 = vmatpush1.bf16.msra.mxu0 0
    %2849 = vmatprep.subr.bf16.mxu0 0
    %2850 = vmatpush1.bf16.msra.mxu0 0
    %2851 = vmatprep.mubr.bf16.mxu0 0
    %2852 = vmatmul.mubr.bf16.gmra.mrb[0].mxu0 %v2817
    %v2853 = vpop.f32.mrb[0].mxu0
    %v2854 = vadd.f32 0.0, %v2853
    %v2855 = vpop.f32.mrb[0].mxu0
    %v2856 = vpop.f32.mrb[0].mxu0
    %v2857 = vpop.f32.mrb[0].mxu0
    %2858 = vdwg.mxu0
    %2860 = vrot.lane.b32.xlu0 %v2854, 112
    %v2861 = vpop.permute.xlu0 %2860
    %v2863 = vadd.f32 %v1789, %v2861
    %v2864 = vmul.f32 %v2863, 0.5
    %v2865 = vtanh.pop %v2864
    %v2866 = vadd.f32 %v2865, 1.0
    %v2867 = vmul.f32 %v2866, 0.5
    %v2868 = vadd.f32 %v1828, %v2861
    %v2869 = vmul.f32 %v2868, 0.5
    %v2870 = vtanh.pop %v2869
    %v2871 = vadd.f32 %v2870, 1.0
    %v2872 = vmul.f32 %v2871, 0.5
    %2873 = vrot.lane.b32.xlu0 %v2854, 80
    %v2874 = vpop.permute.xlu0 %2873
    %v2876 = vmul.f32 %v2867, %v2874
    %2878 = vrot.lane.b32.xlu0 %v2876, 32
    %v2879 = vpop.permute.xlu0 %2878
    %v2881 = vadd.f32 %v1828, %v2879
    %v2882 = vtanh.pop %v2881
    %v2883 = vsub.f32 1.0, %v2872
    %2885 = vrot.lane.b32.xlu0 %v2811, 48
    %v2886 = vpop.permute.xlu0 %2885
    %v2888 = vmul.f32 %v2883, %v2886
    %2890 = vrot.lane.b32.xlu0 %v2882, 112
    %v2891 = vpop.permute.xlu0 %2890
    %v2893 = vmul.f32 %v2872, %v2891
    %v2894 = vadd.f32 %v2888, %v2893
    %v2895 = vpack.c.bf16 %v2894, %v2894
    %v2897 = vsel %vm578, %v2895, 0
    %2899 = vmatprep.subr.bf16.mxu0 0
    %2900 = vmatpush1.bf16.msra.mxu0 %v1837
    %2901 = vmatprep.subr.bf16.mxu0 0
    %2902 = vmatpush1.bf16.msra.mxu0 0
    %2903 = vmatprep.subr.bf16.mxu0 0
    %2904 = vmatpush1.bf16.msra.mxu0 0
    %2905 = vmatprep.subr.bf16.mxu0 0
    %2906 = vmatpush1.bf16.msra.mxu0 0
    %2907 = vmatprep.subr.bf16.mxu0 0
    %2908 = vmatpush1.bf16.msra.mxu0 0
    %2909 = vmatprep.subr.bf16.mxu0 0
    %2910 = vmatpush1.bf16.msra.mxu0 0
    %2911 = vmatprep.subr.bf16.mxu0 0
    %2912 = vmatpush1.bf16.msra.mxu0 0
    %2913 = vmatprep.subr.bf16.mxu0 0
    %2914 = vmatpush1.bf16.msra.mxu0 0
    %2915 = vmatprep.subr.bf16.mxu0 0
    %2916 = vmatpush1.bf16.msra.mxu0 0
    %2917 = vmatprep.subr.bf16.mxu0 0
    %2918 = vmatpush1.bf16.msra.mxu0 0
    %2919 = vmatprep.subr.bf16.mxu0 0
    %2920 = vmatpush1.bf16.msra.mxu0 0
    %2921 = vmatprep.subr.bf16.mxu0 0
    %2922 = vmatpush1.bf16.msra.mxu0 0
    %2923 = vmatprep.subr.bf16.mxu0 0
    %2924 = vmatpush1.bf16.msra.mxu0 0
    %2925 = vmatprep.subr.bf16.mxu0 0
    %2926 = vmatpush1.bf16.msra.mxu0 0
    %2927 = vmatprep.subr.bf16.mxu0 0
    %2928 = vmatpush1.bf16.msra.mxu0 0
    %2929 = vmatprep.subr.bf16.mxu0 0
    %2930 = vmatpush1.bf16.msra.mxu0 0
    %2931 = vmatprep.mubr.bf16.mxu0 0
    %2932 = vmatmul.mubr.bf16.gmra.mrb[0].mxu0 %v2897
    %v2933 = vpop.f32.mrb[0].mxu0
    %v2934 = vadd.f32 0.0, %v2933
    %v2935 = vpop.f32.mrb[0].mxu0
    %v2936 = vpop.f32.mrb[0].mxu0
    %v2937 = vpop.f32.mrb[0].mxu0
    %2938 = vdwg.mxu0
    %v2939 = vpack.c.bf16 %v2934, %v2934
    %v2941 = vsel %vm1419, %v2939, 0
    %2943 = vmatprep.subr.bf16.mxu0 0
    %2944 = vmatpush1.bf16.msra.mxu0 %v2941
    %2945 = vmatprep.subr.bf16.mxu0 0
    %2946 = vmatpush1.bf16.msra.mxu0 0
    %2947 = vmatprep.subr.bf16.mxu0 0
    %2948 = vmatpush1.bf16.msra.mxu0 0
    %2949 = vmatprep.subr.bf16.mxu0 0
    %2950 = vmatpush1.bf16.msra.mxu0 0
    %2951 = vmatprep.subr.bf16.mxu0 0
    %2952 = vmatpush1.bf16.msra.mxu0 0
    %2953 = vmatprep.subr.bf16.mxu0 0
    %2954 = vmatpush1.bf16.msra.mxu0 0
    %2955 = vmatprep.subr.bf16.mxu0 0
    %2956 = vmatpush1.bf16.msra.mxu0 0
    %2957 = vmatprep.subr.bf16.mxu0 0
    %2958 = vmatpush1.bf16.msra.mxu0 0
    %2959 = vmatprep.subr.bf16.mxu0 0
    %2960 = vmatpush1.bf16.msra.mxu0 0
    %2961 = vmatprep.subr.bf16.mxu0 0
    %2962 = vmatpush1.bf16.msra.mxu0 0
    %2963 = vmatprep.subr.bf16.mxu0 0
    %2964 = vmatpush1.bf16.msra.mxu0 0
    %2965 = vmatprep.subr.bf16.mxu0 0
    %2966 = vmatpush1.bf16.msra.mxu0 0
    %2967 = vmatprep.subr.bf16.mxu0 0
    %2968 = vmatpush1.bf16.msra.mxu0 0
    %2969 = vmatprep.subr.bf16.mxu0 0
    %2970 = vmatpush1.bf16.msra.mxu0 0
    %2971 = vmatprep.subr.bf16.mxu0 0
    %2972 = vmatpush1.bf16.msra.mxu0 0
    %2973 = vmatprep.subr.bf16.mxu0 0
    %2974 = vmatpush1.bf16.msra.mxu0 0
    %2975 = vmatprep.mubr.bf16.mxu0 0
    %2976 = vmatmul.mubr.bf16.gmra.mrb[0].mxu0 %v1890
    %v2977 = vpop.f32.mrb[0].mxu0
    %v2978 = vadd.f32 %v1887, %v2977
    %v2979 = vpop.f32.mrb[0].mxu0
    %v2980 = vpop.f32.mrb[0].mxu0
    %v2981 = vpop.f32.mrb[0].mxu0
    %2982 = vdwg.mxu0
    %v2983 = vtanh.pop %v2978
    %v2984 = vadd.f32 %v2894, %v2983
    %v2985 = vpack.c.bf16 %v2984, %v2984
    %v2987 = vsel %vm578, %v2985, 0
    %2989 = vmatprep.subr.bf16.mxu0 0
    %2990 = vmatpush1.bf16.msra.mxu0 %v1942
    %2991 = vmatprep.subr.bf16.mxu0 0
    %2992 = vmatpush1.bf16.msra.mxu0 0
    %2993 = vmatprep.subr.bf16.mxu0 0
    %2994 = vmatpush1.bf16.msra.mxu0 0
    %2995 = vmatprep.subr.bf16.mxu0 0
    %2996 = vmatpush1.bf16.msra.mxu0 0
    %2997 = vmatprep.subr.bf16.mxu0 0
    %2998 = vmatpush1.bf16.msra.mxu0 0
    %2999 = vmatprep.subr.bf16.mxu0 0
    %3000 = vmatpush1.bf16.msra.mxu0 0
    %3001 = vmatprep.subr.bf16.mxu0 0
    %3002 = vmatpush1.bf16.msra.mxu0 0
    %3003 = vmatprep.subr.bf16.mxu0 0
    %3004 = vmatpush1.bf16.msra.mxu0 0
    %3005 = vmatprep.subr.bf16.mxu0 0
    %3006 = vmatpush1.bf16.msra.mxu0 0
    %3007 = vmatprep.subr.bf16.mxu0 0
    %3008 = vmatpush1.bf16.msra.mxu0 0
    %3009 = vmatprep.subr.bf16.mxu0 0
    %3010 = vmatpush1.bf16.msra.mxu0 0
    %3011 = vmatprep.subr.bf16.mxu0 0
    %3012 = vmatpush1.bf16.msra.mxu0 0
    %3013 = vmatprep.subr.bf16.mxu0 0
    %3014 = vmatpush1.bf16.msra.mxu0 0
    %3015 = vmatprep.subr.bf16.mxu0 0
    %3016 = vmatpush1.bf16.msra.mxu0 0
    %3017 = vmatprep.subr.bf16.mxu0 0
    %3018 = vmatpush1.bf16.msra.mxu0 0
    %3019 = vmatprep.subr.bf16.mxu0 0
    %3020 = vmatpush1.bf16.msra.mxu0 0
    %3021 = vmatprep.mubr.bf16.mxu0 0
    %3022 = vmatmul.mubr.bf16.gmra.mrb[0].mxu0 %v2987
    %v3023 = vpop.f32.mrb[0].mxu0
    %v3024 = vadd.f32 0.0, %v3023
    %v3025 = vpop.f32.mrb[0].mxu0
    %v3026 = vpop.f32.mrb[0].mxu0
    %v3027 = vpop.f32.mrb[0].mxu0
    %3028 = vdwg.mxu0
    %3030 = vrot.lane.b32.xlu0 %v3024, 32
    %v3031 = vpop.permute.xlu0 %3030
    %v3033 = vadd.f32 %v1828, %v3031
    %v3034 = vmul.f32 %v3033, 0.5
    %v3035 = vtanh.pop %v3034
    %v3036 = vadd.f32 %v3035, 1.0
    %v3037 = vmul.f32 %v3036, 0.5
    %v3038 = vmul.f32 %v3037, %v3024
    %3040 = vrot.lane.b32.xlu0 %v3038, 32
    %v3041 = vpop.permute.xlu0 %3040
    %v3043 = vadd.f32 %v1828, %v3041
    %v3044 = vtanh.pop %v3043
    %v3045 = vsub.f32 1.0, %v3037
    %3047 = vrot.lane.b32.xlu0 %v2984, 48
    %v3048 = vpop.permute.xlu0 %3047
    %v3050 = vmul.f32 %v3045, %v3048
    %3052 = vrot.lane.b32.xlu0 %v3044, 112
    %v3053 = vpop.permute.xlu0 %3052
    %v3055 = vmul.f32 %v3037, %v3053
    %v3056 = vadd.f32 %v3050, %v3055
    %v3057 = vpack.c.bf16 %v3056, %v3056
    %3059 = vrot.lane.b32.xlu0 %v3057, 80
    %v3060 = vpop.permute.xlu0 %3059
    %v3062 = vsel %vm578, %v3060, 0
    %3064 = vmatprep.subr.bf16.mxu0 0
    %3065 = vmatpush1.bf16.msra.mxu0 %v1837
    %3066 = vmatprep.subr.bf16.mxu0 0
    %3067 = vmatpush1.bf16.msra.mxu0 0
    %3068 = vmatprep.subr.bf16.mxu0 0
    %3069 = vmatpush1.bf16.msra.mxu0 0
    %3070 = vmatprep.subr.bf16.mxu0 0
    %3071 = vmatpush1.bf16.msra.mxu0 0
    %3072 = vmatprep.subr.bf16.mxu0 0
    %3073 = vmatpush1.bf16.msra.mxu0 0
    %3074 = vmatprep.subr.bf16.mxu0 0
    %3075 = vmatpush1.bf16.msra.mxu0 0
    %3076 = vmatprep.subr.bf16.mxu0 0
    %3077 = vmatpush1.bf16.msra.mxu0 0
    %3078 = vmatprep.subr.bf16.mxu0 0
    %3079 = vmatpush1.bf16.msra.mxu0 0
    %3080 = vmatprep.subr.bf16.mxu0 0
    %3081 = vmatpush1.bf16.msra.mxu0 0
    %3082 = vmatprep.subr.bf16.mxu0 0
    %3083 = vmatpush1.bf16.msra.mxu0 0
    %3084 = vmatprep.subr.bf16.mxu0 0
    %3085 = vmatpush1.bf16.msra.mxu0 0
    %3086 = vmatprep.subr.bf16.mxu0 0
    %3087 = vmatpush1.bf16.msra.mxu0 0
    %3088 = vmatprep.subr.bf16.mxu0 0
    %3089 = vmatpush1.bf16.msra.mxu0 0
    %3090 = vmatprep.subr.bf16.mxu0 0
    %3091 = vmatpush1.bf16.msra.mxu0 0
    %3092 = vmatprep.subr.bf16.mxu0 0
    %3093 = vmatpush1.bf16.msra.mxu0 0
    %3094 = vmatprep.subr.bf16.mxu0 0
    %3095 = vmatpush1.bf16.msra.mxu0 0
    %3096 = vmatprep.mubr.bf16.mxu0 0
    %3097 = vmatmul.mubr.bf16.gmra.mrb[0].mxu0 %v3062
    %v3098 = vpop.f32.mrb[0].mxu0
    %v3099 = vadd.f32 0.0, %v3098
    %v3100 = vpop.f32.mrb[0].mxu0
    %v3101 = vpop.f32.mrb[0].mxu0
    %v3102 = vpop.f32.mrb[0].mxu0
    %3103 = vdwg.mxu0
    %v3104 = vpack.c.bf16 %v3099, %v3099
    %v3106 = vsel %vm1419, %v3104, 0
    %3108 = vmatprep.subr.bf16.mxu0 0
    %3109 = vmatpush1.bf16.msra.mxu0 %v3106
    %3110 = vmatprep.subr.bf16.mxu0 0
    %3111 = vmatpush1.bf16.msra.mxu0 0
    %3112 = vmatprep.subr.bf16.mxu0 0
    %3113 = vmatpush1.bf16.msra.mxu0 0
    %3114 = vmatprep.subr.bf16.mxu0 0
    %3115 = vmatpush1.bf16.msra.mxu0 0
    %3116 = vmatprep.subr.bf16.mxu0 0
    %3117 = vmatpush1.bf16.msra.mxu0 0
    %3118 = vmatprep.subr.bf16.mxu0 0
    %3119 = vmatpush1.bf16.msra.mxu0 0
    %3120 = vmatprep.subr.bf16.mxu0 0
    %3121 = vmatpush1.bf16.msra.mxu0 0
    %3122 = vmatprep.subr.bf16.mxu0 0
    %3123 = vmatpush1.bf16.msra.mxu0 0
    %3124 = vmatprep.subr.bf16.mxu0 0
    %3125 = vmatpush1.bf16.msra.mxu0 0
    %3126 = vmatprep.subr.bf16.mxu0 0
    %3127 = vmatpush1.bf16.msra.mxu0 0
    %3128 = vmatprep.subr.bf16.mxu0 0
    %3129 = vmatpush1.bf16.msra.mxu0 0
    %3130 = vmatprep.subr.bf16.mxu0 0
    %3131 = vmatpush1.bf16.msra.mxu0 0
    %3132 = vmatprep.subr.bf16.mxu0 0
    %3133 = vmatpush1.bf16.msra.mxu0 0
    %3134 = vmatprep.subr.bf16.mxu0 0
    %3135 = vmatpush1.bf16.msra.mxu0 0
    %3136 = vmatprep.subr.bf16.mxu0 0
    %3137 = vmatpush1.bf16.msra.mxu0 0
    %3138 = vmatprep.subr.bf16.mxu0 0
    %3139 = vmatpush1.bf16.msra.mxu0 0
    %3140 = vmatprep.mubr.bf16.mxu0 0
    %3141 = vmatmul.mubr.bf16.gmra.mrb[0].mxu0 %v1890
    %v3142 = vpop.f32.mrb[0].mxu0
    %v3143 = vadd.f32 %v1887, %v3142
    %v3144 = vpop.f32.mrb[0].mxu0
    %v3145 = vpop.f32.mrb[0].mxu0
    %v3146 = vpop.f32.mrb[0].mxu0
    %3147 = vdwg.mxu0
    %v3148 = vtanh.pop %v3143
    %3150 = vrot.lane.b32.xlu0 %v3148, 48
    %v3151 = vpop.permute.xlu0 %3150
    %v3153 = vadd.f32 %v3056, %v3151
    %v3154 = vpack.c.bf16 %v3153, %v3153
    %3156 = vrot.lane.b32.xlu0 %v3154, 80
    %v3157 = vpop.permute.xlu0 %3156
    %v3159 = vsel %vm578, %v3157, 0
    %3161 = vmatprep.subr.bf16.mxu0 0
    %3162 = vmatpush1.bf16.msra.mxu0 %v1942
    %3163 = vmatprep.subr.bf16.mxu0 0
    %3164 = vmatpush1.bf16.msra.mxu0 0
    %3165 = vmatprep.subr.bf16.mxu0 0
    %3166 = vmatpush1.bf16.msra.mxu0 0
    %3167 = vmatprep.subr.bf16.mxu0 0
    %3168 = vmatpush1.bf16.msra.mxu0 0
    %3169 = vmatprep.subr.bf16.mxu0 0
    %3170 = vmatpush1.bf16.msra.mxu0 0
    %3171 = vmatprep.subr.bf16.mxu0 0
    %3172 = vmatpush1.bf16.msra.mxu0 0
    %3173 = vmatprep.subr.bf16.mxu0 0
    %3174 = vmatpush1.bf16.msra.mxu0 0
    %3175 = vmatprep.subr.bf16.mxu0 0
    %3176 = vmatpush1.bf16.msra.mxu0 0
    %3177 = vmatprep.subr.bf16.mxu0 0
    %3178 = vmatpush1.bf16.msra.mxu0 0
    %3179 = vmatprep.subr.bf16.mxu0 0
    %3180 = vmatpush1.bf16.msra.mxu0 0
    %3181 = vmatprep.subr.bf16.mxu0 0
    %3182 = vmatpush1.bf16.msra.mxu0 0
    %3183 = vmatprep.subr.bf16.mxu0 0
    %3184 = vmatpush1.bf16.msra.mxu0 0
    %3185 = vmatprep.subr.bf16.mxu0 0
    %3186 = vmatpush1.bf16.msra.mxu0 0
    %3187 = vmatprep.subr.bf16.mxu0 0
    %3188 = vmatpush1.bf16.msra.mxu0 0
    %3189 = vmatprep.subr.bf16.mxu0 0
    %3190 = vmatpush1.bf16.msra.mxu0 0
    %3191 = vmatprep.subr.bf16.mxu0 0
    %3192 = vmatpush1.bf16.msra.mxu0 0
    %3193 = vmatprep.mubr.bf16.mxu0 0
    %3194 = vmatmul.mubr.bf16.gmra.mrb[0].mxu0 %v3159
    %v3195 = vpop.f32.mrb[0].mxu0
    %v3196 = vadd.f32 0.0, %v3195
    %v3197 = vpop.f32.mrb[0].mxu0
    %v3198 = vpop.f32.mrb[0].mxu0
    %v3199 = vpop.f32.mrb[0].mxu0
    %3200 = vdwg.mxu0
    %3202 = vrot.lane.b32.xlu0 %v3196, 80
    %v3203 = vpop.permute.xlu0 %3202
    %v3205 = vadd.f32 %v1828, %v3203
    %v3206 = vmul.f32 %v3205, 0.5
    %v3207 = vtanh.pop %v3206
    %v3208 = vadd.f32 %v3207, 1.0
    %v3209 = vmul.f32 %v3208, 0.5
    %3210 = vrot.lane.b32.xlu0 %v3196, 48
    %v3211 = vpop.permute.xlu0 %3210
    %v3213 = vmul.f32 %v3209, %v3211
    %3215 = vrot.lane.b32.xlu0 %v3213, 32
    %v3216 = vpop.permute.xlu0 %3215
    %v3218 = vadd.f32 %v1828, %v3216
    %v3219 = vtanh.pop %v3218
    %v3220 = vsub.f32 1.0, %v3209
    %3222 = vrot.lane.b32.xlu0 %v3153, 48
    %v3223 = vpop.permute.xlu0 %3222
    %v3225 = vmul.f32 %v3220, %v3223
    %3227 = vrot.lane.b32.xlu0 %v3219, 112
    %v3228 = vpop.permute.xlu0 %3227
    %v3230 = vmul.f32 %v3209, %v3228
    %v3231 = vadd.f32 %v3225, %v3230
    %3233 = vrot.lane.b32.xlu0 %v2014, 112
    %v3234 = vpop.permute.xlu0 %3233
    %3237 = vrot.lane.b32.xlu0 %v2189, 80
    %v3238 = vpop.permute.xlu0 %3237
    %3241 = vrot.lane.b32.xlu0 %v2364, 48
    %v3242 = vpop.permute.xlu0 %3241
    %3245 = vrot.lane.b32.xlu0 %v2539, 16
    %v3246 = vpop.permute.xlu0 %3245
    %3249 = vrot.lane.b32.xlu0 %v2714, 112
    %v3250 = vpop.permute.xlu0 %3249
    %3253 = vrot.lane.b32.xlu0 %v2894, 80
    %v3254 = vpop.permute.xlu0 %3253
    %3257 = vrot.lane.b32.xlu0 %v3056, 48
    %v3258 = vpop.permute.xlu0 %3257
    %3261 = vrot.lane.b32.xlu0 %v3231, 16
    %v3262 = vpop.permute.xlu0 %3261
    %v3264 = vsel %vm578, %v3234, %v3238
    %vm3265 = vcmask 261120
    %v3266 = vsel %vm3265, %v3264, %v3242
    %vm3267 = vcmask 392192
    %v3268 = vsel %vm3267, %v3266, %v3246
    %v3269 = vsel %vm784, %v3268, %v3250
    %vm3270 = vcmask 654336
    %v3271 = vsel %vm3270, %v3269, %v3254
    %vm3272 = vcmask 785408
    %v3273 = vsel %vm3272, %v3271, %v3258
    %vm3274 = vcmask 916480
    %v3275 = vsel %vm3274, %v3273, %v3262
    %3276 = vrot.lane.b32.xlu0 %v2286, 96
    %v3277 = vpop.permute.xlu0 %3276
    %3279 = vrot.lane.b32.xlu0 %v2461, 64
    %v3280 = vpop.permute.xlu0 %3279
    %3282 = vrot.lane.b32.xlu0 %v2636, 32
    %v3283 = vpop.permute.xlu0 %3282
    %3285 = vrot.lane.b32.xlu0 %v2984, 96
    %v3286 = vpop.permute.xlu0 %3285
    %3288 = vrot.lane.b32.xlu0 %v3153, 64
    %v3289 = vpop.permute.xlu0 %3288
    %v3291 = vsel %vm578, %v1936, %v2111
    %v3292 = vsel %vm3265, %v3291, %v3277
    %v3293 = vsel %vm3267, %v3292, %v3280
    %v3294 = vsel %vm784, %v3293, %v3283
    %v3295 = vsel %vm3270, %v3294, %v2811
    %v3296 = vsel %vm3272, %v3295, %v3286
    %v3297 = vsel %vm3274, %v3296, %v3289
    %3298 = vst [vmem:[%s83] sm:$0xff] %v3275
    %3299 = vst [vmem:[%s83 + $0x8] sm:$0xff] %v3297
    %v3300 = vld [vmem:[#allocation27] sm:$0xf]
    %v3301 = vld [vmem:[#allocation27 + $0x4] sm:$0xf]
    %v3302 = vld [vmem:[#allocation27 + $0x8] sm:$0xf]
    %v3303 = vld [vmem:[#allocation27 + $0xc] sm:$0xf]
    %v3304 = vld [vmem:[#allocation27 + $0x10] sm:$0xf]
    %v3305 = vld [vmem:[#allocation27 + $0x14] sm:$0xf]
    %v3306 = vld [vmem:[#allocation27 + $0x18] sm:$0xf]
    %v3307 = vld [vmem:[#allocation27 + $0x1c] sm:$0xf]
    %v3308 = vld [vmem:[#allocation27 + $0x20] sm:$0xf]
    %v3309 = vld [vmem:[#allocation27 + $0x24] sm:$0xf]
    %v3310 = vld [vmem:[#allocation27 + $0x28] sm:$0xf]
    %v3311 = vld [vmem:[#allocation27 + $0x2c] sm:$0xf]
    %v3312 = vld [vmem:[#allocation27 + $0x30] sm:$0xf]
    %v3313 = vld [vmem:[#allocation27 + $0x34] sm:$0xf]
    %v3314 = vld [vmem:[#allocation27 + $0x38] sm:$0xf]
    %v3315 = vld [vmem:[#allocation27 + $0x3c] sm:$0xf]
    %v3316 = vpack.c.bf16 %v3275, %v3275
    %v3317 = vld [vmem:[#allocation28] sm:$0x1]
    %v3319 = vlaneseq
    %v3320 = vshrl.u32 %v3319, 7
    %v3321 = vsub.s32 0, %v3320
    %v3322 = vrot.slane %v3317, %v3321
    %v3340 = vunpack.c.l.b16 %v3300
    %v3341 = vunpack.c.l.b16 %v3301
    %v3342 = vunpack.c.l.b16 %v3302
    %v3343 = vunpack.c.l.b16 %v3303
    %v3344 = vunpack.c.l.b16 %v3304
    %v3345 = vunpack.c.l.b16 %v3305
    %v3346 = vunpack.c.l.b16 %v3306
    %v3347 = vunpack.c.l.b16 %v3307
    %v3348 = vunpack.c.l.b16 %v3308
    %v3349 = vunpack.c.l.b16 %v3309
    %v3350 = vunpack.c.l.b16 %v3310
    %v3351 = vunpack.c.l.b16 %v3311
    %v3352 = vunpack.c.l.b16 %v3312
    %v3353 = vunpack.c.l.b16 %v3313
    %v3354 = vunpack.c.l.b16 %v3314
    %v3355 = vunpack.c.l.b16 %v3315
    %v3356 = vpack.c.b16 %v3341, %v3340
    %v3357 = vpack.c.b16 %v3343, %v3342
    %v3358 = vpack.c.b16 %v3345, %v3344
    %v3359 = vpack.c.b16 %v3347, %v3346
    %v3360 = vpack.c.b16 %v3349, %v3348
    %v3361 = vpack.c.b16 %v3351, %v3350
    %v3362 = vpack.c.b16 %v3353, %v3352
    %v3363 = vpack.c.b16 %v3355, %v3354
    %3372 = vmatprep.subr.bf16.mxu0 0
    %3373 = vmatpush1.bf16.msra.mxu0 %v3356
    %3374 = vmatprep.subr.bf16.mxu0 0
    %3375 = vmatpush1.bf16.msra.mxu0 %v3357
    %3376 = vmatprep.subr.bf16.mxu0 0
    %3377 = vmatpush1.bf16.msra.mxu0 %v3358
    %3378 = vmatprep.subr.bf16.mxu0 0
    %3379 = vmatpush1.bf16.msra.mxu0 %v3359
    %3380 = vmatprep.subr.bf16.mxu0 0
    %3381 = vmatpush1.bf16.msra.mxu0 %v3360
    %3382 = vmatprep.subr.bf16.mxu0 0
    %3383 = vmatpush1.bf16.msra.mxu0 %v3361
    %3384 = vmatprep.subr.bf16.mxu0 0
    %3385 = vmatpush1.bf16.msra.mxu0 %v3362
    %3386 = vmatprep.subr.bf16.mxu0 0
    %3387 = vmatpush1.bf16.msra.mxu0 %v3363
    %3388 = vmatprep.subr.bf16.mxu0 0
    %3389 = vmatpush1.bf16.msra.mxu0 0
    %3390 = vmatprep.subr.bf16.mxu0 0
    %3391 = vmatpush1.bf16.msra.mxu0 0
    %3392 = vmatprep.subr.bf16.mxu0 0
    %3393 = vmatpush1.bf16.msra.mxu0 0
    %3394 = vmatprep.subr.bf16.mxu0 0
    %3395 = vmatpush1.bf16.msra.mxu0 0
    %3396 = vmatprep.subr.bf16.mxu0 0
    %3397 = vmatpush1.bf16.msra.mxu0 0
    %3398 = vmatprep.subr.bf16.mxu0 0
    %3399 = vmatpush1.bf16.msra.mxu0 0
    %3400 = vmatprep.subr.bf16.mxu0 0
    %3401 = vmatpush1.bf16.msra.mxu0 0
    %3402 = vmatprep.subr.bf16.mxu0 0
    %3403 = vmatpush1.bf16.msra.mxu0 0
    %3404 = vmatprep.mubr.bf16.mxu0 0
    %3405 = vmatmul.mubr.bf16.gmra.mrb[0].mxu0 %v3316
    %v3406 = vpop.f32.mrb[0].mxu0
    %v3407 = vadd.f32 %v3322, %v3406
    %v3408 = vpop.f32.mrb[0].mxu0
    %v3409 = vpop.f32.mrb[0].mxu0
    %v3410 = vpop.f32.mrb[0].mxu0
    %3411 = vdwg.mxu0
    %vm3412 = vcmp.gt.f32.partialorder %v3407, 0.0
    %v3413 = vmin.f32 %v3407, 0.0
    %v3414 = vmul.f32 %v3413, 1.442695
    %v3415 = vpow.pop %v3414
    %v3416 = vsub.f32 %v3415, 1.0
    %v3417 = vsel %vm3412, %v3407, %v3416
    %v3418 = vld [vmem:[#allocation30] sm:$0xf]
    %v3419 = vld [vmem:[#allocation30 + $0x4] sm:$0xf]
    %v3420 = vld [vmem:[#allocation30 + $0x8] sm:$0xf]
    %v3421 = vld [vmem:[#allocation30 + $0xc] sm:$0xf]
    %v3422 = vld [vmem:[#allocation30 + $0x10] sm:$0xf]
    %v3423 = vld [vmem:[#allocation30 + $0x14] sm:$0xf]
    %v3424 = vld [vmem:[#allocation30 + $0x18] sm:$0xf]
    %v3425 = vld [vmem:[#allocation30 + $0x1c] sm:$0xf]
    %v3426 = vld [vmem:[#allocation30 + $0x20] sm:$0xf]
    %v3427 = vld [vmem:[#allocation30 + $0x24] sm:$0xf]
    %v3428 = vld [vmem:[#allocation30 + $0x28] sm:$0xf]
    %v3429 = vld [vmem:[#allocation30 + $0x2c] sm:$0xf]
    %v3430 = vld [vmem:[#allocation30 + $0x30] sm:$0xf]
    %v3431 = vld [vmem:[#allocation30 + $0x34] sm:$0xf]
    %v3432 = vld [vmem:[#allocation30 + $0x38] sm:$0xf]
    %v3433 = vld [vmem:[#allocation30 + $0x3c] sm:$0xf]
    %v3434 = vpack.c.bf16 %v3417, %v3417
    %v3435 = vld [vmem:[#allocation31] sm:$0x1]
    %v3437 = vlaneseq
    %v3438 = vshrl.u32 %v3437, 7
    %v3439 = vsub.s32 0, %v3438
    %v3440 = vrot.slane %v3435, %v3439
    %v3458 = vunpack.c.l.b16 %v3418
    %v3459 = vunpack.c.l.b16 %v3419
    %v3460 = vunpack.c.l.b16 %v3420
    %v3461 = vunpack.c.l.b16 %v3421
    %v3462 = vunpack.c.l.b16 %v3422
    %v3463 = vunpack.c.l.b16 %v3423
    %v3464 = vunpack.c.l.b16 %v3424
    %v3465 = vunpack.c.l.b16 %v3425
    %v3466 = vunpack.c.l.b16 %v3426
    %v3467 = vunpack.c.l.b16 %v3427
    %v3468 = vunpack.c.l.b16 %v3428
    %v3469 = vunpack.c.l.b16 %v3429
    %v3470 = vunpack.c.l.b16 %v3430
    %v3471 = vunpack.c.l.b16 %v3431
    %v3472 = vunpack.c.l.b16 %v3432
    %v3473 = vunpack.c.l.b16 %v3433
    %v3474 = vpack.c.b16 %v3459, %v3458
    %v3475 = vpack.c.b16 %v3461, %v3460
    %v3476 = vpack.c.b16 %v3463, %v3462
    %v3477 = vpack.c.b16 %v3465, %v3464
    %v3478 = vpack.c.b16 %v3467, %v3466
    %v3479 = vpack.c.b16 %v3469, %v3468
    %v3480 = vpack.c.b16 %v3471, %v3470
    %v3481 = vpack.c.b16 %v3473, %v3472
    %3490 = vmatprep.subr.bf16.mxu0 0
    %3491 = vmatpush1.bf16.msra.mxu0 %v3474
    %3492 = vmatprep.subr.bf16.mxu0 0
    %3493 = vmatpush1.bf16.msra.mxu0 %v3475
    %3494 = vmatprep.subr.bf16.mxu0 0
    %3495 = vmatpush1.bf16.msra.mxu0 %v3476
    %3496 = vmatprep.subr.bf16.mxu0 0
    %3497 = vmatpush1.bf16.msra.mxu0 %v3477
    %3498 = vmatprep.subr.bf16.mxu0 0
    %3499 = vmatpush1.bf16.msra.mxu0 %v3478
    %3500 = vmatprep.subr.bf16.mxu0 0
    %3501 = vmatpush1.bf16.msra.mxu0 %v3479
    %3502 = vmatprep.subr.bf16.mxu0 0
    %3503 = vmatpush1.bf16.msra.mxu0 %v3480
    %3504 = vmatprep.subr.bf16.mxu0 0
    %3505 = vmatpush1.bf16.msra.mxu0 %v3481
    %3506 = vmatprep.subr.bf16.mxu0 0
    %3507 = vmatpush1.bf16.msra.mxu0 0
    %3508 = vmatprep.subr.bf16.mxu0 0
    %3509 = vmatpush1.bf16.msra.mxu0 0
    %3510 = vmatprep.subr.bf16.mxu0 0
    %3511 = vmatpush1.bf16.msra.mxu0 0
    %3512 = vmatprep.subr.bf16.mxu0 0
    %3513 = vmatpush1.bf16.msra.mxu0 0
    %3514 = vmatprep.subr.bf16.mxu0 0
    %3515 = vmatpush1.bf16.msra.mxu0 0
    %3516 = vmatprep.subr.bf16.mxu0 0
    %3517 = vmatpush1.bf16.msra.mxu0 0
    %3518 = vmatprep.subr.bf16.mxu0 0
    %3519 = vmatpush1.bf16.msra.mxu0 0
    %3520 = vmatprep.subr.bf16.mxu0 0
    %3521 = vmatpush1.bf16.msra.mxu0 0
    %3522 = vmatprep.mubr.bf16.mxu0 0
    %3523 = vmatmul.mubr.bf16.gmra.mrb[0].mxu0 %v3434
    %v3524 = vpop.f32.mrb[0].mxu0
    %v3525 = vadd.f32 %v3440, %v3524
    %v3526 = vpop.f32.mrb[0].mxu0
    %v3527 = vpop.f32.mrb[0].mxu0
    %v3528 = vpop.f32.mrb[0].mxu0
    %3529 = vdwg.mxu0
    %vm3530 = vcmp.gt.f32.partialorder %v3525, 0.0
    %v3531 = vmin.f32 %v3525, 0.0
    %v3532 = vmul.f32 %v3531, 1.442695
    %v3533 = vpow.pop %v3532
    %v3534 = vsub.f32 %v3533, 1.0
    %v3535 = vsel %vm3530, %v3525, %v3534
    %v3536 = vld [vmem:[%s55] sm:$0xf]
    %v3537 = vld [vmem:[%s55 + $0x4] sm:$0x1]
    %v3538 = vpack.c.bf16 %v3535, %v3535
    %v3541 = vunpack.c.l.b16 %v3536
    %v3542 = vunpack.c.l.b16 %v3537
    %v3543 = vpack.c.b16 %v3542, %v3541
    %v3545 = vsel %vm1415, %v3543, 0
    %v3548 = vsel %vm1419, %v3538, 0
    %3550 = vmatprep.subr.bf16.mxu0 0
    %3551 = vmatpush1.bf16.msra.mxu0 %v3548
    %3552 = vmatprep.subr.bf16.mxu0 0
    %3553 = vmatpush1.bf16.msra.mxu0 0
    %3554 = vmatprep.subr.bf16.mxu0 0
    %3555 = vmatpush1.bf16.msra.mxu0 0
    %3556 = vmatprep.subr.bf16.mxu0 0
    %3557 = vmatpush1.bf16.msra.mxu0 0
    %3558 = vmatprep.subr.bf16.mxu0 0
    %3559 = vmatpush1.bf16.msra.mxu0 0
    %3560 = vmatprep.subr.bf16.mxu0 0
    %3561 = vmatpush1.bf16.msra.mxu0 0
    %3562 = vmatprep.subr.bf16.mxu0 0
    %3563 = vmatpush1.bf16.msra.mxu0 0
    %3564 = vmatprep.subr.bf16.mxu0 0
    %3565 = vmatpush1.bf16.msra.mxu0 0
    %3566 = vmatprep.subr.bf16.mxu0 0
    %3567 = vmatpush1.bf16.msra.mxu0 0
    %3568 = vmatprep.subr.bf16.mxu0 0
    %3569 = vmatpush1.bf16.msra.mxu0 0
    %3570 = vmatprep.subr.bf16.mxu0 0
    %3571 = vmatpush1.bf16.msra.mxu0 0
    %3572 = vmatprep.subr.bf16.mxu0 0
    %3573 = vmatpush1.bf16.msra.mxu0 0
    %3574 = vmatprep.subr.bf16.mxu0 0
    %3575 = vmatpush1.bf16.msra.mxu0 0
    %3576 = vmatprep.subr.bf16.mxu0 0
    %3577 = vmatpush1.bf16.msra.mxu0 0
    %3578 = vmatprep.subr.bf16.mxu0 0
    %3579 = vmatpush1.bf16.msra.mxu0 0
    %3580 = vmatprep.subr.bf16.mxu0 0
    %3581 = vmatpush1.bf16.msra.mxu0 0
    %3582 = vmatprep.mubr.bf16.mxu0 0
    %3583 = vmatmul.mubr.bf16.gmra.mrb[0].mxu0 %v3545
    %v3584 = vpop.f32.mrb[0].mxu0
    %v3585 = vadd.f32 0.0, %v3584
    %v3586 = vpop.f32.mrb[0].mxu0
    %v3587 = vpop.f32.mrb[0].mxu0
    %v3588 = vadd.f32 0.0, %v3587
    %v3589 = vpop.f32.mrb[0].mxu0
    %3590 = vdwg.mxu0
    %v3591 = vld [vmem:[#allocation33] sm:$0xf]
    %v3592 = vld [vmem:[#allocation33 + $0x4] sm:$0xf]
    %v3593 = vld [vmem:[#allocation33 + $0x8] sm:$0xf]
    %v3594 = vld [vmem:[#allocation33 + $0xc] sm:$0xf]
    %v3595 = vld [vmem:[#allocation33 + $0x10] sm:$0xf]
    %v3596 = vld [vmem:[#allocation33 + $0x14] sm:$0xf]
    %v3597 = vld [vmem:[#allocation33 + $0x18] sm:$0xf]
    %v3598 = vld [vmem:[#allocation33 + $0x1c] sm:$0xf]
    %v3599 = vld [vmem:[#allocation33 + $0x20] sm:$0xf]
    %v3600 = vld [vmem:[#allocation33 + $0x24] sm:$0xf]
    %v3601 = vld [vmem:[#allocation33 + $0x28] sm:$0xf]
    %v3602 = vld [vmem:[#allocation33 + $0x2c] sm:$0xf]
    %v3603 = vld [vmem:[#allocation33 + $0x30] sm:$0xf]
    %v3604 = vld [vmem:[#allocation33 + $0x34] sm:$0xf]
    %v3605 = vld [vmem:[#allocation33 + $0x38] sm:$0xf]
    %v3606 = vld [vmem:[#allocation33 + $0x3c] sm:$0xf]
    %v3607 = vpack.c.bf16 %v3588, %v3585
    %v3608 = vld [vmem:[#allocation34] sm:$0x1]
    %v3610 = vlaneseq
    %v3611 = vshrl.u32 %v3610, 7
    %v3612 = vsub.s32 0, %v3611
    %v3613 = vrot.slane %v3608, %v3612
    %v3631 = vunpack.c.l.b16 %v3591
    %v3632 = vunpack.c.l.b16 %v3592
    %v3633 = vunpack.c.l.b16 %v3593
    %v3634 = vunpack.c.l.b16 %v3594
    %v3635 = vunpack.c.l.b16 %v3595
    %v3636 = vunpack.c.l.b16 %v3596
    %v3637 = vunpack.c.l.b16 %v3597
    %v3638 = vunpack.c.l.b16 %v3598
    %v3639 = vunpack.c.l.b16 %v3599
    %v3640 = vunpack.c.l.b16 %v3600
    %v3641 = vunpack.c.l.b16 %v3601
    %v3642 = vunpack.c.l.b16 %v3602
    %v3643 = vunpack.c.l.b16 %v3603
    %v3644 = vunpack.c.l.b16 %v3604
    %v3645 = vunpack.c.l.b16 %v3605
    %v3646 = vunpack.c.l.b16 %v3606
    %v3647 = vpack.c.b16 %v3632, %v3631
    %v3648 = vpack.c.b16 %v3634, %v3633
    %v3649 = vpack.c.b16 %v3636, %v3635
    %v3650 = vpack.c.b16 %v3638, %v3637
    %v3651 = vpack.c.b16 %v3640, %v3639
    %v3652 = vpack.c.b16 %v3642, %v3641
    %v3653 = vpack.c.b16 %v3644, %v3643
    %v3654 = vpack.c.b16 %v3646, %v3645
    %3663 = vmatprep.subr.bf16.mxu0 0
    %3664 = vmatpush1.bf16.msra.mxu0 %v3647
    %3665 = vmatprep.subr.bf16.mxu0 0
    %3666 = vmatpush1.bf16.msra.mxu0 %v3648
    %3667 = vmatprep.subr.bf16.mxu0 0
    %3668 = vmatpush1.bf16.msra.mxu0 %v3649
    %3669 = vmatprep.subr.bf16.mxu0 0
    %3670 = vmatpush1.bf16.msra.mxu0 %v3650
    %3671 = vmatprep.subr.bf16.mxu0 0
    %3672 = vmatpush1.bf16.msra.mxu0 %v3651
    %3673 = vmatprep.subr.bf16.mxu0 0
    %3674 = vmatpush1.bf16.msra.mxu0 %v3652
    %3675 = vmatprep.subr.bf16.mxu0 0
    %3676 = vmatpush1.bf16.msra.mxu0 %v3653
    %3677 = vmatprep.subr.bf16.mxu0 0
    %3678 = vmatpush1.bf16.msra.mxu0 %v3654
    %3679 = vmatprep.subr.bf16.mxu0 0
    %3680 = vmatpush1.bf16.msra.mxu0 0
    %3681 = vmatprep.subr.bf16.mxu0 0
    %3682 = vmatpush1.bf16.msra.mxu0 0
    %3683 = vmatprep.subr.bf16.mxu0 0
    %3684 = vmatpush1.bf16.msra.mxu0 0
    %3685 = vmatprep.subr.bf16.mxu0 0
    %3686 = vmatpush1.bf16.msra.mxu0 0
    %3687 = vmatprep.subr.bf16.mxu0 0
    %3688 = vmatpush1.bf16.msra.mxu0 0
    %3689 = vmatprep.subr.bf16.mxu0 0
    %3690 = vmatpush1.bf16.msra.mxu0 0
    %3691 = vmatprep.subr.bf16.mxu0 0
    %3692 = vmatpush1.bf16.msra.mxu0 0
    %3693 = vmatprep.subr.bf16.mxu0 0
    %3694 = vmatpush1.bf16.msra.mxu0 0
    %3695 = vmatprep.mubr.bf16.mxu0 0
    %3696 = vmatmul.mubr.bf16.gmra.mrb[0].mxu0 %v3607
    %v3697 = vpop.f32.mrb[0].mxu0
    %v3698 = vadd.f32 %v3613, %v3697
    %v3699 = vpop.f32.mrb[0].mxu0
    %v3700 = vpop.f32.mrb[0].mxu0
    %v3701 = vadd.f32 %v3613, %v3700
    %v3702 = vpop.f32.mrb[0].mxu0
    %3703 = vdwg.mxu0
    %vm3704 = vcmp.gt.f32.partialorder %v3698, 0.0
    %vm3705 = vcmp.gt.f32.partialorder %v3701, 0.0
    %v3706 = vmin.f32 %v3698, 0.0
    %v3707 = vmin.f32 %v3701, 0.0
    %v3708 = vmul.f32 %v3706, 1.442695
    %v3709 = vpow.pop %v3708
    %v3710 = vmul.f32 %v3707, 1.442695
    %v3711 = vpow.pop %v3710
    %v3712 = vsub.f32 %v3709, 1.0
    %v3713 = vsub.f32 %v3711, 1.0
    %v3714 = vsel %vm3704, %v3698, %v3712
    %v3715 = vsel %vm3705, %v3701, %v3713
    %v3716 = vld [vmem:[#allocation36] sm:$0xf]
    %v3717 = vld [vmem:[#allocation36 + $0x4] sm:$0x3]
    %v3718 = vld [vmem:[%s63] sm:$0xf]
    %v3719 = vld [vmem:[%s63 + $0x4] sm:$0xf]
    %v3720 = vld [vmem:[%s63 + $0x8] sm:$0xf]
    %v3721 = vld [vmem:[%s63 + $0xc] sm:$0xf]
    %v3722 = vld [vmem:[%s63 + $0x10] sm:$0xf]
    %v3723 = vld [vmem:[%s63 + $0x14] sm:$0xf]
    %v3724 = vld [vmem:[%s63 + $0x18] sm:$0xf]
    %v3725 = vld [vmem:[%s63 + $0x1c] sm:$0xf]
    %v3726 = vld [vmem:[%s63 + $0x20] sm:$0xf]
    %v3727 = vld [vmem:[%s63 + $0x24] sm:$0xf]
    %v3728 = vld [vmem:[%s63 + $0x28] sm:$0xf]
    %v3729 = vld [vmem:[%s63 + $0x2c] sm:$0xf]
    %v3730 = vld [vmem:[%s63 + $0x30] sm:$0xf]
    %v3731 = vld [vmem:[%s63 + $0x34] sm:$0xf]
    %v3732 = vld [vmem:[%s63 + $0x38] sm:$0xf]
    %v3733 = vld [vmem:[%s63 + $0x3c] sm:$0xf]
    %v3734 = vld [vmem:[#allocation37] sm:$0x1]
    %v3735 = vpack.c.bf16 %v3715, %v3714
    %v3738 = vunpack.c.l.b16 %v3716
    %v3739 = vunpack.c.l.b16 %v3717
    %v3740 = vpack.c.b16 %v3739, %v3738
    %v3742 = vsel %vm1025, %v3740, 0
    %v3745 = vsel %vm1029, %v3735, 0
    %3747 = vmatprep.subr.bf16.mxu0 0
    %3748 = vmatpush1.bf16.msra.mxu0 %v3745
    %3749 = vmatprep.subr.bf16.mxu0 0
    %3750 = vmatpush1.bf16.msra.mxu0 0
    %3751 = vmatprep.subr.bf16.mxu0 0
    %3752 = vmatpush1.bf16.msra.mxu0 0
    %3753 = vmatprep.subr.bf16.mxu0 0
    %3754 = vmatpush1.bf16.msra.mxu0 0
    %3755 = vmatprep.subr.bf16.mxu0 0
    %3756 = vmatpush1.bf16.msra.mxu0 0
    %3757 = vmatprep.subr.bf16.mxu0 0
    %3758 = vmatpush1.bf16.msra.mxu0 0
    %3759 = vmatprep.subr.bf16.mxu0 0
    %3760 = vmatpush1.bf16.msra.mxu0 0
    %3761 = vmatprep.subr.bf16.mxu0 0
    %3762 = vmatpush1.bf16.msra.mxu0 0
    %3763 = vmatprep.subr.bf16.mxu0 0
    %3764 = vmatpush1.bf16.msra.mxu0 0
    %3765 = vmatprep.subr.bf16.mxu0 0
    %3766 = vmatpush1.bf16.msra.mxu0 0
    %3767 = vmatprep.subr.bf16.mxu0 0
    %3768 = vmatpush1.bf16.msra.mxu0 0
    %3769 = vmatprep.subr.bf16.mxu0 0
    %3770 = vmatpush1.bf16.msra.mxu0 0
    %3771 = vmatprep.subr.bf16.mxu0 0
    %3772 = vmatpush1.bf16.msra.mxu0 0
    %3773 = vmatprep.subr.bf16.mxu0 0
    %3774 = vmatpush1.bf16.msra.mxu0 0
    %3775 = vmatprep.subr.bf16.mxu0 0
    %3776 = vmatpush1.bf16.msra.mxu0 0
    %3777 = vmatprep.subr.bf16.mxu0 0
    %3778 = vmatpush1.bf16.msra.mxu0 0
    %3779 = vmatprep.mubr.bf16.mxu0 0
    %3780 = vmatmul.mubr.bf16.gmra.mrb[0].mxu0 %v3742
    %v3781 = vpop.f32.mrb[0].mxu0
    %v3782 = vadd.f32 0.0, %v3781
    %v3783 = vpop.f32.mrb[0].mxu0
    %v3784 = vpop.f32.mrb[0].mxu0
    %v3785 = vadd.f32 0.0, %v3784
    %v3786 = vpop.f32.mrb[0].mxu0
    %3787 = vdwg.mxu0
    %v3788 = vpack.c.bf16 %v3785, %v3782
    %v3790 = vlaneseq
    %v3791 = vshrl.u32 %v3790, 7
    %v3792 = vsub.s32 0, %v3791
    %v3793 = vrot.slane %v3734, %v3792
    %v3811 = vunpack.c.l.b16 %v3718
    %v3812 = vunpack.c.l.b16 %v3719
    %v3813 = vunpack.c.l.b16 %v3720
    %v3814 = vunpack.c.l.b16 %v3721
    %v3815 = vunpack.c.l.b16 %v3722
    %v3816 = vunpack.c.l.b16 %v3723
    %v3817 = vunpack.c.l.b16 %v3724
    %v3818 = vunpack.c.l.b16 %v3725
    %v3819 = vunpack.c.l.b16 %v3726
    %v3820 = vunpack.c.l.b16 %v3727
    %v3821 = vunpack.c.l.b16 %v3728
    %v3822 = vunpack.c.l.b16 %v3729
    %v3823 = vunpack.c.l.b16 %v3730
    %v3824 = vunpack.c.l.b16 %v3731
    %v3825 = vunpack.c.l.b16 %v3732
    %v3826 = vunpack.c.l.b16 %v3733
    %v3827 = vpack.c.b16 %v3812, %v3811
    %v3828 = vpack.c.b16 %v3814, %v3813
    %v3829 = vpack.c.b16 %v3816, %v3815
    %v3830 = vpack.c.b16 %v3818, %v3817
    %v3831 = vpack.c.b16 %v3820, %v3819
    %v3832 = vpack.c.b16 %v3822, %v3821
    %v3833 = vpack.c.b16 %v3824, %v3823
    %v3834 = vpack.c.b16 %v3826, %v3825
    %3843 = vmatprep.subr.bf16.mxu0 0
    %3844 = vmatpush1.bf16.msra.mxu0 %v3827
    %3845 = vmatprep.subr.bf16.mxu0 0
    %3846 = vmatpush1.bf16.msra.mxu0 %v3828
    %3847 = vmatprep.subr.bf16.mxu0 0
    %3848 = vmatpush1.bf16.msra.mxu0 %v3829
    %3849 = vmatprep.subr.bf16.mxu0 0
    %3850 = vmatpush1.bf16.msra.mxu0 %v3830
    %3851 = vmatprep.subr.bf16.mxu0 0
    %3852 = vmatpush1.bf16.msra.mxu0 %v3831
    %3853 = vmatprep.subr.bf16.mxu0 0
    %3854 = vmatpush1.bf16.msra.mxu0 %v3832
    %3855 = vmatprep.subr.bf16.mxu0 0
    %3856 = vmatpush1.bf16.msra.mxu0 %v3833
    %3857 = vmatprep.subr.bf16.mxu0 0
    %3858 = vmatpush1.bf16.msra.mxu0 %v3834
    %3859 = vmatprep.subr.bf16.mxu0 0
    %3860 = vmatpush1.bf16.msra.mxu0 0
    %3861 = vmatprep.subr.bf16.mxu0 0
    %3862 = vmatpush1.bf16.msra.mxu0 0
    %3863 = vmatprep.subr.bf16.mxu0 0
    %3864 = vmatpush1.bf16.msra.mxu0 0
    %3865 = vmatprep.subr.bf16.mxu0 0
    %3866 = vmatpush1.bf16.msra.mxu0 0
    %3867 = vmatprep.subr.bf16.mxu0 0
    %3868 = vmatpush1.bf16.msra.mxu0 0
    %3869 = vmatprep.subr.bf16.mxu0 0
    %3870 = vmatpush1.bf16.msra.mxu0 0
    %3871 = vmatprep.subr.bf16.mxu0 0
    %3872 = vmatpush1.bf16.msra.mxu0 0
    %3873 = vmatprep.subr.bf16.mxu0 0
    %3874 = vmatpush1.bf16.msra.mxu0 0
    %3875 = vmatprep.mubr.bf16.mxu0 0
    %3876 = vmatmul.mubr.bf16.gmra.mrb[0].mxu0 %v3788
    %v3877 = vpop.f32.mrb[0].mxu0
    %v3878 = vadd.f32 %v3793, %v3877
    %v3879 = vpop.f32.mrb[0].mxu0
    %v3880 = vpop.f32.mrb[0].mxu0
    %v3881 = vadd.f32 %v3793, %v3880
    %v3882 = vpop.f32.mrb[0].mxu0
    %3883 = vdwg.mxu0
    %vm3884 = vcmp.gt.f32.partialorder %v3878, 0.0
    %vm3885 = vcmp.gt.f32.partialorder %v3881, 0.0
    %v3886 = vmin.f32 %v3878, 0.0
    %v3887 = vmin.f32 %v3881, 0.0
    %v3888 = vmul.f32 %v3886, 1.442695
    %v3889 = vpow.pop %v3888
    %v3890 = vmul.f32 %v3887, 1.442695
    %v3891 = vpow.pop %v3890
    %v3892 = vsub.f32 %v3889, 1.0
    %v3893 = vsub.f32 %v3891, 1.0
    %v3894 = vsel %vm3884, %v3878, %v3892
    %v3895 = vsel %vm3885, %v3881, %v3893
    %v3896 = vld [vmem:[#allocation39] sm:$0xf]
    %v3897 = vld [vmem:[#allocation39 + $0x4] sm:$0x7]
    %v3898 = vld [vmem:[#allocation40] sm:$0xf]
    %v3899 = vld [vmem:[#allocation40 + $0x4] sm:$0xf]
    %v3900 = vld [vmem:[#allocation40 + $0x8] sm:$0xf]
    %v3901 = vld [vmem:[#allocation40 + $0xc] sm:$0xf]
    %v3902 = vld [vmem:[#allocation40 + $0x10] sm:$0xf]
    %v3903 = vld [vmem:[#allocation40 + $0x14] sm:$0xf]
    %v3904 = vld [vmem:[#allocation40 + $0x18] sm:$0xf]
    %v3905 = vld [vmem:[#allocation40 + $0x1c] sm:$0xf]
    %v3906 = vld [vmem:[#allocation42] sm:$0x1]
    %v3907 = vpack.c.bf16 %v3895, %v3894
    %v3910 = vunpack.c.l.b16 %v3896
    %v3911 = vunpack.c.l.b16 %v3897
    %v3912 = vpack.c.b16 %v3911, %v3910
    %v3914 = vsel %vm866, %v3912, 0
    %v3917 = vsel %vm870, %v3907, 0
    %3919 = vmatprep.subr.bf16.mxu0 0
    %3920 = vmatpush1.bf16.msra.mxu0 %v3917
    %3921 = vmatprep.subr.bf16.mxu0 0
    %3922 = vmatpush1.bf16.msra.mxu0 0
    %3923 = vmatprep.subr.bf16.mxu0 0
    %3924 = vmatpush1.bf16.msra.mxu0 0
    %3925 = vmatprep.subr.bf16.mxu0 0
    %3926 = vmatpush1.bf16.msra.mxu0 0
    %3927 = vmatprep.subr.bf16.mxu0 0
    %3928 = vmatpush1.bf16.msra.mxu0 0
    %3929 = vmatprep.subr.bf16.mxu0 0
    %3930 = vmatpush1.bf16.msra.mxu0 0
    %3931 = vmatprep.subr.bf16.mxu0 0
    %3932 = vmatpush1.bf16.msra.mxu0 0
    %3933 = vmatprep.subr.bf16.mxu0 0
    %3934 = vmatpush1.bf16.msra.mxu0 0
    %3935 = vmatprep.subr.bf16.mxu0 0
    %3936 = vmatpush1.bf16.msra.mxu0 0
    %3937 = vmatprep.subr.bf16.mxu0 0
    %3938 = vmatpush1.bf16.msra.mxu0 0
    %3939 = vmatprep.subr.bf16.mxu0 0
    %3940 = vmatpush1.bf16.msra.mxu0 0
    %3941 = vmatprep.subr.bf16.mxu0 0
    %3942 = vmatpush1.bf16.msra.mxu0 0
    %3943 = vmatprep.subr.bf16.mxu0 0
    %3944 = vmatpush1.bf16.msra.mxu0 0
    %3945 = vmatprep.subr.bf16.mxu0 0
    %3946 = vmatpush1.bf16.msra.mxu0 0
    %3947 = vmatprep.subr.bf16.mxu0 0
    %3948 = vmatpush1.bf16.msra.mxu0 0
    %3949 = vmatprep.subr.bf16.mxu0 0
    %3950 = vmatpush1.bf16.msra.mxu0 0
    %3951 = vmatprep.mubr.bf16.mxu0 0
    %3952 = vmatmul.mubr.bf16.gmra.mrb[0].mxu0 %v3914
    %v3953 = vpop.f32.mrb[0].mxu0
    %v3954 = vadd.f32 0.0, %v3953
    %v3955 = vpop.f32.mrb[0].mxu0
    %v3956 = vpop.f32.mrb[0].mxu0
    %v3957 = vadd.f32 0.0, %v3956
    %v3958 = vpop.f32.mrb[0].mxu0
    %3959 = vdwg.mxu0
    %v3960 = vpack.c.bf16 %v3957, %v3954
    %v3962 = vlaneseq
    %v3963 = vshrl.u32 %v3962, 7
    %v3964 = vsub.s32 0, %v3963
    %v3965 = vrot.slane %v3906, %v3964
    %v3975 = vunpack.c.l.b16 %v3898
    %v3976 = vunpack.c.l.b16 %v3899
    %v3977 = vunpack.c.l.b16 %v3900
    %v3978 = vunpack.c.l.b16 %v3901
    %v3979 = vunpack.c.l.b16 %v3902
    %v3980 = vunpack.c.l.b16 %v3903
    %v3981 = vunpack.c.l.b16 %v3904
    %v3982 = vunpack.c.l.b16 %v3905
    %v3983 = vpack.c.b16 %v3976, %v3975
    %v3984 = vpack.c.b16 %v3978, %v3977
    %v3985 = vpack.c.b16 %v3980, %v3979
    %v3986 = vpack.c.b16 %v3982, %v3981
    %v3992 = vsel %vm784, %v3960, 0
    %3994 = vmatprep.subr.bf16.mxu0 0
    %3995 = vmatpush1.bf16.msra.mxu0 %v3983
    %3996 = vmatprep.subr.bf16.mxu0 0
    %3997 = vmatpush1.bf16.msra.mxu0 %v3984
    %3998 = vmatprep.subr.bf16.mxu0 0
    %3999 = vmatpush1.bf16.msra.mxu0 %v3985
    %4000 = vmatprep.subr.bf16.mxu0 0
    %4001 = vmatpush1.bf16.msra.mxu0 %v3986
    %4002 = vmatprep.subr.bf16.mxu0 0
    %4003 = vmatpush1.bf16.msra.mxu0 0
    %4004 = vmatprep.subr.bf16.mxu0 0
    %4005 = vmatpush1.bf16.msra.mxu0 0
    %4006 = vmatprep.subr.bf16.mxu0 0
    %4007 = vmatpush1.bf16.msra.mxu0 0
    %4008 = vmatprep.subr.bf16.mxu0 0
    %4009 = vmatpush1.bf16.msra.mxu0 0
    %4010 = vmatprep.subr.bf16.mxu0 0
    %4011 = vmatpush1.bf16.msra.mxu0 0
    %4012 = vmatprep.subr.bf16.mxu0 0
    %4013 = vmatpush1.bf16.msra.mxu0 0
    %4014 = vmatprep.subr.bf16.mxu0 0
    %4015 = vmatpush1.bf16.msra.mxu0 0
    %4016 = vmatprep.subr.bf16.mxu0 0
    %4017 = vmatpush1.bf16.msra.mxu0 0
    %4018 = vmatprep.subr.bf16.mxu0 0
    %4019 = vmatpush1.bf16.msra.mxu0 0
    %4020 = vmatprep.subr.bf16.mxu0 0
    %4021 = vmatpush1.bf16.msra.mxu0 0
    %4022 = vmatprep.subr.bf16.mxu0 0
    %4023 = vmatpush1.bf16.msra.mxu0 0
    %4024 = vmatprep.subr.bf16.mxu0 0
    %4025 = vmatpush1.bf16.msra.mxu0 0
    %4026 = vmatprep.mubr.bf16.mxu0 0
    %4027 = vmatmul.mubr.bf16.gmra.mrb[0].mxu0 %v3992
    %v4028 = vpop.f32.mrb[0].mxu0
    %v4029 = vadd.f32 %v3965, %v4028
    %v4030 = vpop.f32.mrb[0].mxu0
    %v4031 = vpop.f32.mrb[0].mxu0
    %v4032 = vadd.f32 %v3965, %v4031
    %v4033 = vpop.f32.mrb[0].mxu0
    %4034 = vdwg.mxu0
    %vm4035 = vcmp.gt.f32.partialorder %v4029, 0.0
    %vm4036 = vcmp.gt.f32.partialorder %v4032, 0.0
    %v4037 = vmin.f32 %v4029, 0.0
    %v4038 = vmin.f32 %v4032, 0.0
    %v4039 = vmul.f32 %v4037, 1.442695
    %v4040 = vpow.pop %v4039
    %v4041 = vmul.f32 %v4038, 1.442695
    %v4042 = vpow.pop %v4041
    %v4043 = vsub.f32 %v4040, 1.0
    %v4044 = vsub.f32 %v4042, 1.0
    %v4045 = vsel %vm4035, %v4029, %v4043
    %v4046 = vsel %vm4036, %v4032, %v4044
    %v4047 = vld [vmem:[#allocation43] sm:$0xf]
    %v4048 = vld [vmem:[#allocation43 + $0x4] sm:$0xf]
    %v4049 = vpack.c.bf16 %v4046, %v4045
    %v4052 = vunpack.c.l.b16 %v4047
    %v4053 = vunpack.c.l.b16 %v4048
    %v4054 = vpack.c.b16 %v4053, %v4052
    %vm4055 = vcmask 113664
    %v4057 = vsel %vm4055, %v4054, 0
    %vm4059 = vcmask 1046528
    %v4061 = vsel %vm4059, %v4049, 0
    %4063 = vmatprep.subr.bf16.mxu0 0
    %4064 = vmatpush1.bf16.msra.mxu0 %v4061
    %4065 = vmatprep.subr.bf16.mxu0 0
    %4066 = vmatpush1.bf16.msra.mxu0 0
    %4067 = vmatprep.subr.bf16.mxu0 0
    %4068 = vmatpush1.bf16.msra.mxu0 0
    %4069 = vmatprep.subr.bf16.mxu0 0
    %4070 = vmatpush1.bf16.msra.mxu0 0
    %4071 = vmatprep.subr.bf16.mxu0 0
    %4072 = vmatpush1.bf16.msra.mxu0 0
    %4073 = vmatprep.subr.bf16.mxu0 0
    %4074 = vmatpush1.bf16.msra.mxu0 0
    %4075 = vmatprep.subr.bf16.mxu0 0
    %4076 = vmatpush1.bf16.msra.mxu0 0
    %4077 = vmatprep.subr.bf16.mxu0 0
    %4078 = vmatpush1.bf16.msra.mxu0 0
    %4079 = vmatprep.subr.bf16.mxu0 0
    %4080 = vmatpush1.bf16.msra.mxu0 0
    %4081 = vmatprep.subr.bf16.mxu0 0
    %4082 = vmatpush1.bf16.msra.mxu0 0
    %4083 = vmatprep.subr.bf16.mxu0 0
    %4084 = vmatpush1.bf16.msra.mxu0 0
    %4085 = vmatprep.subr.bf16.mxu0 0
    %4086 = vmatpush1.bf16.msra.mxu0 0
    %4087 = vmatprep.subr.bf16.mxu0 0
    %4088 = vmatpush1.bf16.msra.mxu0 0
    %4089 = vmatprep.subr.bf16.mxu0 0
    %4090 = vmatpush1.bf16.msra.mxu0 0
    %4091 = vmatprep.subr.bf16.mxu0 0
    %4092 = vmatpush1.bf16.msra.mxu0 0
    %4093 = vmatprep.subr.bf16.mxu0 0
    %4094 = vmatpush1.bf16.msra.mxu0 0
    %4095 = vmatprep.mubr.bf16.mxu0 0
    %4096 = vmatmul.mubr.bf16.gmra.mrb[0].mxu0 %v4057
    %v4097 = vpop.f32.mrb[0].mxu0
    %v4098 = vadd.f32 0.0, %v4097
    %v4099 = vpop.f32.mrb[0].mxu0
    %v4100 = vpop.f32.mrb[0].mxu0
    %v4101 = vadd.f32 0.0, %v4100
    %v4102 = vpop.f32.mrb[0].mxu0
    %4103 = vdwg.mxu0
    %v4104 = vld [vmem:[%s75] sm:$0xf]
    %v4105 = vld [vmem:[%s75 + $0x4] sm:$0xf]
    %v4106 = vld [vmem:[%s75 + $0x8] sm:$0xf]
    %v4107 = vld [vmem:[%s75 + $0xc] sm:$0xf]
    %v4108 = vld [vmem:[%s75 + $0x10] sm:$0xf]
    %v4109 = vld [vmem:[%s75 + $0x14] sm:$0xf]
    %v4110 = vld [vmem:[%s75 + $0x18] sm:$0xf]
    %v4111 = vld [vmem:[%s75 + $0x1c] sm:$0xf]
    %v4112 = vpack.c.bf16 %v4101, %v4098
    %v4113 = vld [vmem:[#allocation45] sm:$0x1]
    %v4115 = vlaneseq
    %v4116 = vshrl.u32 %v4115, 7
    %v4117 = vsub.s32 0, %v4116
    %v4118 = vrot.slane %v4113, %v4117
    %v4128 = vunpack.c.l.b16 %v4104
    %v4129 = vunpack.c.l.b16 %v4105
    %v4130 = vunpack.c.l.b16 %v4106
    %v4131 = vunpack.c.l.b16 %v4107
    %v4132 = vunpack.c.l.b16 %v4108
    %v4133 = vunpack.c.l.b16 %v4109
    %v4134 = vunpack.c.l.b16 %v4110
    %v4135 = vunpack.c.l.b16 %v4111
    %v4136 = vpack.c.b16 %v4129, %v4128
    %v4137 = vpack.c.b16 %v4131, %v4130
    %v4138 = vpack.c.b16 %v4133, %v4132
    %v4139 = vpack.c.b16 %v4135, %v4134
    %v4145 = vsel %vm784, %v4112, 0
    %4147 = vmatprep.subr.bf16.mxu0 0
    %4148 = vmatpush1.bf16.msra.mxu0 %v4136
    %4149 = vmatprep.subr.bf16.mxu0 0
    %4150 = vmatpush1.bf16.msra.mxu0 %v4137
    %4151 = vmatprep.subr.bf16.mxu0 0
    %4152 = vmatpush1.bf16.msra.mxu0 %v4138
    %4153 = vmatprep.subr.bf16.mxu0 0
    %4154 = vmatpush1.bf16.msra.mxu0 %v4139
    %4155 = vmatprep.subr.bf16.mxu0 0
    %4156 = vmatpush1.bf16.msra.mxu0 0
    %4157 = vmatprep.subr.bf16.mxu0 0
    %4158 = vmatpush1.bf16.msra.mxu0 0
    %4159 = vmatprep.subr.bf16.mxu0 0
    %4160 = vmatpush1.bf16.msra.mxu0 0
    %4161 = vmatprep.subr.bf16.mxu0 0
    %4162 = vmatpush1.bf16.msra.mxu0 0
    %4163 = vmatprep.subr.bf16.mxu0 0
    %4164 = vmatpush1.bf16.msra.mxu0 0
    %4165 = vmatprep.subr.bf16.mxu0 0
    %4166 = vmatpush1.bf16.msra.mxu0 0
    %4167 = vmatprep.subr.bf16.mxu0 0
    %4168 = vmatpush1.bf16.msra.mxu0 0
    %4169 = vmatprep.subr.bf16.mxu0 0
    %4170 = vmatpush1.bf16.msra.mxu0 0
    %4171 = vmatprep.subr.bf16.mxu0 0
    %4172 = vmatpush1.bf16.msra.mxu0 0
    %4173 = vmatprep.subr.bf16.mxu0 0
    %4174 = vmatpush1.bf16.msra.mxu0 0
    %4175 = vmatprep.subr.bf16.mxu0 0
    %4176 = vmatpush1.bf16.msra.mxu0 0
    %4177 = vmatprep.subr.bf16.mxu0 0
    %4178 = vmatpush1.bf16.msra.mxu0 0
    %4179 = vmatprep.mubr.bf16.mxu0 0
    %4180 = vmatmul.mubr.bf16.gmra.mrb[0].mxu0 %v4145
    %v4181 = vpop.f32.mrb[0].mxu0
    %v4182 = vadd.f32 %v4118, %v4181
    %v4183 = vpop.f32.mrb[0].mxu0
    %v4184 = vpop.f32.mrb[0].mxu0
    %v4185 = vadd.f32 %v4118, %v4184
    %v4186 = vpop.f32.mrb[0].mxu0
    %4187 = vdwg.mxu0
    %v4188 = vld [vmem:[#allocation46] sm:$0xf]
    %v4189 = vld [vmem:[#allocation46 + $0x4] sm:$0xf]
    %v4190 = vpack.c.bf16 %v4185, %v4182
    %v4193 = vunpack.c.l.b16 %v4188
    %v4194 = vunpack.c.l.b16 %v4189
    %v4195 = vpack.c.b16 %v4194, %v4193
    %v4197 = vsel %vm578, %v4195, 0
    %4199 = vmatprep.subr.bf16.mxu0 0
    %4200 = vmatpush1.bf16.msra.mxu0 %v4190
    %4201 = vmatprep.subr.bf16.mxu0 0
    %4202 = vmatpush1.bf16.msra.mxu0 0
    %4203 = vmatprep.subr.bf16.mxu0 0
    %4204 = vmatpush1.bf16.msra.mxu0 0
    %4205 = vmatprep.subr.bf16.mxu0 0
    %4206 = vmatpush1.bf16.msra.mxu0 0
    %4207 = vmatprep.subr.bf16.mxu0 0
    %4208 = vmatpush1.bf16.msra.mxu0 0
    %4209 = vmatprep.subr.bf16.mxu0 0
    %4210 = vmatpush1.bf16.msra.mxu0 0
    %4211 = vmatprep.subr.bf16.mxu0 0
    %4212 = vmatpush1.bf16.msra.mxu0 0
    %4213 = vmatprep.subr.bf16.mxu0 0
    %4214 = vmatpush1.bf16.msra.mxu0 0
    %4215 = vmatprep.subr.bf16.mxu0 0
    %4216 = vmatpush1.bf16.msra.mxu0 0
    %4217 = vmatprep.subr.bf16.mxu0 0
    %4218 = vmatpush1.bf16.msra.mxu0 0
    %4219 = vmatprep.subr.bf16.mxu0 0
    %4220 = vmatpush1.bf16.msra.mxu0 0
    %4221 = vmatprep.subr.bf16.mxu0 0
    %4222 = vmatpush1.bf16.msra.mxu0 0
    %4223 = vmatprep.subr.bf16.mxu0 0
    %4224 = vmatpush1.bf16.msra.mxu0 0
    %4225 = vmatprep.subr.bf16.mxu0 0
    %4226 = vmatpush1.bf16.msra.mxu0 0
    %4227 = vmatprep.subr.bf16.mxu0 0
    %4228 = vmatpush1.bf16.msra.mxu0 0
    %4229 = vmatprep.subr.bf16.mxu0 0
    %4230 = vmatpush1.bf16.msra.mxu0 0
    %4231 = vmatprep.mubr.bf16.mxu0 0
    %4232 = vmatmul.mubr.bf16.gmra.mrb[0].mxu0 %v4197
    %v4233 = vpop.f32.mrb[0].mxu0
    %v4234 = vadd.f32 0.0, %v4233
    %v4235 = vpop.f32.mrb[0].mxu0
    %v4236 = vpop.f32.mrb[0].mxu0
    %v4237 = vadd.f32 0.0, %v4236
    %v4238 = vpop.f32.mrb[0].mxu0
    %4239 = vdwg.mxu0
    %v4240 = vld [vmem:[#allocation48] sm:$0xf]
    %v4241 = vld [vmem:[#allocation48 + $0x4] sm:$0xf]
    %v4244 = vunpack.c.l.b16 %v4240
    %v4245 = vunpack.c.l.b16 %v4241
    %v4246 = vpack.c.b16 %v4245, %v4244
    %v4248 = vsel %vm578, %v4246, 0
    %4250 = vmatprep.subr.bf16.mxu0 0
    %4251 = vmatpush1.bf16.msra.mxu0 %v4190
    %4252 = vmatprep.subr.bf16.mxu0 0
    %4253 = vmatpush1.bf16.msra.mxu0 0
    %4254 = vmatprep.subr.bf16.mxu0 0
    %4255 = vmatpush1.bf16.msra.mxu0 0
    %4256 = vmatprep.subr.bf16.mxu0 0
    %4257 = vmatpush1.bf16.msra.mxu0 0
    %4258 = vmatprep.subr.bf16.mxu0 0
    %4259 = vmatpush1.bf16.msra.mxu0 0
    %4260 = vmatprep.subr.bf16.mxu0 0
    %4261 = vmatpush1.bf16.msra.mxu0 0
    %4262 = vmatprep.subr.bf16.mxu0 0
    %4263 = vmatpush1.bf16.msra.mxu0 0
    %4264 = vmatprep.subr.bf16.mxu0 0
    %4265 = vmatpush1.bf16.msra.mxu0 0
    %4266 = vmatprep.subr.bf16.mxu0 0
    %4267 = vmatpush1.bf16.msra.mxu0 0
    %4268 = vmatprep.subr.bf16.mxu0 0
    %4269 = vmatpush1.bf16.msra.mxu0 0
    %4270 = vmatprep.subr.bf16.mxu0 0
    %4271 = vmatpush1.bf16.msra.mxu0 0
    %4272 = vmatprep.subr.bf16.mxu0 0
    %4273 = vmatpush1.bf16.msra.mxu0 0
    %4274 = vmatprep.subr.bf16.mxu0 0
    %4275 = vmatpush1.bf16.msra.mxu0 0
    %4276 = vmatprep.subr.bf16.mxu0 0
    %4277 = vmatpush1.bf16.msra.mxu0 0
    %4278 = vmatprep.subr.bf16.mxu0 0
    %4279 = vmatpush1.bf16.msra.mxu0 0
    %4280 = vmatprep.subr.bf16.mxu0 0
    %4281 = vmatpush1.bf16.msra.mxu0 0
    %4282 = vmatprep.mubr.bf16.mxu0 0
    %4283 = vmatmul.mubr.bf16.gmra.mrb[0].mxu0 %v4248
    %v4284 = vpop.f32.mrb[0].mxu0
    %v4285 = vadd.f32 0.0, %v4284
    %v4286 = vpop.f32.mrb[0].mxu0
    %v4287 = vpop.f32.mrb[0].mxu0
    %v4288 = vadd.f32 0.0, %v4287
    %v4289 = vpop.f32.mrb[0].mxu0
    %4290 = vdwg.mxu0
    %4293 = vrot.lane.b32.xlu0 %v4234, 16
    %v4294 = vpop.permute.xlu0 %4293
    %4295 = vrot.lane.b32.xlu0 %v4237, 16
    %v4296 = vpop.permute.xlu0 %4295
    %4301 = vrot.lane.b32.xlu0 %v4285, 32
    %v4302 = vpop.permute.xlu0 %4301
    %4303 = vrot.lane.b32.xlu0 %v4288, 32
    %v4304 = vpop.permute.xlu0 %4303
    %v4307 = vsel %vm578, %v4182, %v4294
    %v4308 = vsel %vm578, %v4185, %v4296
    %v4309 = vsel %vm3265, %v4307, %v4302
    %v4310 = vsel %vm3265, %v4308, %v4304
    %4311 = vst.msk [vmem:[%s85] sm:$0xff] %vm3267, %v4309
    %4312 = vst.msk [vmem:[%s85 + $0x8] sm:$0xff] %vm3267, %v4310
    // Predicated region
    $region290: #{forward.1} parent=1 // pred_check
      _
    $region291: #{forward.1} parent=1 // pred_check_branch
      %4314 = sbr.rel (0) target = $region293
    $region292: #{forward.1} parent=1 // pred_region
      _
    $region293: #{forward.1} parent=1 // pred_fallthru
      _
    // Predicated region
    $region294: #{forward.1} parent=1 // pred_check
      _
    $region295: #{forward.1} parent=1 // pred_check_branch
      %4316 = sbr.rel (0) target = $region297
    $region296: #{forward.1} parent=1 // pred_region
      _
    $region297: #{forward.1} parent=1 // pred_fallthru
      _
    // Predicated region
    $region298: #{forward.1} parent=1 // pred_check
      _
    $region299: #{forward.1} parent=1 // pred_check_branch
      %4318 = sbr.rel (0) target = $region301
    $region300: #{forward.1} parent=1 // pred_region
      _
    $region301: #{forward.1} parent=1 // pred_fallthru
      _
    // Predicated region
    $region302: #{forward.1} parent=1 // pred_check
      _
    $region303: #{forward.1} parent=1 // pred_check_branch
      %4320 = sbr.rel (0) target = $region305
    $region304: #{forward.1} parent=1 // pred_region
      _
    $region305: #{forward.1} parent=1 // pred_fallthru
      _
    %4321 = vsyncpa [#allocation3], 1
    %4322 = vsyncpa [#allocation5], 1
    %4323 = vsyncpa [#allocation8], 1
    %4324 = vsyncpa [#allocation11], 1
    %4325 = vsyncpa [#allocation14], 1
    %4326 = vsyncpa [#allocation17], 1
    %4327 = vsyncpa [#allocation20], 1
    %4328 = vsyncpa [#allocation23], 1
    %4329 = vsyncpa [#allocation26], 1
    %4330 = vsyncpa [#allocation29], 1
    %4331 = vsyncpa [#allocation32], 1
    %4332 = vsyncpa [#allocation35], 1
    %4333 = vsyncpa [#allocation38], 1
    %4334 = vsyncpa [#allocation41], 1
    %4335 = vsyncpa [#allocation44], 1
    %4336 = vsyncpa [#allocation47], 1

</llo_original>
